<compile_context>
chip_gen: v7x
topology: tpu7x:2x2x1
jax: 0.10.0
libtpu: 0.0.40
codegen_flags: <defaults>
</compile_context>

<pallas_src>
import functools
import math

import jax
import jax.numpy as jnp
from jax.experimental import pallas as pl
from jax.experimental.pallas import tpu as pltpu

EPS = 1e-5           # matches the book's custom LayerNorm
NEG_INF = -1e30      # finite mask sentinel (no -inf arithmetic on the VPU)


# ----------------------------- in-kernel helpers -----------------------------

def _layernorm(x, scale, shift):
    # x: (..., E); scale/shift: (1, E). unbiased=False variance, like the ref.
    mean = jnp.mean(x, axis=-1, keepdims=True)
    c = x - mean
    var = jnp.mean(c * c, axis=-1, keepdims=True)
    return c * jax.lax.rsqrt(var + EPS) * scale + shift


def _gelu_tanh(x):
    # tanh-approx GELU, exactly as in the reference GELU module.
    c = math.sqrt(2.0 / math.pi)
    return 0.5 * x * (1.0 + jnp.tanh(c * (x + 0.044715 * x * x * x)))


# ----------------------------- Pallas kernels --------------------------------

def gpt_stack_kernel(x_ref, wq_ref, wk_ref, wv_ref, wo_ref, bo_ref,
                     ln1s_ref, ln1b_ref, ln2s_ref, ln2b_ref,
                     w1_ref, b1_ref, w2_ref, b2_ref,
                     flns_ref, flnb_ref,
                     o_ref, x_vmem, *, num_heads, head_block, ff_chunk):
    """One transformer layer per grid step; grid = (n_layers,).  Batch folded in."""
    l = pl.program_id(0)
    B, S, E = x_ref.shape
    M = B * S
    H = num_heads
    Dh = E // H
    Hb = head_block
    Gd = Hb * Dh                       # lanes per head group

    # Load initial activations into the resident VMEM residual at layer 0.
    @pl.when(l == 0)
    def _():
        x_vmem[...] = x_ref[...].reshape(M, E).astype(jnp.float32)

    x = x_vmem[...]                    # (M, E) f32 residual stream

    # ---- attention sub-block: x = x + out_proj(MHA(LN1(x))) ----
    h = _layernorm(x, ln1s_ref[0], ln1b_ref[0]).astype(jnp.bfloat16)
    # 1/sqrt(Dh) is pre-folded into wq (prepare_params), so q is pre-scaled.
    q = jnp.dot(h, wq_ref[0], preferred_element_type=jnp.float32)   # (M, E)
    k = jnp.dot(h, wk_ref[0], preferred_element_type=jnp.float32)
    v = jnp.dot(h, wv_ref[0], preferred_element_type=jnp.float32)

    row = jax.lax.broadcasted_iota(jnp.int32, (S, S), 0)
    col = jax.lax.broadcasted_iota(jnp.int32, (S, S), 1)
    causal = (col > row)[None, :, :]                                 # (1, S, S)

    wo = wo_ref[0]                                                   # (E, E) bf16
    attn = jnp.zeros((M, E), jnp.float32)
    for g in range(H // Hb):           # static head-group loop bounds VMEM
        d0 = g * Gd

        def to_heads(t):               # (M, Gd) -> (Hb*B, S, Dh), head-major
            tg = t[:, d0:d0 + Gd]
            tg = jnp.transpose(tg.reshape(M, Hb, Dh), (1, 0, 2))     # (Hb, M, Dh)
            return tg.reshape(Hb * B, S, Dh)

        qg, kg, vg = to_heads(q), to_heads(k), to_heads(v)
        s = jnp.einsum('nqd,nkd->nqk',
                       qg.astype(jnp.bfloat16), kg.astype(jnp.bfloat16),
                       preferred_element_type=jnp.float32)           # (Hb*B, S, S)
        s = jnp.where(causal, NEG_INF, s)
        m = jnp.max(s, axis=-1, keepdims=True)
        p = jnp.exp(s - m)
        # approx reciprocal -> EUP slot; attention rows sum to 1 only approximately.
        a = p * pl.reciprocal(jnp.sum(p, axis=-1, keepdims=True), approx=True)
        ctx = jnp.einsum('nqk,nkd->nqd',
                         a.astype(jnp.bfloat16), vg.astype(jnp.bfloat16),
                         preferred_element_type=jnp.float32)         # (Hb*B, S, Dh)
        ctx = jnp.transpose(ctx.reshape(Hb, M, Dh), (1, 0, 2)).reshape(M, Gd)
        attn = attn + jnp.dot(ctx.astype(jnp.bfloat16), wo[d0:d0 + Gd, :],
                              preferred_element_type=jnp.float32)

    x = x + attn + bo_ref[0]

    # ---- feed-forward sub-block: x = x + FF(LN2(x)), chunked along 4E ----
    h2 = _layernorm(x, ln2s_ref[0], ln2b_ref[0]).astype(jnp.bfloat16)
    w1 = w1_ref[0]                     # (E, F) bf16
    b1 = b1_ref[0]                     # (1, F) f32
    w2 = w2_ref[0]                     # (F, E) bf16
    F = w1.shape[1]
    ff = jnp.zeros((M, E), jnp.float32)
    for c0 in range(0, F, ff_chunk):   # static chunk loop bounds (M, F) live size
        f = jnp.dot(h2, w1[:, c0:c0 + ff_chunk],
                    preferred_element_type=jnp.float32) + b1[:, c0:c0 + ff_chunk]
        f = _gelu_tanh(f).astype(jnp.bfloat16)
        ff = ff + jnp.dot(f, w2[c0:c0 + ff_chunk, :],
                          preferred_element_type=jnp.float32)
    x = x + ff + b2_ref[0]

    x_vmem[...] = x

    # Final LayerNorm fused into the last-layer epilogue; single bf16 HBM write.
    @pl.when(l == pl.num_programs(0) - 1)
    def _():
        y = _layernorm(x, flns_ref[...], flnb_ref[...])
        o_ref[...] = y.reshape(B, S, E).astype(o_ref.dtype)


def lm_head_kernel(y_ref, wout_ref, o_ref):
    # y is already final-LayerNormed (bf16); pure matmul per vocab tile.
    o_ref[0] = jnp.dot(y_ref[0], wout_ref[...],
                       preferred_element_type=jnp.float32)


# ----------------------------- tiling helpers ---------------------------------

def _vmem_limit_bytes():
    try:
        phys = int(pltpu.get_tpu_info().vmem_capacity_bytes)
    except Exception:
        phys = 128 * 1024 * 1024
    # ~100 MiB on v5e/v6e (128 MiB physical), ~51 MiB on v7x (64 MiB physical)
    return min(100 * 1024 * 1024, int(phys * 0.8))


def _pick_head_block(H, max_hb=2):
    # 2-4 heads per group bounds attention scratch; 2 is conservative for v7x.
    for hb in range(min(H, max_hb), 0, -1):
        if H % hb == 0:
            return hb
    return 1


def _pick_ff_chunk(F, target=1024):
    if F <= target:
        return F
    for t in range(target, 127, -128):
        if F % t == 0:
            return t
    return F   # non-divisible: the chunk loop tolerates a ragged last chunk


def _pick_vocab_tile(V_pad, target=2048):
    # V_pad is always a multiple of 128, so this always returns a multiple of 128.
    if V_pad <= target:
        return V_pad
    for t in range(target, 127, -128):
        if V_pad % t == 0:
            return t
    return 128


def _layer_block(arr):
    rest = tuple(arr.shape[1:])
    nrest = len(rest)
    return pl.BlockSpec((1,) + rest, lambda l, _n=nrest: (l,) + (0,) * _n)


# ----------------------------- wrappers ---------------------------------------

_LAYER_NAMES = ('wq', 'wk', 'wv', 'wo', 'bo', 'ln1_s', 'ln1_b', 'ln2_s', 'ln2_b',
                'w1', 'b1', 'w2', 'b2')


def run_gpt_stack(x, prep, num_heads):
    B, S, E = x.shape
    layer_args = [prep[n] for n in _LAYER_NAMES]
    L = layer_args[0].shape[0]
    head_block = _pick_head_block(num_heads)
    ff_chunk = _pick_ff_chunk(prep['w1'].shape[-1])
    kern = functools.partial(gpt_stack_kernel, num_heads=num_heads,
                             head_block=head_block, ff_chunk=ff_chunk)
    in_specs = ([pl.BlockSpec((B, S, E), lambda l: (0, 0, 0))]
                + [_layer_block(a) for a in layer_args]
                + [pl.BlockSpec((1, E), lambda l: (0, 0)),
                   pl.BlockSpec((1, E), lambda l: (0, 0))])
    return pl.pallas_call(
        kern,
        out_shape=jax.ShapeDtypeStruct((B, S, E), jnp.bfloat16),
        grid=(L,),
        in_specs=in_specs,
        out_specs=pl.BlockSpec((B, S, E), lambda l: (0, 0, 0)),
        scratch_shapes=[pltpu.VMEM((B * S, E), jnp.float32)],
        compiler_params=pltpu.CompilerParams(
            dimension_semantics=("arbitrary",),
            vmem_limit_bytes=_vmem_limit_bytes()),
    )(x, *layer_args, prep['final_ln_s'], prep['final_ln_b'])


def run_lm_head(y, w_out_p):
    B, S, E = y.shape
    V_pad = w_out_p.shape[1]
    tv = _pick_vocab_tile(V_pad)
    n_v = V_pad // tv
    return pl.pallas_call(
        lm_head_kernel,
        out_shape=jax.ShapeDtypeStruct((B, S, V_pad), jnp.float32),
        grid=(B, n_v),
        in_specs=[pl.BlockSpec((1, S, E), lambda b, v: (b, 0, 0)),
                  pl.BlockSpec((E, tv), lambda b, v: (0, v))],
        out_specs=pl.BlockSpec((1, S, tv), lambda b, v: (b, 0, v)),
        compiler_params=pltpu.CompilerParams(
            dimension_semantics=("parallel", "parallel"),
            vmem_limit_bytes=_vmem_limit_bytes()),
    )(y, w_out_p)


def prepare_params(params, cfg):
    """One-time parameter prep: stack per-layer weights along L, cast to bf16,
    fold 1/sqrt(Dh) into wq, pad the vocab dim to a multiple of 128.
    Called ONCE at load time (not inside the per-call forward path)."""
    E, H = cfg['emb_dim'], cfg['n_heads']
    Dh = E // H
    bf16, f32 = jnp.bfloat16, jnp.float32
    blocks = params['blocks']

    def stk(name, dtype):
        return jnp.stack([b[name] for b in blocks], axis=0).astype(dtype)

    wq = jnp.stack([b['wq'] for b in blocks], axis=0) * (1.0 / math.sqrt(Dh))
    prep = {
        'wq': wq.astype(bf16),
        'wk': stk('wk', bf16), 'wv': stk('wv', bf16), 'wo': stk('wo', bf16),
        'w1': stk('w1', bf16), 'w2': stk('w2', bf16),
        'bo': stk('bo', f32), 'b1': stk('b1', f32), 'b2': stk('b2', f32),
        'ln1_s': stk('ln1_s', f32), 'ln1_b': stk('ln1_b', f32),
        'ln2_s': stk('ln2_s', f32), 'ln2_b': stk('ln2_b', f32),
        'final_ln_s': params['final_ln_s'].astype(f32),
        'final_ln_b': params['final_ln_b'].astype(f32),
        'tok_emb': params['tok_emb'],
        'pos_emb': params['pos_emb'],
    }
    V = params['w_out'].shape[1]
    V_pad = ((V + 127) // 128) * 128
    w_out = params['w_out']
    if V_pad != V:
        w_out = jnp.pad(w_out, ((0, 0), (0, V_pad - V)))
    prep['w_out'] = w_out.astype(bf16)
    prep['vocab_size'] = V
    return prep


def gpt_forward(in_idx, prep, cfg):
    B, S = in_idx.shape
    # embedding gathers = glue (plain JAX); drop_emb is identity (eval / p=0)
    x = (prep['tok_emb'][in_idx] + prep['pos_emb'][:S][None, :, :]).astype(jnp.bfloat16)
    y = run_gpt_stack(x, prep, cfg['n_heads'])         # (B,S,E) bf16, final-LN applied
    logits = run_lm_head(y, prep['w_out'])             # (B,S,V_pad) f32
    return logits[..., :prep['vocab_size']]


# ----------------------------- pure-JAX reference ------------------------------

def gpt_reference(in_idx, params, cfg):
    B, S = in_idx.shape
    H = cfg['n_heads']
    x = params['tok_emb'][in_idx] + params['pos_emb'][:S][None, :, :]
    for blk in params['blocks']:
        E = x.shape[-1]
        Dh = E // H
        h = _layernorm(x, blk['ln1_s'], blk['ln1_b'])
        q = h @ blk['wq']; k = h @ blk['wk']; v = h @ blk['wv']
        q = q.reshape(B, S, H, Dh).transpose(0, 2, 1, 3)
        k = k.reshape(B, S, H, Dh).transpose(0, 2, 1, 3)
        v = v.reshape(B, S, H, Dh).transpose(0, 2, 1, 3)
        s = jnp.einsum('bhqd,bhkd->bhqk', q, k) / math.sqrt(Dh)
        mask = jnp.triu(jnp.ones((S, S), bool), k=1)
        s = jnp.where(mask, -jnp.inf, s)
        a = jax.nn.softmax(s, axis=-1)
        ctx = jnp.einsum('bhqk,bhkd->bhqd', a, v).transpose(0, 2, 1, 3).reshape(B, S, E)
        x = x + (ctx @ blk['wo'] + blk['bo'])
        h2 = _layernorm(x, blk['ln2_s'], blk['ln2_b'])
        f = _gelu_tanh(h2 @ blk['w1'] + blk['b1'])
        x = x + (f @ blk['w2'] + blk['b2'])
    h = _layernorm(x, params['final_ln_s'], params['final_ln_b'])
    return h @ params['w_out']


# ----------------------------- param init --------------------------------------

def init_params(key, cfg):
    E, V, C, L = cfg['emb_dim'], cfg['vocab_size'], cfg['context_length'], cfg['n_layers']

    def normal(k, shape, scale=0.02):
        return (scale * jax.random.normal(k, shape)).astype(jnp.float32)

    keys = iter(jax.random.split(key, 8 + 16 * L))
    params = {
        'tok_emb': normal(next(keys), (V, E)),
        'pos_emb': normal(next(keys), (C, E)),
        'final_ln_s': jnp.ones((1, E), jnp.float32),
        'final_ln_b': jnp.zeros((1, E), jnp.float32),
        'w_out': normal(next(keys), (E, V)),   # torch out_head.weight.T
        'blocks': [],
    }
    for _ in range(L):
        blk = {
            'wq': normal(next(keys), (E, E)),      # qkv_bias=False
            'wk': normal(next(keys), (E, E)),
            'wv': normal(next(keys), (E, E)),
            'wo': normal(next(keys), (E, E)),
            'bo': jnp.zeros((1, E), jnp.float32),
            'ln1_s': jnp.ones((1, E), jnp.float32),
            'ln1_b': jnp.zeros((1, E), jnp.float32),
            'ln2_s': jnp.ones((1, E), jnp.float32),
            'ln2_b': jnp.zeros((1, E), jnp.float32),
            'w1': normal(next(keys), (E, 4 * E)),
            'b1': normal(next(keys), (1, 4 * E)),
            'w2': normal(next(keys), (4 * E, E)),
            'b2': normal(next(keys), (1, E)),
        }
        params['blocks'].append(blk)
    return params


# ----------------------------- main ---------------------------------------------

if __name__ == "__main__":
    cfg = {
        'vocab_size': 130,        # deliberately not a multiple of 128 -> exercises padding
        'context_length': 16,
        'emb_dim': 32,
        'n_heads': 4,
        'n_layers': 3,
        'drop_rate': 0.0,         # dropout is identity (eval / p=0)
        'qkv_bias': False,
    }
    key = jax.random.PRNGKey(0)
    k_params, k_idx = jax.random.split(key)
    params = init_params(k_params, cfg)
    prep = prepare_params(params, cfg)   # one-time stacking / casting / padding

    B, S = 2, 8
    in_idx = jax.random.randint(k_idx, (B, S), 0, cfg['vocab_size'], dtype=jnp.int32)

    logits = gpt_forward(in_idx, prep, cfg)
    jax.block_until_ready(logits)
    assert logits.shape == (B, S, cfg['vocab_size'])

    ref = gpt_reference(in_idx, params, cfg)
    # bf16 matmul operands / bf16 boundary activations vs. f32 reference
    assert jnp.allclose(logits, ref, atol=3e-2, rtol=3e-2), "mismatch vs JAX reference"

    print("KERNEL_OK")
</pallas_src>

<mosaic_0001>
module attributes {stable_mosaic.version = 11 : i64} {
  func.func @gpt_stack_kernel(%arg0: i32, %arg1: memref<2x8x32xbf16, #tpu.memory_space<vmem>>, %arg2: memref<1x32x32xbf16, #tpu.memory_space<vmem>>, %arg3: memref<1x32x32xbf16, #tpu.memory_space<vmem>>, %arg4: memref<1x32x32xbf16, #tpu.memory_space<vmem>>, %arg5: memref<1x32x32xbf16, #tpu.memory_space<vmem>>, %arg6: memref<1x1x32xf32, #tpu.memory_space<vmem>>, %arg7: memref<1x1x32xf32, #tpu.memory_space<vmem>>, %arg8: memref<1x1x32xf32, #tpu.memory_space<vmem>>, %arg9: memref<1x1x32xf32, #tpu.memory_space<vmem>>, %arg10: memref<1x1x32xf32, #tpu.memory_space<vmem>>, %arg11: memref<1x32x128xbf16, #tpu.memory_space<vmem>>, %arg12: memref<1x1x128xf32, #tpu.memory_space<vmem>>, %arg13: memref<1x128x32xbf16, #tpu.memory_space<vmem>>, %arg14: memref<1x1x32xf32, #tpu.memory_space<vmem>>, %arg15: memref<1x32xf32, #tpu.memory_space<vmem>>, %arg16: memref<1x32xf32, #tpu.memory_space<vmem>>, %arg17: memref<2x8x32xbf16, #tpu.memory_space<vmem>>, %arg18: memref<16x32xf32, #tpu.memory_space<vmem>>) attributes {dimension_semantics = [#tpu.dimension_semantics<arbitrary>], iteration_bounds = array<i64: 3>, scalar_prefetch = 0 : i64, scratch_operands = 1 : i64, tpu.core_type = #tpu.core_type<tc>, window_params = [{pipeline_mode = #tpu.pipeline_mode<synchronous>, transform_indices = @transform_0, window_bounds = array<i64: 2, 8, 32>}, {transform_indices = @transform_1, window_bounds = array<i64: 1, 32, 32>}, {transform_indices = @transform_2, window_bounds = array<i64: 1, 32, 32>}, {transform_indices = @transform_3, window_bounds = array<i64: 1, 32, 32>}, {transform_indices = @transform_4, window_bounds = array<i64: 1, 32, 32>}, {transform_indices = @transform_5, window_bounds = array<i64: 1, 1, 32>}, {transform_indices = @transform_6, window_bounds = array<i64: 1, 1, 32>}, {transform_indices = @transform_7, window_bounds = array<i64: 1, 1, 32>}, {transform_indices = @transform_8, window_bounds = array<i64: 1, 1, 32>}, {transform_indices = @transform_9, window_bounds = array<i64: 1, 1, 32>}, {transform_indices = @transform_10, window_bounds = array<i64: 1, 32, 128>}, {transform_indices = @transform_11, window_bounds = array<i64: 1, 1, 128>}, {transform_indices = @transform_12, window_bounds = array<i64: 1, 128, 32>}, {transform_indices = @transform_13, window_bounds = array<i64: 1, 1, 32>}, {pipeline_mode = #tpu.pipeline_mode<synchronous>, transform_indices = @transform_14, window_bounds = array<i64: 1, 32>}, {pipeline_mode = #tpu.pipeline_mode<synchronous>, transform_indices = @transform_15, window_bounds = array<i64: 1, 32>}, {pipeline_mode = #tpu.pipeline_mode<synchronous>, transform_indices = @transform_16, window_bounds = array<i64: 2, 8, 32>}]} {
    %c0_i32 = arith.constant 0 : i32
    %0 = arith.cmpi eq, %arg0, %c0_i32 : i32
    %1 = arith.extui %0 : i1 to i32
    %c0_i32_0 = arith.constant 0 : i32
    %2 = arith.cmpi ne, %1, %c0_i32_0 : i32
    scf.if %2 {
      %c0_76 = arith.constant 0 : index
      %c0_77 = arith.constant 0 : index
      %c0_78 = arith.constant 0 : index
      %188 = vector.load %arg1[%c0_76, %c0_77, %c0_78] : memref<2x8x32xbf16, #tpu.memory_space<vmem>>, vector<2x8x32xbf16>
      %189 = vector.shape_cast %188 : vector<2x8x32xbf16> to vector<16x32xbf16>
      %190 = arith.extf %189 : vector<16x32xbf16> to vector<16x32xf32>
      %c0_79 = arith.constant 0 : index
      %c0_80 = arith.constant 0 : index
      %191 = vector.load %arg18[%c0_79, %c0_80] : memref<16x32xf32, #tpu.memory_space<vmem>>, vector<16x32xf32>
      tpu.vector_store %arg18[%c0_79, %c0_80], %190 {strides = array<i32>} : memref<16x32xf32, #tpu.memory_space<vmem>>, vector<16x32xf32>,
    } else {
    }
    %c0 = arith.constant 0 : index
    %c0_1 = arith.constant 0 : index
    %3 = vector.load %arg18[%c0, %c0_1] : memref<16x32xf32, #tpu.memory_space<vmem>>, vector<16x32xf32>
    %c0_2 = arith.constant 0 : index
    %c0_3 = arith.constant 0 : index
    %c0_4 = arith.constant 0 : index
    %4 = vector.load %arg7[%c0_2, %c0_3, %c0_4] : memref<1x1x32xf32, #tpu.memory_space<vmem>>, vector<1x1x32xf32>
    %5 = vector.shape_cast %4 : vector<1x1x32xf32> to vector<1x32xf32>
    %c0_5 = arith.constant 0 : index
    %c0_6 = arith.constant 0 : index
    %c0_7 = arith.constant 0 : index
    %6 = vector.load %arg8[%c0_5, %c0_6, %c0_7] : memref<1x1x32xf32, #tpu.memory_space<vmem>>, vector<1x1x32xf32>
    %7 = vector.shape_cast %6 : vector<1x1x32xf32> to vector<1x32xf32>
    %cst = arith.constant dense<0.000000e+00> : vector<16xf32>
    %8 = vector.multi_reduction <add>, %3, %cst [1] : vector<16x32xf32> to vector<16xf32>
    %9 = vector.shape_cast %8 : vector<16xf32> to vector<16x1xf32>
    %cst_8 = arith.constant 3.200000e+01 : f32
    %10 = vector.broadcast %cst_8 : f32 to vector<16x1xf32>
    %11 = arith.divf %9, %10 : vector<16x1xf32>
    %12 = vector.broadcast %11 : vector<16x1xf32> to vector<16x32xf32>
    %13 = arith.subf %3, %12 : vector<16x32xf32>
    %14 = arith.mulf %13, %13 : vector<16x32xf32>
    %cst_9 = arith.constant dense<0.000000e+00> : vector<16xf32>
    %15 = vector.multi_reduction <add>, %14, %cst_9 [1] : vector<16x32xf32> to vector<16xf32>
    %16 = vector.shape_cast %15 : vector<16xf32> to vector<16x1xf32>
    %cst_10 = arith.constant 3.200000e+01 : f32
    %17 = vector.broadcast %cst_10 : f32 to vector<16x1xf32>
    %18 = arith.divf %16, %17 : vector<16x1xf32>
    %cst_11 = arith.constant 9.99999974E-6 : f32
    %19 = vector.broadcast %cst_11 : f32 to vector<16x1xf32>
    %20 = arith.addf %18, %19 : vector<16x1xf32>
    %21 = math.rsqrt %20 : vector<16x1xf32>
    %22 = vector.broadcast %21 : vector<16x1xf32> to vector<16x32xf32>
    %23 = arith.mulf %13, %22 : vector<16x32xf32>
    %24 = vector.broadcast %5 : vector<1x32xf32> to vector<16x32xf32>
    %25 = arith.mulf %23, %24 : vector<16x32xf32>
    %26 = vector.broadcast %7 : vector<1x32xf32> to vector<16x32xf32>
    %27 = arith.addf %25, %26 : vector<16x32xf32>
    %28 = arith.truncf %27 : vector<16x32xf32> to vector<16x32xbf16>
    %c0_12 = arith.constant 0 : index
    %c0_13 = arith.constant 0 : index
    %c0_14 = arith.constant 0 : index
    %29 = vector.load %arg2[%c0_12, %c0_13, %c0_14] : memref<1x32x32xbf16, #tpu.memory_space<vmem>>, vector<1x32x32xbf16>
    %30 = vector.shape_cast %29 : vector<1x32x32xbf16> to vector<32x32xbf16>
    %cst_15 = arith.constant dense<0.000000e+00> : vector<16x32xf32>
    %31 = tpu.matmul %28, %30, %cst_15 {dimension_numbers = #tpu.dot_dimension_numbers<[1], [0], [0], [1], [0, 0, 1, 1], [], []>} : vector<16x32xbf16>, vector<32x32xbf16>, vector<16x32xf32> -> vector<16x32xf32>
    %c0_16 = arith.constant 0 : index
    %c0_17 = arith.constant 0 : index
    %c0_18 = arith.constant 0 : index
    %32 = vector.load %arg3[%c0_16, %c0_17, %c0_18] : memref<1x32x32xbf16, #tpu.memory_space<vmem>>, vector<1x32x32xbf16>
    %33 = vector.shape_cast %32 : vector<1x32x32xbf16> to vector<32x32xbf16>
    %cst_19 = arith.constant dense<0.000000e+00> : vector<16x32xf32>
    %34 = tpu.matmul %28, %33, %cst_19 {dimension_numbers = #tpu.dot_dimension_numbers<[1], [0], [0], [1], [0, 0, 1, 1], [], []>} : vector<16x32xbf16>, vector<32x32xbf16>, vector<16x32xf32> -> vector<16x32xf32>
    %c0_20 = arith.constant 0 : index
    %c0_21 = arith.constant 0 : index
    %c0_22 = arith.constant 0 : index
    %35 = vector.load %arg4[%c0_20, %c0_21, %c0_22] : memref<1x32x32xbf16, #tpu.memory_space<vmem>>, vector<1x32x32xbf16>
    %36 = vector.shape_cast %35 : vector<1x32x32xbf16> to vector<32x32xbf16>
    %cst_23 = arith.constant dense<0.000000e+00> : vector<16x32xf32>
    %37 = tpu.matmul %28, %36, %cst_23 {dimension_numbers = #tpu.dot_dimension_numbers<[1], [0], [0], [1], [0, 0, 1, 1], [], []>} : vector<16x32xbf16>, vector<32x32xbf16>, vector<16x32xf32> -> vector<16x32xf32>
    %38 = tpu.iota {dimensions = array<i32: 0>} : vector<8x8xi32>
    %39 = tpu.iota {dimensions = array<i32: 1>} : vector<8x8xi32>
    %40 = arith.cmpi sgt, %39, %38 : vector<8x8xi32>
    %41 = vector.shape_cast %40 : vector<8x8xi1> to vector<1x8x8xi1>
    %c0_24 = arith.constant 0 : index
    %c0_25 = arith.constant 0 : index
    %c0_26 = arith.constant 0 : index
    %42 = vector.load %arg5[%c0_24, %c0_25, %c0_26] : memref<1x32x32xbf16, #tpu.memory_space<vmem>>, vector<1x32x32xbf16>
    %43 = vector.shape_cast %42 : vector<1x32x32xbf16> to vector<32x32xbf16>
    %cst_27 = arith.constant 0.000000e+00 : f32
    %44 = vector.broadcast %cst_27 : f32 to vector<16x32xf32>
    %45 = vector.extract_strided_slice %31 {offsets = [0, 0], sizes = [16, 16], strides = [1, 1]} : vector<16x32xf32> to vector<16x16xf32>
    %46 = vector.shape_cast %45 : vector<16x16xf32> to vector<16x2x8xf32>
    %47 = tpu.transpose %46, [1, 0, 2] : vector<16x2x8xf32> -> vector<2x16x8xf32>
    %48 = vector.shape_cast %47 : vector<2x16x8xf32> to vector<4x8x8xf32>
    %49 = vector.extract_strided_slice %34 {offsets = [0, 0], sizes = [16, 16], strides = [1, 1]} : vector<16x32xf32> to vector<16x16xf32>
    %50 = vector.shape_cast %49 : vector<16x16xf32> to vector<16x2x8xf32>
    %51 = tpu.transpose %50, [1, 0, 2] : vector<16x2x8xf32> -> vector<2x16x8xf32>
    %52 = vector.shape_cast %51 : vector<2x16x8xf32> to vector<4x8x8xf32>
    %53 = vector.extract_strided_slice %37 {offsets = [0, 0], sizes = [16, 16], strides = [1, 1]} : vector<16x32xf32> to vector<16x16xf32>
    %54 = vector.shape_cast %53 : vector<16x16xf32> to vector<16x2x8xf32>
    %55 = tpu.transpose %54, [1, 0, 2] : vector<16x2x8xf32> -> vector<2x16x8xf32>
    %56 = vector.shape_cast %55 : vector<2x16x8xf32> to vector<4x8x8xf32>
    %57 = arith.truncf %48 : vector<4x8x8xf32> to vector<4x8x8xbf16>
    %58 = arith.truncf %52 : vector<4x8x8xf32> to vector<4x8x8xbf16>
    "tpu.trace_start"() <{level = 10 : i32, message = "nqd,nkd->nqk"}> : () -> ()
    %cst_28 = arith.constant dense<0.000000e+00> : vector<4x8x8xf32>
    %59 = tpu.matmul %57, %58, %cst_28 {dimension_numbers = #tpu.dot_dimension_numbers<[2], [2], [1], [1], [0, 0, 0, 1, 1, 1], [0], [0]>} : vector<4x8x8xbf16>, vector<4x8x8xbf16>, vector<4x8x8xf32> -> vector<4x8x8xf32>
    %cst_29 = arith.constant -1.000000e+30 : f32
    "tpu.trace_stop"() : () -> ()
    %60 = vector.shape_cast %41 : vector<1x8x8xi1> to vector<1x8x8xi1>
    %61 = vector.broadcast %60 : vector<1x8x8xi1> to vector<4x8x8xi1>
    %62 = vector.broadcast %cst_29 : f32 to vector<4x8x8xf32>
    %63 = arith.select %61, %62, %59 : vector<4x8x8xi1>, vector<4x8x8xf32>
    %cst_30 = arith.constant dense<0xFF800000> : vector<4x8xf32>
    %64 = vector.multi_reduction <maximumf>, %63, %cst_30 [2] : vector<4x8x8xf32> to vector<4x8xf32>
    %65 = vector.shape_cast %64 : vector<4x8xf32> to vector<4x8x1xf32>
    %66 = vector.broadcast %65 : vector<4x8x1xf32> to vector<4x8x8xf32>
    %67 = arith.subf %63, %66 : vector<4x8x8xf32>
    %68 = math.exp %67 : vector<4x8x8xf32>
    %cst_31 = arith.constant dense<0.000000e+00> : vector<4x8xf32>
    %69 = vector.multi_reduction <add>, %68, %cst_31 [2] : vector<4x8x8xf32> to vector<4x8xf32>
    %70 = vector.shape_cast %69 : vector<4x8xf32> to vector<4x8x1xf32>
    %71 = tpu.reciprocal %70 {approx = true} : vector<4x8x1xf32> -> vector<4x8x1xf32>
    %72 = vector.broadcast %71 : vector<4x8x1xf32> to vector<4x8x8xf32>
    %73 = arith.mulf %68, %72 : vector<4x8x8xf32>
    %74 = arith.truncf %73 : vector<4x8x8xf32> to vector<4x8x8xbf16>
    %75 = arith.truncf %56 : vector<4x8x8xf32> to vector<4x8x8xbf16>
    "tpu.trace_start"() <{level = 10 : i32, message = "nqk,nkd->nqd"}> : () -> ()
    %cst_32 = arith.constant dense<0.000000e+00> : vector<4x8x8xf32>
    %76 = tpu.matmul %74, %75, %cst_32 {dimension_numbers = #tpu.dot_dimension_numbers<[2], [1], [1], [2], [0, 0, 0, 1, 1, 2], [0], [0]>} : vector<4x8x8xbf16>, vector<4x8x8xbf16>, vector<4x8x8xf32> -> vector<4x8x8xf32>
    "tpu.trace_stop"() : () -> ()
    %77 = vector.shape_cast %76 : vector<4x8x8xf32> to vector<2x16x8xf32>
    %78 = tpu.transpose %77, [1, 0, 2] : vector<2x16x8xf32> -> vector<16x2x8xf32>
    %79 = vector.shape_cast %78 : vector<16x2x8xf32> to vector<16x16xf32>
    %80 = arith.truncf %79 : vector<16x16xf32> to vector<16x16xbf16>
    %81 = vector.extract_strided_slice %43 {offsets = [0, 0], sizes = [16, 32], strides = [1, 1]} : vector<32x32xbf16> to vector<16x32xbf16>
    %cst_33 = arith.constant dense<0.000000e+00> : vector<16x32xf32>
    %82 = tpu.matmul %80, %81, %cst_33 {dimension_numbers = #tpu.dot_dimension_numbers<[1], [0], [0], [1], [0, 0, 1, 1], [], []>} : vector<16x16xbf16>, vector<16x32xbf16>, vector<16x32xf32> -> vector<16x32xf32>
    %83 = arith.addf %44, %82 : vector<16x32xf32>
    %84 = vector.extract_strided_slice %31 {offsets = [0, 16], sizes = [16, 16], strides = [1, 1]} : vector<16x32xf32> to vector<16x16xf32>
    %85 = vector.shape_cast %84 : vector<16x16xf32> to vector<16x2x8xf32>
    %86 = tpu.transpose %85, [1, 0, 2] : vector<16x2x8xf32> -> vector<2x16x8xf32>
    %87 = vector.shape_cast %86 : vector<2x16x8xf32> to vector<4x8x8xf32>
    %88 = vector.extract_strided_slice %34 {offsets = [0, 16], sizes = [16, 16], strides = [1, 1]} : vector<16x32xf32> to vector<16x16xf32>
    %89 = vector.shape_cast %88 : vector<16x16xf32> to vector<16x2x8xf32>
    %90 = tpu.transpose %89, [1, 0, 2] : vector<16x2x8xf32> -> vector<2x16x8xf32>
    %91 = vector.shape_cast %90 : vector<2x16x8xf32> to vector<4x8x8xf32>
    %92 = vector.extract_strided_slice %37 {offsets = [0, 16], sizes = [16, 16], strides = [1, 1]} : vector<16x32xf32> to vector<16x16xf32>
    %93 = vector.shape_cast %92 : vector<16x16xf32> to vector<16x2x8xf32>
    %94 = tpu.transpose %93, [1, 0, 2] : vector<16x2x8xf32> -> vector<2x16x8xf32>
    %95 = vector.shape_cast %94 : vector<2x16x8xf32> to vector<4x8x8xf32>
    %96 = arith.truncf %87 : vector<4x8x8xf32> to vector<4x8x8xbf16>
    %97 = arith.truncf %91 : vector<4x8x8xf32> to vector<4x8x8xbf16>
    "tpu.trace_start"() <{level = 10 : i32, message = "nqd,nkd->nqk"}> : () -> ()
    %cst_34 = arith.constant dense<0.000000e+00> : vector<4x8x8xf32>
    %98 = tpu.matmul %96, %97, %cst_34 {dimension_numbers = #tpu.dot_dimension_numbers<[2], [2], [1], [1], [0, 0, 0, 1, 1, 1], [0], [0]>} : vector<4x8x8xbf16>, vector<4x8x8xbf16>, vector<4x8x8xf32> -> vector<4x8x8xf32>
    %cst_35 = arith.constant -1.000000e+30 : f32
    "tpu.trace_stop"() : () -> ()
    %99 = vector.shape_cast %41 : vector<1x8x8xi1> to vector<1x8x8xi1>
    %100 = vector.broadcast %99 : vector<1x8x8xi1> to vector<4x8x8xi1>
    %101 = vector.broadcast %cst_35 : f32 to vector<4x8x8xf32>
    %102 = arith.select %100, %101, %98 : vector<4x8x8xi1>, vector<4x8x8xf32>
    %cst_36 = arith.constant dense<0xFF800000> : vector<4x8xf32>
    %103 = vector.multi_reduction <maximumf>, %102, %cst_36 [2] : vector<4x8x8xf32> to vector<4x8xf32>
    %104 = vector.shape_cast %103 : vector<4x8xf32> to vector<4x8x1xf32>
    %105 = vector.broadcast %104 : vector<4x8x1xf32> to vector<4x8x8xf32>
    %106 = arith.subf %102, %105 : vector<4x8x8xf32>
    %107 = math.exp %106 : vector<4x8x8xf32>
    %cst_37 = arith.constant dense<0.000000e+00> : vector<4x8xf32>
    %108 = vector.multi_reduction <add>, %107, %cst_37 [2] : vector<4x8x8xf32> to vector<4x8xf32>
    %109 = vector.shape_cast %108 : vector<4x8xf32> to vector<4x8x1xf32>
    %110 = tpu.reciprocal %109 {approx = true} : vector<4x8x1xf32> -> vector<4x8x1xf32>
    %111 = vector.broadcast %110 : vector<4x8x1xf32> to vector<4x8x8xf32>
    %112 = arith.mulf %107, %111 : vector<4x8x8xf32>
    %113 = arith.truncf %112 : vector<4x8x8xf32> to vector<4x8x8xbf16>
    %114 = arith.truncf %95 : vector<4x8x8xf32> to vector<4x8x8xbf16>
    "tpu.trace_start"() <{level = 10 : i32, message = "nqk,nkd->nqd"}> : () -> ()
    %cst_38 = arith.constant dense<0.000000e+00> : vector<4x8x8xf32>
    %115 = tpu.matmul %113, %114, %cst_38 {dimension_numbers = #tpu.dot_dimension_numbers<[2], [1], [1], [2], [0, 0, 0, 1, 1, 2], [0], [0]>} : vector<4x8x8xbf16>, vector<4x8x8xbf16>, vector<4x8x8xf32> -> vector<4x8x8xf32>
    "tpu.trace_stop"() : () -> ()
    %116 = vector.shape_cast %115 : vector<4x8x8xf32> to vector<2x16x8xf32>
    %117 = tpu.transpose %116, [1, 0, 2] : vector<2x16x8xf32> -> vector<16x2x8xf32>
    %118 = vector.shape_cast %117 : vector<16x2x8xf32> to vector<16x16xf32>
    %119 = arith.truncf %118 : vector<16x16xf32> to vector<16x16xbf16>
    %120 = vector.extract_strided_slice %43 {offsets = [16, 0], sizes = [16, 32], strides = [1, 1]} : vector<32x32xbf16> to vector<16x32xbf16>
    %cst_39 = arith.constant dense<0.000000e+00> : vector<16x32xf32>
    %121 = tpu.matmul %119, %120, %cst_39 {dimension_numbers = #tpu.dot_dimension_numbers<[1], [0], [0], [1], [0, 0, 1, 1], [], []>} : vector<16x16xbf16>, vector<16x32xbf16>, vector<16x32xf32> -> vector<16x32xf32>
    %122 = arith.addf %83, %121 : vector<16x32xf32>
    %123 = arith.addf %3, %122 : vector<16x32xf32>
    %c0_40 = arith.constant 0 : index
    %c0_41 = arith.constant 0 : index
    %c0_42 = arith.constant 0 : index
    %124 = vector.load %arg6[%c0_40, %c0_41, %c0_42] : memref<1x1x32xf32, #tpu.memory_space<vmem>>, vector<1x1x32xf32>
    %125 = vector.shape_cast %124 : vector<1x1x32xf32> to vector<1x32xf32>
    %126 = vector.broadcast %125 : vector<1x32xf32> to vector<16x32xf32>
    %127 = arith.addf %123, %126 : vector<16x32xf32>
    %c0_43 = arith.constant 0 : index
    %c0_44 = arith.constant 0 : index
    %c0_45 = arith.constant 0 : index
    %128 = vector.load %arg9[%c0_43, %c0_44, %c0_45] : memref<1x1x32xf32, #tpu.memory_space<vmem>>, vector<1x1x32xf32>
    %129 = vector.shape_cast %128 : vector<1x1x32xf32> to vector<1x32xf32>
    %c0_46 = arith.constant 0 : index
    %c0_47 = arith.constant 0 : index
    %c0_48 = arith.constant 0 : index
    %130 = vector.load %arg10[%c0_46, %c0_47, %c0_48] : memref<1x1x32xf32, #tpu.memory_space<vmem>>, vector<1x1x32xf32>
    %131 = vector.shape_cast %130 : vector<1x1x32xf32> to vector<1x32xf32>
    %cst_49 = arith.constant dense<0.000000e+00> : vector<16xf32>
    %132 = vector.multi_reduction <add>, %127, %cst_49 [1] : vector<16x32xf32> to vector<16xf32>
    %133 = vector.shape_cast %132 : vector<16xf32> to vector<16x1xf32>
    %cst_50 = arith.constant 3.200000e+01 : f32
    %134 = vector.broadcast %cst_50 : f32 to vector<16x1xf32>
    %135 = arith.divf %133, %134 : vector<16x1xf32>
    %136 = vector.broadcast %135 : vector<16x1xf32> to vector<16x32xf32>
    %137 = arith.subf %127, %136 : vector<16x32xf32>
    %138 = arith.mulf %137, %137 : vector<16x32xf32>
    %cst_51 = arith.constant dense<0.000000e+00> : vector<16xf32>
    %139 = vector.multi_reduction <add>, %138, %cst_51 [1] : vector<16x32xf32> to vector<16xf32>
    %140 = vector.shape_cast %139 : vector<16xf32> to vector<16x1xf32>
    %cst_52 = arith.constant 3.200000e+01 : f32
    %141 = vector.broadcast %cst_52 : f32 to vector<16x1xf32>
    %142 = arith.divf %140, %141 : vector<16x1xf32>
    %cst_53 = arith.constant 9.99999974E-6 : f32
    %143 = vector.broadcast %cst_53 : f32 to vector<16x1xf32>
    %144 = arith.addf %142, %143 : vector<16x1xf32>
    %145 = math.rsqrt %144 : vector<16x1xf32>
    %146 = vector.broadcast %145 : vector<16x1xf32> to vector<16x32xf32>
    %147 = arith.mulf %137, %146 : vector<16x32xf32>
    %148 = vector.broadcast %129 : vector<1x32xf32> to vector<16x32xf32>
    %149 = arith.mulf %147, %148 : vector<16x32xf32>
    %150 = vector.broadcast %131 : vector<1x32xf32> to vector<16x32xf32>
    %151 = arith.addf %149, %150 : vector<16x32xf32>
    %152 = arith.truncf %151 : vector<16x32xf32> to vector<16x32xbf16>
    %c0_54 = arith.constant 0 : index
    %c0_55 = arith.constant 0 : index
    %c0_56 = arith.constant 0 : index
    %153 = vector.load %arg11[%c0_54, %c0_55, %c0_56] : memref<1x32x128xbf16, #tpu.memory_space<vmem>>, vector<1x32x128xbf16>
    %154 = vector.shape_cast %153 : vector<1x32x128xbf16> to vector<32x128xbf16>
    %c0_57 = arith.constant 0 : index
    %c0_58 = arith.constant 0 : index
    %c0_59 = arith.constant 0 : index
    %155 = vector.load %arg12[%c0_57, %c0_58, %c0_59] : memref<1x1x128xf32, #tpu.memory_space<vmem>>, vector<1x1x128xf32>
    %156 = vector.shape_cast %155 : vector<1x1x128xf32> to vector<1x128xf32>
    %c0_60 = arith.constant 0 : index
    %c0_61 = arith.constant 0 : index
    %c0_62 = arith.constant 0 : index
    %157 = vector.load %arg13[%c0_60, %c0_61, %c0_62] : memref<1x128x32xbf16, #tpu.memory_space<vmem>>, vector<1x128x32xbf16>
    %158 = vector.shape_cast %157 : vector<1x128x32xbf16> to vector<128x32xbf16>
    %cst_63 = arith.constant 0.000000e+00 : f32
    %159 = vector.broadcast %cst_63 : f32 to vector<16x32xf32>
    %cst_64 = arith.constant dense<0.000000e+00> : vector<16x128xf32>
    %160 = tpu.matmul %152, %154, %cst_64 {dimension_numbers = #tpu.dot_dimension_numbers<[1], [0], [0], [1], [0, 0, 1, 1], [], []>} : vector<16x32xbf16>, vector<32x128xbf16>, vector<16x128xf32> -> vector<16x128xf32>
    %161 = vector.broadcast %156 : vector<1x128xf32> to vector<16x128xf32>
    %162 = arith.addf %160, %161 : vector<16x128xf32>
    %cst_65 = arith.constant 5.000000e-01 : f32
    %163 = vector.broadcast %cst_65 : f32 to vector<16x128xf32>
    %164 = arith.mulf %163, %162 : vector<16x128xf32>
    %cst_66 = arith.constant 4.471500e-02 : f32
    %165 = vector.broadcast %cst_66 : f32 to vector<16x128xf32>
    %166 = arith.mulf %165, %162 : vector<16x128xf32>
    %167 = arith.mulf %166, %162 : vector<16x128xf32>
    %168 = arith.mulf %167, %162 : vector<16x128xf32>
    %169 = arith.addf %162, %168 : vector<16x128xf32>
    %cst_67 = arith.constant 0.797884583 : f32
    %170 = vector.broadcast %cst_67 : f32 to vector<16x128xf32>
    %171 = arith.mulf %170, %169 : vector<16x128xf32>
    %172 = math.tanh %171 : vector<16x128xf32>
    %cst_68 = arith.constant 1.000000e+00 : f32
    %173 = vector.broadcast %cst_68 : f32 to vector<16x128xf32>
    %174 = arith.addf %173, %172 : vector<16x128xf32>
    %175 = arith.mulf %164, %174 : vector<16x128xf32>
    %176 = arith.truncf %175 : vector<16x128xf32> to vector<16x128xbf16>
    %cst_69 = arith.constant dense<0.000000e+00> : vector<16x32xf32>
    %177 = tpu.matmul %176, %158, %cst_69 {dimension_numbers = #tpu.dot_dimension_numbers<[1], [0], [0], [1], [0, 0, 1, 1], [], []>} : vector<16x128xbf16>, vector<128x32xbf16>, vector<16x32xf32> -> vector<16x32xf32>
    %178 = arith.addf %159, %177 : vector<16x32xf32>
    %179 = arith.addf %127, %178 : vector<16x32xf32>
    %c0_70 = arith.constant 0 : index
    %c0_71 = arith.constant 0 : index
    %c0_72 = arith.constant 0 : index
    %180 = vector.load %arg14[%c0_70, %c0_71, %c0_72] : memref<1x1x32xf32, #tpu.memory_space<vmem>>, vector<1x1x32xf32>
    %181 = vector.shape_cast %180 : vector<1x1x32xf32> to vector<1x32xf32>
    %182 = vector.broadcast %181 : vector<1x32xf32> to vector<16x32xf32>
    %183 = arith.addf %179, %182 : vector<16x32xf32>
    %c0_73 = arith.constant 0 : index
    %c0_74 = arith.constant 0 : index
    %184 = vector.load %arg18[%c0_73, %c0_74] : memref<16x32xf32, #tpu.memory_space<vmem>>, vector<16x32xf32>
    tpu.vector_store %arg18[%c0_73, %c0_74], %183 {strides = array<i32>} : memref<16x32xf32, #tpu.memory_space<vmem>>, vector<16x32xf32>,
    %c2_i32 = arith.constant 2 : i32
    %185 = arith.cmpi eq, %arg0, %c2_i32 : i32
    %186 = arith.extui %185 : i1 to i32
    %c0_i32_75 = arith.constant 0 : i32
    %187 = arith.cmpi ne, %186, %c0_i32_75 : i32
    scf.if %187 {
      %c0_76 = arith.constant 0 : index
      %c0_77 = arith.constant 0 : index
      %188 = vector.load %arg15[%c0_76, %c0_77] : memref<1x32xf32, #tpu.memory_space<vmem>>, vector<1x32xf32>
      %c0_78 = arith.constant 0 : index
      %c0_79 = arith.constant 0 : index
      %189 = vector.load %arg16[%c0_78, %c0_79] : memref<1x32xf32, #tpu.memory_space<vmem>>, vector<1x32xf32>
      %cst_80 = arith.constant dense<0.000000e+00> : vector<16xf32>
      %190 = vector.multi_reduction <add>, %183, %cst_80 [1] : vector<16x32xf32> to vector<16xf32>
      %191 = vector.shape_cast %190 : vector<16xf32> to vector<16x1xf32>
      %cst_81 = arith.constant 3.200000e+01 : f32
      %192 = vector.broadcast %cst_81 : f32 to vector<16x1xf32>
      %193 = arith.divf %191, %192 : vector<16x1xf32>
      %194 = vector.broadcast %193 : vector<16x1xf32> to vector<16x32xf32>
      %195 = arith.subf %183, %194 : vector<16x32xf32>
      %196 = arith.mulf %195, %195 : vector<16x32xf32>
      %cst_82 = arith.constant dense<0.000000e+00> : vector<16xf32>
      %197 = vector.multi_reduction <add>, %196, %cst_82 [1] : vector<16x32xf32> to vector<16xf32>
      %198 = vector.shape_cast %197 : vector<16xf32> to vector<16x1xf32>
      %cst_83 = arith.constant 3.200000e+01 : f32
      %199 = vector.broadcast %cst_83 : f32 to vector<16x1xf32>
      %200 = arith.divf %198, %199 : vector<16x1xf32>
      %cst_84 = arith.constant 9.99999974E-6 : f32
      %201 = vector.broadcast %cst_84 : f32 to vector<16x1xf32>
      %202 = arith.addf %200, %201 : vector<16x1xf32>
      %203 = math.rsqrt %202 : vector<16x1xf32>
      %204 = vector.broadcast %203 : vector<16x1xf32> to vector<16x32xf32>
      %205 = arith.mulf %195, %204 : vector<16x32xf32>
      %206 = vector.broadcast %188 : vector<1x32xf32> to vector<16x32xf32>
      %207 = arith.mulf %205, %206 : vector<16x32xf32>
      %208 = vector.broadcast %189 : vector<1x32xf32> to vector<16x32xf32>
      %209 = arith.addf %207, %208 : vector<16x32xf32>
      %210 = vector.shape_cast %209 : vector<16x32xf32> to vector<2x8x32xf32>
      %211 = arith.truncf %210 : vector<2x8x32xf32> to vector<2x8x32xbf16>
      %c0_85 = arith.constant 0 : index
      %c0_86 = arith.constant 0 : index
      %c0_87 = arith.constant 0 : index
      %212 = vector.load %arg17[%c0_85, %c0_86, %c0_87] : memref<2x8x32xbf16, #tpu.memory_space<vmem>>, vector<2x8x32xbf16>
      tpu.vector_store %arg17[%c0_85, %c0_86, %c0_87], %211 {strides = array<i32>} : memref<2x8x32xbf16, #tpu.memory_space<vmem>>, vector<2x8x32xbf16>,
    } else {
    }
    return
  }
  func.func @transform_0(%arg0: i32) -> (i32, i32, i32) {
    %c0_i32 = arith.constant 0 : i32
    %c0_i32_0 = arith.constant 0 : i32
    %c0_i32_1 = arith.constant 0 : i32
    %c0_i32_2 = arith.constant 0 : i32
    return %c0_i32, %c0_i32_0, %c0_i32_1 : i32, i32, i32
  }
  func.func @transform_1(%arg0: i32) -> (i32, i32, i32) {
    %c0_i32 = arith.constant 0 : i32
    %c0_i32_0 = arith.constant 0 : i32
    %c0_i32_1 = arith.constant 0 : i32
    return %arg0, %c0_i32, %c0_i32_0 : i32, i32, i32
  }
  func.func @transform_2(%arg0: i32) -> (i32, i32, i32) {
    %c0_i32 = arith.constant 0 : i32
    %c0_i32_0 = arith.constant 0 : i32
    %c0_i32_1 = arith.constant 0 : i32
    return %arg0, %c0_i32, %c0_i32_0 : i32, i32, i32
  }
  func.func @transform_3(%arg0: i32) -> (i32, i32, i32) {
    %c0_i32 = arith.constant 0 : i32
    %c0_i32_0 = arith.constant 0 : i32
    %c0_i32_1 = arith.constant 0 : i32
    return %arg0, %c0_i32, %c0_i32_0 : i32, i32, i32
  }
  func.func @transform_4(%arg0: i32) -> (i32, i32, i32) {
    %c0_i32 = arith.constant 0 : i32
    %c0_i32_0 = arith.constant 0 : i32
    %c0_i32_1 = arith.constant 0 : i32
    return %arg0, %c0_i32, %c0_i32_0 : i32, i32, i32
  }
  func.func @transform_5(%arg0: i32) -> (i32, i32, i32) {
    %c0_i32 = arith.constant 0 : i32
    %c0_i32_0 = arith.constant 0 : i32
    %c0_i32_1 = arith.constant 0 : i32
    return %arg0, %c0_i32, %c0_i32_0 : i32, i32, i32
  }
  func.func @transform_6(%arg0: i32) -> (i32, i32, i32) {
    %c0_i32 = arith.constant 0 : i32
    %c0_i32_0 = arith.constant 0 : i32
    %c0_i32_1 = arith.constant 0 : i32
    return %arg0, %c0_i32, %c0_i32_0 : i32, i32, i32
  }
  func.func @transform_7(%arg0: i32) -> (i32, i32, i32) {
    %c0_i32 = arith.constant 0 : i32
    %c0_i32_0 = arith.constant 0 : i32
    %c0_i32_1 = arith.constant 0 : i32
    return %arg0, %c0_i32, %c0_i32_0 : i32, i32, i32
  }
  func.func @transform_8(%arg0: i32) -> (i32, i32, i32) {
    %c0_i32 = arith.constant 0 : i32
    %c0_i32_0 = arith.constant 0 : i32
    %c0_i32_1 = arith.constant 0 : i32
    return %arg0, %c0_i32, %c0_i32_0 : i32, i32, i32
  }
  func.func @transform_9(%arg0: i32) -> (i32, i32, i32) {
    %c0_i32 = arith.constant 0 : i32
    %c0_i32_0 = arith.constant 0 : i32
    %c0_i32_1 = arith.constant 0 : i32
    return %arg0, %c0_i32, %c0_i32_0 : i32, i32, i32
  }
  func.func @transform_10(%arg0: i32) -> (i32, i32, i32) {
    %c0_i32 = arith.constant 0 : i32
    %c0_i32_0 = arith.constant 0 : i32
    %c0_i32_1 = arith.constant 0 : i32
    return %arg0, %c0_i32, %c0_i32_0 : i32, i32, i32
  }
  func.func @transform_11(%arg0: i32) -> (i32, i32, i32) {
    %c0_i32 = arith.constant 0 : i32
    %c0_i32_0 = arith.constant 0 : i32
    %c0_i32_1 = arith.constant 0 : i32
    return %arg0, %c0_i32, %c0_i32_0 : i32, i32, i32
  }
  func.func @transform_12(%arg0: i32) -> (i32, i32, i32) {
    %c0_i32 = arith.constant 0 : i32
    %c0_i32_0 = arith.constant 0 : i32
    %c0_i32_1 = arith.constant 0 : i32
    return %arg0, %c0_i32, %c0_i32_0 : i32, i32, i32
  }
  func.func @transform_13(%arg0: i32) -> (i32, i32, i32) {
    %c0_i32 = arith.constant 0 : i32
    %c0_i32_0 = arith.constant 0 : i32
    %c0_i32_1 = arith.constant 0 : i32
    return %arg0, %c0_i32, %c0_i32_0 : i32, i32, i32
  }
  func.func @transform_14(%arg0: i32) -> (i32, i32) {
    %c0_i32 = arith.constant 0 : i32
    %c0_i32_0 = arith.constant 0 : i32
    %c0_i32_1 = arith.constant 0 : i32
    return %c0_i32, %c0_i32_0 : i32, i32
  }
  func.func @transform_15(%arg0: i32) -> (i32, i32) {
    %c0_i32 = arith.constant 0 : i32
    %c0_i32_0 = arith.constant 0 : i32
    %c0_i32_1 = arith.constant 0 : i32
    return %c0_i32, %c0_i32_0 : i32, i32
  }
  func.func @transform_16(%arg0: i32) -> (i32, i32, i32) {
    %c0_i32 = arith.constant 0 : i32
    %c0_i32_0 = arith.constant 0 : i32
    %c0_i32_1 = arith.constant 0 : i32
    %c0_i32_2 = arith.constant 0 : i32
    return %c0_i32, %c0_i32_0, %c0_i32_1 : i32, i32, i32
  }
}

</mosaic_0001>

<llo_original>
// kernel: tpu_custom_call.1
$region0: #{tpu_custom_call.1}
  #allocation0 [shape = 'u32[]', space=smem, size = 0x4, offset = 0x4, fixed_abs, tag = 'smem constant byte address 0x4 - core index']
  #allocation1 [shape = 'u32[144,128]{1,0:T(1,128)}', space=vmem, size = 0x12000, scoped, tag = 'internal scratch']
  #allocation2 [shape = 'f32[16,32]{1,0:T(8,128)}', space=vmem, size = 0x2000, scoped, tag = 'scratch operand']
  %s0 = inlined_call_operand.hbm [shape: bf16[2,8,32], index: 0, kind: input, shape index: {}]
  %s1 = inlined_call_operand.hbm [shape: bf16[3,32,32], index: 1, kind: input, shape index: {}]
  %s2 = inlined_call_operand.hbm [shape: bf16[3,32,32], index: 2, kind: input, shape index: {}]
  %s3 = inlined_call_operand.hbm [shape: bf16[3,32,32], index: 3, kind: input, shape index: {}]
  %s4 = inlined_call_operand.hbm [shape: bf16[3,32,32], index: 4, kind: input, shape index: {}]
  %s5 = inlined_call_operand.hbm [shape: f32[3,1,32], index: 5, kind: input, shape index: {}]
  %s6 = inlined_call_operand.hbm [shape: f32[3,1,32], index: 6, kind: input, shape index: {}]
  %s7 = inlined_call_operand.hbm [shape: f32[3,1,32], index: 7, kind: input, shape index: {}]
  %s8 = inlined_call_operand.hbm [shape: f32[3,1,32], index: 8, kind: input, shape index: {}]
  %s9 = inlined_call_operand.hbm [shape: f32[3,1,32], index: 9, kind: input, shape index: {}]
  %s10 = inlined_call_operand.hbm [shape: bf16[3,32,128], index: 10, kind: input, shape index: {}]
  %s11 = inlined_call_operand.hbm [shape: f32[3,1,128], index: 11, kind: input, shape index: {}]
  %s12 = inlined_call_operand.hbm [shape: bf16[3,128,32], index: 12, kind: input, shape index: {}]
  %s13 = inlined_call_operand.hbm [shape: f32[3,1,32], index: 13, kind: input, shape index: {}]
  %s14 = inlined_call_operand.hbm [shape: f32[1,32], index: 14, kind: input, shape index: {}]
  %s15 = inlined_call_operand.hbm [shape: f32[1,32], index: 15, kind: input, shape index: {}]
  %s16 = inlined_call_operand.hbm [shape: bf16[2,8,32], index: 16, kind: output, shape index: {}]
  %s17 = sld [smem:[#allocation0]]
  $region169: #{tpu_custom_call.1} parent=0
    _
  %s19 = ssub.s32 1, %s17
  %s20 = scalar_select 0, %s19, %s17
  $region1: #{tpu_custom_call.1} parent=0
    #allocation3 [shape = 'u8[4096]{0}', space=vmem, size = 0x1000, scoped, tag = 'input window, operand 0, single buffered']
    #allocation4 [shape = 's32[2]{0}', space=sflag, size = 0x8, scoped, tag = 'scoped memory for tpu_custom_call.1']
    #allocation5 [shape = 's32[2]{0}', space=sflag, size = 0x8, scoped, tag = 'scoped memory for tpu_custom_call.1']
    #allocation6 [shape = 'u8[16384]{0}', space=vmem, size = 0x4000, scoped, tag = 'input window, operand 1']
    #allocation7 [shape = 's32[2]{0}', space=sflag, size = 0x8, scoped, tag = 'scoped memory for tpu_custom_call.1']
    #allocation8 [shape = 'u8[16384]{0}', space=vmem, size = 0x4000, scoped, tag = 'input window, operand 2']
    #allocation9 [shape = 'u8[16384]{0}', space=vmem, size = 0x4000, scoped, tag = 'input window, operand 3']
    #allocation10 [shape = 's32[2]{0}', space=sflag, size = 0x8, scoped, tag = 'scoped memory for tpu_custom_call.1']
    #allocation11 [shape = 'u8[16384]{0}', space=vmem, size = 0x4000, scoped, tag = 'input window, operand 4']
    #allocation12 [shape = 'u8[1024]{0}', space=vmem, size = 0x400, scoped, tag = 'input window, operand 5']
    #allocation13 [shape = 's32[2]{0}', space=sflag, size = 0x8, scoped, tag = 'scoped memory for tpu_custom_call.1']
    #allocation14 [shape = 'u8[1024]{0}', space=vmem, size = 0x400, scoped, tag = 'input window, operand 6']
    #allocation15 [shape = 'u8[1024]{0}', space=vmem, size = 0x400, scoped, tag = 'input window, operand 7']
    #allocation16 [shape = 's32[2]{0}', space=sflag, size = 0x8, scoped, tag = 'scoped memory for tpu_custom_call.1']
    #allocation17 [shape = 'u8[1024]{0}', space=vmem, size = 0x400, scoped, tag = 'input window, operand 8']
    #allocation18 [shape = 'u8[1024]{0}', space=vmem, size = 0x400, scoped, tag = 'input window, operand 9']
    #allocation19 [shape = 's32[2]{0}', space=sflag, size = 0x8, scoped, tag = 'scoped memory for tpu_custom_call.1']
    #allocation20 [shape = 'u8[16384]{0}', space=vmem, size = 0x4000, scoped, tag = 'input window, operand 10']
    #allocation21 [shape = 'u8[1024]{0}', space=vmem, size = 0x400, scoped, tag = 'input window, operand 11']
    #allocation22 [shape = 's32[2]{0}', space=sflag, size = 0x8, scoped, tag = 'scoped memory for tpu_custom_call.1']
    #allocation23 [shape = 'u8[65536]{0}', space=vmem, size = 0x10000, scoped, tag = 'input window, operand 12']
    #allocation24 [shape = 'u8[1024]{0}', space=vmem, size = 0x400, scoped, tag = 'input window, operand 13']
    #allocation25 [shape = 's32[2]{0}', space=sflag, size = 0x8, scoped, tag = 'scoped memory for tpu_custom_call.1']
    #allocation26 [shape = 'u8[512]{0}', space=vmem, size = 0x400, scoped, tag = 'input window, operand 14, single buffered']
    #allocation27 [shape = 'u8[512]{0}', space=vmem, size = 0x400, scoped, tag = 'input window, operand 15, single buffered']
    #allocation28 [shape = 's32[1]{0}', space=sflag, size = 0x4, scoped, tag = 'scoped memory for tpu_custom_call.1']
    #allocation29 [shape = 'u8[4096]{0}', space=vmem, size = 0x1000, scoped, tag = 'output window, operand 0, single buffered']
    %21 = vsyncpa [#allocation4], 0
    %22 = vsyncpa [#allocation7], 0
    %s23 = scalar_lea.sflag [#allocation7], 1
    %24 = vsyncpa %s23, 0
    %25 = vsyncpa [#allocation10], 0
    %s26 = scalar_lea.sflag [#allocation10], 1
    %27 = vsyncpa %s26, 0
    %28 = vsyncpa [#allocation13], 0
    %s29 = scalar_lea.sflag [#allocation13], 1
    %30 = vsyncpa %s29, 0
    %31 = vsyncpa [#allocation16], 0
    %s32 = scalar_lea.sflag [#allocation16], 1
    %33 = vsyncpa %s32, 0
    %34 = vsyncpa [#allocation19], 0
    %s35 = scalar_lea.sflag [#allocation19], 1
    %36 = vsyncpa %s35, 0
    %37 = vsyncpa [#allocation22], 0
    %s38 = scalar_lea.sflag [#allocation22], 1
    %39 = vsyncpa %s38, 0
    %40 = vsyncpa [#allocation25], 0
    %s41 = scalar_lea.sflag [#allocation25], 1
    %42 = vsyncpa %s41, 0
    %43 = vsyncpa [#allocation28], 0
    %44 = vsyncpa [#allocation5], 0
    loop: start=0, step=1, limit=5
    $region2: #{tpu_custom_call.1} parent=1 // loop_pre_header
      _
    $region3: #{tpu_custom_call.1} parent=1 // loop_header
      %s46 = sphi 0, %s50
      %p47 = scmp.ge.s32.totalorder %s46, 5
      %s54 = sphi 0, %s54
      %s56 = sphi 0, %s54
      %s57 = sphi 0, %s56
      %s71 = sphi 0, %s57
      %s77 = sphi 0, %s79
      %s80 = sphi 0, %s77
      %s81 = sphi 0, %s80
      %s97 = sphi 0, %s81
      %s103 = sphi 0, %s105
      %s106 = sphi 0, %s103
      %s107 = sphi 0, %s106
      %s123 = sphi 0, %s107
      %s129 = sphi 0, %s131
      %s132 = sphi 0, %s129
      %s133 = sphi 0, %s132
      %s149 = sphi 0, %s133
      %s155 = sphi 0, %s157
      %s158 = sphi 0, %s155
      %s159 = sphi 0, %s158
      %s175 = sphi 0, %s159
      %s181 = sphi 0, %s183
      %s184 = sphi 0, %s181
      %s185 = sphi 0, %s184
      %s201 = sphi 0, %s185
      %s207 = sphi 0, %s209
      %s210 = sphi 0, %s207
      %s211 = sphi 0, %s210
      %s227 = sphi 0, %s211
      %s233 = sphi 0, %s235
      %s236 = sphi 0, %s233
      %s237 = sphi 0, %s236
      %s253 = sphi 0, %s237
      %s259 = sphi 0, %s261
      %s262 = sphi 0, %s259
      %s263 = sphi 0, %s262
      %s279 = sphi 0, %s263
      %s285 = sphi 0, %s287
      %s288 = sphi 0, %s285
      %s289 = sphi 0, %s288
      %s305 = sphi 0, %s289
      %s311 = sphi 0, %s313
      %s314 = sphi 0, %s311
      %s315 = sphi 0, %s314
      %s331 = sphi 0, %s315
      %s337 = sphi 0, %s339
      %s340 = sphi 0, %s337
      %s341 = sphi 0, %s340
      %s357 = sphi 0, %s341
      %s363 = sphi 0, %s365
      %s366 = sphi 0, %s363
      %s367 = sphi 0, %s366
      %s383 = sphi 0, %s367
      %s389 = sphi 0, %s391
      %s392 = sphi 0, %s389
      %s393 = sphi 0, %s392
      %s409 = sphi 0, %s393
      %s413 = sphi 0, %s413
      %s415 = sphi 0, %s413
      %s416 = sphi 0, %s415
      %s430 = sphi 0, %s416
      %s434 = sphi 0, %s434
      %s436 = sphi 0, %s434
      %s437 = sphi 0, %s436
      %s451 = sphi 0, %s437
      %s455 = sphi 0, %s455
      %s457 = sphi 0, %s455
      %s458 = sphi 0, %s457
      %s472 = sphi 0, %s458
    $region4: #{tpu_custom_call.1} parent=1 // loop_header_branch
      %49 = sbr.rel (%p47) target = $region8
    $region5: #{tpu_custom_call.1} parent=1 // loop_body
      %s51 = ssub.s32 %s46, 1
      %s52 = ssub.s32 %s46, 2
      %s53 = sadd.s32 %s46, 1
      %s55 = sadd.s32 %s54, 1
      %p58 = scmp.eq.s32.totalorder %s46, 2
      %p59 = scmp.ne.s32.totalorder %s54, %s56
      %p60 = scmp.eq.s32.totalorder %s46, 0
      %p61 = por %p59, %p60
      %p62 = scmp.ne.s32.totalorder %s54, %s56
      %p63 = scmp.eq.s32.totalorder %s51, 2
      %p64 = por %p62, %p63
      %p65 = scmp.ne.s32.totalorder %s56, %s57
      %p66 = scmp.eq.s32.totalorder %s51, 0
      %p67 = por %p65, %p66
      %p68 = scmp.ne.s32.totalorder %s56, %s57
      %p69 = scmp.eq.s32.totalorder %s52, 2
      %p70 = por %p68, %p69
      %p72 = scmp.ne.s32.totalorder %s57, %s71
      %p73 = scmp.eq.s32.totalorder %s52, 0
      %p74 = por %p72, %p73
      %s75 = ssub.s32 %s46, %s53
      %p76 = scmp.eq.s32.totalorder %s75, 0
      %s78 = sadd.s32 %s77, 1
      %s79 = scalar_select %p76, %s77, %s78
      %p82 = pneg %p76
      %p83 = scmp.eq.s32.totalorder %s46, 2
      %p84 = por %p82, %p83
      %p85 = scmp.ne.s32.totalorder %s77, %s80
      %p86 = scmp.eq.s32.totalorder %s46, 0
      %p87 = por %p85, %p86
      %p88 = scmp.ne.s32.totalorder %s77, %s80
      %p89 = scmp.eq.s32.totalorder %s51, 2
      %p90 = por %p88, %p89
      %p91 = scmp.ne.s32.totalorder %s80, %s81
      %p92 = scmp.eq.s32.totalorder %s51, 0
      %p93 = por %p91, %p92
      %p94 = scmp.ne.s32.totalorder %s80, %s81
      %p95 = scmp.eq.s32.totalorder %s52, 2
      %p96 = por %p94, %p95
      %p98 = scmp.ne.s32.totalorder %s81, %s97
      %p99 = scmp.eq.s32.totalorder %s52, 0
      %p100 = por %p98, %p99
      %s101 = ssub.s32 %s46, %s53
      %p102 = scmp.eq.s32.totalorder %s101, 0
      %s104 = sadd.s32 %s103, 1
      %s105 = scalar_select %p102, %s103, %s104
      %p108 = pneg %p102
      %p109 = scmp.eq.s32.totalorder %s46, 2
      %p110 = por %p108, %p109
      %p111 = scmp.ne.s32.totalorder %s103, %s106
      %p112 = scmp.eq.s32.totalorder %s46, 0
      %p113 = por %p111, %p112
      %p114 = scmp.ne.s32.totalorder %s103, %s106
      %p115 = scmp.eq.s32.totalorder %s51, 2
      %p116 = por %p114, %p115
      %p117 = scmp.ne.s32.totalorder %s106, %s107
      %p118 = scmp.eq.s32.totalorder %s51, 0
      %p119 = por %p117, %p118
      %p120 = scmp.ne.s32.totalorder %s106, %s107
      %p121 = scmp.eq.s32.totalorder %s52, 2
      %p122 = por %p120, %p121
      %p124 = scmp.ne.s32.totalorder %s107, %s123
      %p125 = scmp.eq.s32.totalorder %s52, 0
      %p126 = por %p124, %p125
      %s127 = ssub.s32 %s46, %s53
      %p128 = scmp.eq.s32.totalorder %s127, 0
      %s130 = sadd.s32 %s129, 1
      %s131 = scalar_select %p128, %s129, %s130
      %p134 = pneg %p128
      %p135 = scmp.eq.s32.totalorder %s46, 2
      %p136 = por %p134, %p135
      %p137 = scmp.ne.s32.totalorder %s129, %s132
      %p138 = scmp.eq.s32.totalorder %s46, 0
      %p139 = por %p137, %p138
      %p140 = scmp.ne.s32.totalorder %s129, %s132
      %p141 = scmp.eq.s32.totalorder %s51, 2
      %p142 = por %p140, %p141
      %p143 = scmp.ne.s32.totalorder %s132, %s133
      %p144 = scmp.eq.s32.totalorder %s51, 0
      %p145 = por %p143, %p144
      %p146 = scmp.ne.s32.totalorder %s132, %s133
      %p147 = scmp.eq.s32.totalorder %s52, 2
      %p148 = por %p146, %p147
      %p150 = scmp.ne.s32.totalorder %s133, %s149
      %p151 = scmp.eq.s32.totalorder %s52, 0
      %p152 = por %p150, %p151
      %s153 = ssub.s32 %s46, %s53
      %p154 = scmp.eq.s32.totalorder %s153, 0
      %s156 = sadd.s32 %s155, 1
      %s157 = scalar_select %p154, %s155, %s156
      %p160 = pneg %p154
      %p161 = scmp.eq.s32.totalorder %s46, 2
      %p162 = por %p160, %p161
      %p163 = scmp.ne.s32.totalorder %s155, %s158
      %p164 = scmp.eq.s32.totalorder %s46, 0
      %p165 = por %p163, %p164
      %p166 = scmp.ne.s32.totalorder %s155, %s158
      %p167 = scmp.eq.s32.totalorder %s51, 2
      %p168 = por %p166, %p167
      %p169 = scmp.ne.s32.totalorder %s158, %s159
      %p170 = scmp.eq.s32.totalorder %s51, 0
      %p171 = por %p169, %p170
      %p172 = scmp.ne.s32.totalorder %s158, %s159
      %p173 = scmp.eq.s32.totalorder %s52, 2
      %p174 = por %p172, %p173
      %p176 = scmp.ne.s32.totalorder %s159, %s175
      %p177 = scmp.eq.s32.totalorder %s52, 0
      %p178 = por %p176, %p177
      %s179 = ssub.s32 %s46, %s53
      %p180 = scmp.eq.s32.totalorder %s179, 0
      %s182 = sadd.s32 %s181, 1
      %s183 = scalar_select %p180, %s181, %s182
      %p186 = pneg %p180
      %p187 = scmp.eq.s32.totalorder %s46, 2
      %p188 = por %p186, %p187
      %p189 = scmp.ne.s32.totalorder %s181, %s184
      %p190 = scmp.eq.s32.totalorder %s46, 0
      %p191 = por %p189, %p190
      %p192 = scmp.ne.s32.totalorder %s181, %s184
      %p193 = scmp.eq.s32.totalorder %s51, 2
      %p194 = por %p192, %p193
      %p195 = scmp.ne.s32.totalorder %s184, %s185
      %p196 = scmp.eq.s32.totalorder %s51, 0
      %p197 = por %p195, %p196
      %p198 = scmp.ne.s32.totalorder %s184, %s185
      %p199 = scmp.eq.s32.totalorder %s52, 2
      %p200 = por %p198, %p199
      %p202 = scmp.ne.s32.totalorder %s185, %s201
      %p203 = scmp.eq.s32.totalorder %s52, 0
      %p204 = por %p202, %p203
      %s205 = ssub.s32 %s46, %s53
      %p206 = scmp.eq.s32.totalorder %s205, 0
      %s208 = sadd.s32 %s207, 1
      %s209 = scalar_select %p206, %s207, %s208
      %p212 = pneg %p206
      %p213 = scmp.eq.s32.totalorder %s46, 2
      %p214 = por %p212, %p213
      %p215 = scmp.ne.s32.totalorder %s207, %s210
      %p216 = scmp.eq.s32.totalorder %s46, 0
      %p217 = por %p215, %p216
      %p218 = scmp.ne.s32.totalorder %s207, %s210
      %p219 = scmp.eq.s32.totalorder %s51, 2
      %p220 = por %p218, %p219
      %p221 = scmp.ne.s32.totalorder %s210, %s211
      %p222 = scmp.eq.s32.totalorder %s51, 0
      %p223 = por %p221, %p222
      %p224 = scmp.ne.s32.totalorder %s210, %s211
      %p225 = scmp.eq.s32.totalorder %s52, 2
      %p226 = por %p224, %p225
      %p228 = scmp.ne.s32.totalorder %s211, %s227
      %p229 = scmp.eq.s32.totalorder %s52, 0
      %p230 = por %p228, %p229
      %s231 = ssub.s32 %s46, %s53
      %p232 = scmp.eq.s32.totalorder %s231, 0
      %s234 = sadd.s32 %s233, 1
      %s235 = scalar_select %p232, %s233, %s234
      %p238 = pneg %p232
      %p239 = scmp.eq.s32.totalorder %s46, 2
      %p240 = por %p238, %p239
      %p241 = scmp.ne.s32.totalorder %s233, %s236
      %p242 = scmp.eq.s32.totalorder %s46, 0
      %p243 = por %p241, %p242
      %p244 = scmp.ne.s32.totalorder %s233, %s236
      %p245 = scmp.eq.s32.totalorder %s51, 2
      %p246 = por %p244, %p245
      %p247 = scmp.ne.s32.totalorder %s236, %s237
      %p248 = scmp.eq.s32.totalorder %s51, 0
      %p249 = por %p247, %p248
      %p250 = scmp.ne.s32.totalorder %s236, %s237
      %p251 = scmp.eq.s32.totalorder %s52, 2
      %p252 = por %p250, %p251
      %p254 = scmp.ne.s32.totalorder %s237, %s253
      %p255 = scmp.eq.s32.totalorder %s52, 0
      %p256 = por %p254, %p255
      %s257 = ssub.s32 %s46, %s53
      %p258 = scmp.eq.s32.totalorder %s257, 0
      %s260 = sadd.s32 %s259, 1
      %s261 = scalar_select %p258, %s259, %s260
      %p264 = pneg %p258
      %p265 = scmp.eq.s32.totalorder %s46, 2
      %p266 = por %p264, %p265
      %p267 = scmp.ne.s32.totalorder %s259, %s262
      %p268 = scmp.eq.s32.totalorder %s46, 0
      %p269 = por %p267, %p268
      %p270 = scmp.ne.s32.totalorder %s259, %s262
      %p271 = scmp.eq.s32.totalorder %s51, 2
      %p272 = por %p270, %p271
      %p273 = scmp.ne.s32.totalorder %s262, %s263
      %p274 = scmp.eq.s32.totalorder %s51, 0
      %p275 = por %p273, %p274
      %p276 = scmp.ne.s32.totalorder %s262, %s263
      %p277 = scmp.eq.s32.totalorder %s52, 2
      %p278 = por %p276, %p277
      %p280 = scmp.ne.s32.totalorder %s263, %s279
      %p281 = scmp.eq.s32.totalorder %s52, 0
      %p282 = por %p280, %p281
      %s283 = ssub.s32 %s46, %s53
      %p284 = scmp.eq.s32.totalorder %s283, 0
      %s286 = sadd.s32 %s285, 1
      %s287 = scalar_select %p284, %s285, %s286
      %p290 = pneg %p284
      %p291 = scmp.eq.s32.totalorder %s46, 2
      %p292 = por %p290, %p291
      %p293 = scmp.ne.s32.totalorder %s285, %s288
      %p294 = scmp.eq.s32.totalorder %s46, 0
      %p295 = por %p293, %p294
      %p296 = scmp.ne.s32.totalorder %s285, %s288
      %p297 = scmp.eq.s32.totalorder %s51, 2
      %p298 = por %p296, %p297
      %p299 = scmp.ne.s32.totalorder %s288, %s289
      %p300 = scmp.eq.s32.totalorder %s51, 0
      %p301 = por %p299, %p300
      %p302 = scmp.ne.s32.totalorder %s288, %s289
      %p303 = scmp.eq.s32.totalorder %s52, 2
      %p304 = por %p302, %p303
      %p306 = scmp.ne.s32.totalorder %s289, %s305
      %p307 = scmp.eq.s32.totalorder %s52, 0
      %p308 = por %p306, %p307
      %s309 = ssub.s32 %s46, %s53
      %p310 = scmp.eq.s32.totalorder %s309, 0
      %s312 = sadd.s32 %s311, 1
      %s313 = scalar_select %p310, %s311, %s312
      %p316 = pneg %p310
      %p317 = scmp.eq.s32.totalorder %s46, 2
      %p318 = por %p316, %p317
      %p319 = scmp.ne.s32.totalorder %s311, %s314
      %p320 = scmp.eq.s32.totalorder %s46, 0
      %p321 = por %p319, %p320
      %p322 = scmp.ne.s32.totalorder %s311, %s314
      %p323 = scmp.eq.s32.totalorder %s51, 2
      %p324 = por %p322, %p323
      %p325 = scmp.ne.s32.totalorder %s314, %s315
      %p326 = scmp.eq.s32.totalorder %s51, 0
      %p327 = por %p325, %p326
      %p328 = scmp.ne.s32.totalorder %s314, %s315
      %p329 = scmp.eq.s32.totalorder %s52, 2
      %p330 = por %p328, %p329
      %p332 = scmp.ne.s32.totalorder %s315, %s331
      %p333 = scmp.eq.s32.totalorder %s52, 0
      %p334 = por %p332, %p333
      %s335 = ssub.s32 %s46, %s53
      %p336 = scmp.eq.s32.totalorder %s335, 0
      %s338 = sadd.s32 %s337, 1
      %s339 = scalar_select %p336, %s337, %s338
      %p342 = pneg %p336
      %p343 = scmp.eq.s32.totalorder %s46, 2
      %p344 = por %p342, %p343
      %p345 = scmp.ne.s32.totalorder %s337, %s340
      %p346 = scmp.eq.s32.totalorder %s46, 0
      %p347 = por %p345, %p346
      %p348 = scmp.ne.s32.totalorder %s337, %s340
      %p349 = scmp.eq.s32.totalorder %s51, 2
      %p350 = por %p348, %p349
      %p351 = scmp.ne.s32.totalorder %s340, %s341
      %p352 = scmp.eq.s32.totalorder %s51, 0
      %p353 = por %p351, %p352
      %p354 = scmp.ne.s32.totalorder %s340, %s341
      %p355 = scmp.eq.s32.totalorder %s52, 2
      %p356 = por %p354, %p355
      %p358 = scmp.ne.s32.totalorder %s341, %s357
      %p359 = scmp.eq.s32.totalorder %s52, 0
      %p360 = por %p358, %p359
      %s361 = ssub.s32 %s46, %s53
      %p362 = scmp.eq.s32.totalorder %s361, 0
      %s364 = sadd.s32 %s363, 1
      %s365 = scalar_select %p362, %s363, %s364
      %p368 = pneg %p362
      %p369 = scmp.eq.s32.totalorder %s46, 2
      %p370 = por %p368, %p369
      %p371 = scmp.ne.s32.totalorder %s363, %s366
      %p372 = scmp.eq.s32.totalorder %s46, 0
      %p373 = por %p371, %p372
      %p374 = scmp.ne.s32.totalorder %s363, %s366
      %p375 = scmp.eq.s32.totalorder %s51, 2
      %p376 = por %p374, %p375
      %p377 = scmp.ne.s32.totalorder %s366, %s367
      %p378 = scmp.eq.s32.totalorder %s51, 0
      %p379 = por %p377, %p378
      %p380 = scmp.ne.s32.totalorder %s366, %s367
      %p381 = scmp.eq.s32.totalorder %s52, 2
      %p382 = por %p380, %p381
      %p384 = scmp.ne.s32.totalorder %s367, %s383
      %p385 = scmp.eq.s32.totalorder %s52, 0
      %p386 = por %p384, %p385
      %s387 = ssub.s32 %s46, %s53
      %p388 = scmp.eq.s32.totalorder %s387, 0
      %s390 = sadd.s32 %s389, 1
      %s391 = scalar_select %p388, %s389, %s390
      %p394 = pneg %p388
      %p395 = scmp.eq.s32.totalorder %s46, 2
      %p396 = por %p394, %p395
      %p397 = scmp.ne.s32.totalorder %s389, %s392
      %p398 = scmp.eq.s32.totalorder %s46, 0
      %p399 = por %p397, %p398
      %p400 = scmp.ne.s32.totalorder %s389, %s392
      %p401 = scmp.eq.s32.totalorder %s51, 2
      %p402 = por %p400, %p401
      %p403 = scmp.ne.s32.totalorder %s392, %s393
      %p404 = scmp.eq.s32.totalorder %s51, 0
      %p405 = por %p403, %p404
      %p406 = scmp.ne.s32.totalorder %s392, %s393
      %p407 = scmp.eq.s32.totalorder %s52, 2
      %p408 = por %p406, %p407
      %p410 = scmp.ne.s32.totalorder %s393, %s409
      %p411 = scmp.eq.s32.totalorder %s52, 0
      %p412 = por %p410, %p411
      %s414 = sadd.s32 %s413, 1
      %p417 = scmp.eq.s32.totalorder %s46, 2
      %p418 = scmp.ne.s32.totalorder %s413, %s415
      %p419 = scmp.eq.s32.totalorder %s46, 0
      %p420 = por %p418, %p419
      %p421 = scmp.ne.s32.totalorder %s413, %s415
      %p422 = scmp.eq.s32.totalorder %s51, 2
      %p423 = por %p421, %p422
      %p424 = scmp.ne.s32.totalorder %s415, %s416
      %p425 = scmp.eq.s32.totalorder %s51, 0
      %p426 = por %p424, %p425
      %p427 = scmp.ne.s32.totalorder %s415, %s416
      %p428 = scmp.eq.s32.totalorder %s52, 2
      %p429 = por %p427, %p428
      %p431 = scmp.ne.s32.totalorder %s416, %s430
      %p432 = scmp.eq.s32.totalorder %s52, 0
      %p433 = por %p431, %p432
      %s435 = sadd.s32 %s434, 1
      %p438 = scmp.eq.s32.totalorder %s46, 2
      %p439 = scmp.ne.s32.totalorder %s434, %s436
      %p440 = scmp.eq.s32.totalorder %s46, 0
      %p441 = por %p439, %p440
      %p442 = scmp.ne.s32.totalorder %s434, %s436
      %p443 = scmp.eq.s32.totalorder %s51, 2
      %p444 = por %p442, %p443
      %p445 = scmp.ne.s32.totalorder %s436, %s437
      %p446 = scmp.eq.s32.totalorder %s51, 0
      %p447 = por %p445, %p446
      %p448 = scmp.ne.s32.totalorder %s436, %s437
      %p449 = scmp.eq.s32.totalorder %s52, 2
      %p450 = por %p448, %p449
      %p452 = scmp.ne.s32.totalorder %s437, %s451
      %p453 = scmp.eq.s32.totalorder %s52, 0
      %p454 = por %p452, %p453
      %s456 = sadd.s32 %s455, 1
      %p459 = scmp.eq.s32.totalorder %s46, 2
      %p460 = scmp.ne.s32.totalorder %s455, %s457
      %p461 = scmp.eq.s32.totalorder %s46, 0
      %p462 = por %p460, %p461
      %p463 = scmp.ne.s32.totalorder %s455, %s457
      %p464 = scmp.eq.s32.totalorder %s51, 2
      %p465 = por %p463, %p464
      %p466 = scmp.ne.s32.totalorder %s457, %s458
      %p467 = scmp.eq.s32.totalorder %s51, 0
      %p468 = por %p466, %p467
      %p469 = scmp.ne.s32.totalorder %s457, %s458
      %p470 = scmp.eq.s32.totalorder %s52, 2
      %p471 = por %p469, %p470
      %p473 = scmp.ne.s32.totalorder %s458, %s472
      %p474 = scmp.eq.s32.totalorder %s52, 0
      %p475 = por %p473, %p474
      %p476 = scmp.le.s32.totalorder 1, %s46
      %p477 = scmp.lt.s32.totalorder %s46, 4
      %p478 = pnand %p476, %p477
      %p479 = pneg %p478
      // Predicated region
      $region9: #{tpu_custom_call.1} parent=5 // pred_check
        _
      $region10: #{tpu_custom_call.1} parent=5 // pred_check_branch
        %481 = sbr.rel (%p478) target = $region12
      $region11: #{tpu_custom_call.1} parent=5 // pred_region
        %s482 = ssub.s32 %s46, 1
        // Predicated region
        $region13: #{tpu_custom_call.1} parent=11 // pred_check
          %p483 = pneg %p67
        $region14: #{tpu_custom_call.1} parent=11 // pred_check_branch
          %485 = sbr.rel (%p483) target = $region16
        $region15: #{tpu_custom_call.1} parent=11 // pred_region
          %s487 = ssub.s32 128, 128
          %488 = vsyncadd [#allocation4], %s487
          %s489 = sshll.u32 [#allocation3], 4
          %s490 = int_to_ptr.vmem [resolvable:$true] %s489
          %495 = dma.hbm_to_vmem [thread:$0]  %s0, 128, %s490, [#allocation4], 64, 64, 4
        $region16: #{tpu_custom_call.1} parent=11 // pred_fallthru
          _
        // Predicated region
        $region17: #{tpu_custom_call.1} parent=11 // pred_check
          %p496 = pneg %p426
        $region18: #{tpu_custom_call.1} parent=11 // pred_check_branch
          %498 = sbr.rel (%p496) target = $region20
        $region19: #{tpu_custom_call.1} parent=11 // pred_region
          %s500 = ssub.s32 16, 16
          %501 = vsyncadd [#allocation25], %s500
          %s503 = sshll.u32 [#allocation26], 4
          %s504 = int_to_ptr.vmem [resolvable:$true] %s503
          %506 = dma.hbm_to_vmem [thread:$0]  %s14, 16, %s504, [#allocation25]
        $region20: #{tpu_custom_call.1} parent=11 // pred_fallthru
          _
        // Predicated region
        $region21: #{tpu_custom_call.1} parent=11 // pred_check
          %p507 = pneg %p447
        $region22: #{tpu_custom_call.1} parent=11 // pred_check_branch
          %509 = sbr.rel (%p507) target = $region24
        $region23: #{tpu_custom_call.1} parent=11 // pred_region
          %s511 = ssub.s32 16, 16
          %512 = vsyncadd [#allocation28], %s511
          %s514 = sshll.u32 [#allocation27], 4
          %s515 = int_to_ptr.vmem [resolvable:$true] %s514
          %517 = dma.hbm_to_vmem [thread:$0]  %s15, 16, %s515, [#allocation28]
        $region24: #{tpu_custom_call.1} parent=11 // pred_fallthru
          _
      $region12: #{tpu_custom_call.1} parent=5 // pred_fallthru
        _
      %p518 = scmp.lt.s32.totalorder %s46, 3
      // Predicated region
      $region25: #{tpu_custom_call.1} parent=5 // pred_check
        %p519 = pneg %p518
      $region26: #{tpu_custom_call.1} parent=5 // pred_check_branch
        %521 = sbr.rel (%p519) target = $region28
      $region27: #{tpu_custom_call.1} parent=5 // pred_region
        // Predicated region
        $region29: #{tpu_custom_call.1} parent=27 // pred_check
          %p522 = pneg %p87
        $region30: #{tpu_custom_call.1} parent=27 // pred_check_branch
          %524 = sbr.rel (%p522) target = $region32
        $region31: #{tpu_custom_call.1} parent=27 // pred_region
          %s525 = sand.u32 %s46, 1
          %s526 = scalar_lea.sflag [#allocation7], %s525
          %s527 = sand.u32 %s77, 1
          %s528 = smul.addr %s527, 16
          %s529 = scalar_lea.vmem [#allocation6], %s528
          %s531 = ssub.s32 256, 256
          %532 = vsyncadd %s526, %s531
          %s533 = smul.addr %s46, 4
          %s534 = smul.addr %s533, 64
          %s535 = scalar_lea.hbm %s1, %s534
          %s536 = sshll.u32 %s529, 4
          %s537 = int_to_ptr.vmem [resolvable:$true] %s536
          %542 = dma.hbm_to_vmem [thread:$0]  %s535, 256, %s537, %s526, 64, 64, 4
        $region32: #{tpu_custom_call.1} parent=27 // pred_fallthru
          _
        // Predicated region
        $region33: #{tpu_custom_call.1} parent=27 // pred_check
          %p543 = pneg %p113
        $region34: #{tpu_custom_call.1} parent=27 // pred_check_branch
          %545 = sbr.rel (%p543) target = $region36
        $region35: #{tpu_custom_call.1} parent=27 // pred_region
          %s546 = sand.u32 %s46, 1
          %s547 = scalar_lea.sflag [#allocation7], %s546
          %s548 = sand.u32 %s103, 1
          %s549 = smul.addr %s548, 16
          %s550 = scalar_lea.vmem [#allocation8], %s549
          %s552 = ssub.s32 256, 256
          %553 = vsyncadd %s547, %s552
          %s554 = smul.addr %s46, 4
          %s555 = smul.addr %s554, 64
          %s556 = scalar_lea.hbm %s2, %s555
          %s557 = sshll.u32 %s550, 4
          %s558 = int_to_ptr.vmem [resolvable:$true] %s557
          %563 = dma.hbm_to_vmem [thread:$0]  %s556, 256, %s558, %s547, 64, 64, 4
        $region36: #{tpu_custom_call.1} parent=27 // pred_fallthru
          _
        // Predicated region
        $region37: #{tpu_custom_call.1} parent=27 // pred_check
          %p564 = pneg %p139
        $region38: #{tpu_custom_call.1} parent=27 // pred_check_branch
          %566 = sbr.rel (%p564) target = $region40
        $region39: #{tpu_custom_call.1} parent=27 // pred_region
          %s567 = sand.u32 %s46, 1
          %s568 = scalar_lea.sflag [#allocation10], %s567
          %s569 = sand.u32 %s129, 1
          %s570 = smul.addr %s569, 16
          %s571 = scalar_lea.vmem [#allocation9], %s570
          %s573 = ssub.s32 256, 256
          %574 = vsyncadd %s568, %s573
          %s575 = smul.addr %s46, 4
          %s576 = smul.addr %s575, 64
          %s577 = scalar_lea.hbm %s3, %s576
          %s578 = sshll.u32 %s571, 4
          %s579 = int_to_ptr.vmem [resolvable:$true] %s578
          %584 = dma.hbm_to_vmem [thread:$0]  %s577, 256, %s579, %s568, 64, 64, 4
        $region40: #{tpu_custom_call.1} parent=27 // pred_fallthru
          _
        // Predicated region
        $region41: #{tpu_custom_call.1} parent=27 // pred_check
          %p585 = pneg %p165
        $region42: #{tpu_custom_call.1} parent=27 // pred_check_branch
          %587 = sbr.rel (%p585) target = $region44
        $region43: #{tpu_custom_call.1} parent=27 // pred_region
          %s588 = sand.u32 %s46, 1
          %s589 = scalar_lea.sflag [#allocation10], %s588
          %s590 = sand.u32 %s155, 1
          %s591 = smul.addr %s590, 16
          %s592 = scalar_lea.vmem [#allocation11], %s591
          %s594 = ssub.s32 256, 256
          %595 = vsyncadd %s589, %s594
          %s596 = smul.addr %s46, 4
          %s597 = smul.addr %s596, 64
          %s598 = scalar_lea.hbm %s4, %s597
          %s599 = sshll.u32 %s592, 4
          %s600 = int_to_ptr.vmem [resolvable:$true] %s599
          %605 = dma.hbm_to_vmem [thread:$0]  %s598, 256, %s600, %s589, 64, 64, 4
        $region44: #{tpu_custom_call.1} parent=27 // pred_fallthru
          _
        // Predicated region
        $region45: #{tpu_custom_call.1} parent=27 // pred_check
          %p606 = pneg %p191
        $region46: #{tpu_custom_call.1} parent=27 // pred_check_branch
          %608 = sbr.rel (%p606) target = $region48
        $region47: #{tpu_custom_call.1} parent=27 // pred_region
          %s609 = sand.u32 %s46, 1
          %s610 = scalar_lea.sflag [#allocation13], %s609
          %s611 = sand.u32 %s181, 1
          %s612 = scalar_lea.vmem [#allocation12], %s611
          %s614 = ssub.s32 16, 16
          %615 = vsyncadd %s610, %s614
          %s616 = smul.addr %s46, 16
          %s617 = scalar_lea.hbm %s5, %s616
          %s619 = sshll.u32 %s612, 4
          %s620 = int_to_ptr.vmem [resolvable:$true] %s619
          %622 = dma.hbm_to_vmem [thread:$0]  %s617, 16, %s620, %s610
        $region48: #{tpu_custom_call.1} parent=27 // pred_fallthru
          _
        // Predicated region
        $region49: #{tpu_custom_call.1} parent=27 // pred_check
          %p623 = pneg %p217
        $region50: #{tpu_custom_call.1} parent=27 // pred_check_branch
          %625 = sbr.rel (%p623) target = $region52
        $region51: #{tpu_custom_call.1} parent=27 // pred_region
          %s626 = sand.u32 %s46, 1
          %s627 = scalar_lea.sflag [#allocation13], %s626
          %s628 = sand.u32 %s207, 1
          %s629 = scalar_lea.vmem [#allocation14], %s628
          %s631 = ssub.s32 16, 16
          %632 = vsyncadd %s627, %s631
          %s633 = smul.addr %s46, 16
          %s634 = scalar_lea.hbm %s6, %s633
          %s636 = sshll.u32 %s629, 4
          %s637 = int_to_ptr.vmem [resolvable:$true] %s636
          %639 = dma.hbm_to_vmem [thread:$0]  %s634, 16, %s637, %s627
        $region52: #{tpu_custom_call.1} parent=27 // pred_fallthru
          _
        // Predicated region
        $region53: #{tpu_custom_call.1} parent=27 // pred_check
          %p640 = pneg %p243
        $region54: #{tpu_custom_call.1} parent=27 // pred_check_branch
          %642 = sbr.rel (%p640) target = $region56
        $region55: #{tpu_custom_call.1} parent=27 // pred_region
          %s643 = sand.u32 %s46, 1
          %s644 = scalar_lea.sflag [#allocation16], %s643
          %s645 = sand.u32 %s233, 1
          %s646 = scalar_lea.vmem [#allocation15], %s645
          %s648 = ssub.s32 16, 16
          %649 = vsyncadd %s644, %s648
          %s650 = smul.addr %s46, 16
          %s651 = scalar_lea.hbm %s7, %s650
          %s653 = sshll.u32 %s646, 4
          %s654 = int_to_ptr.vmem [resolvable:$true] %s653
          %656 = dma.hbm_to_vmem [thread:$0]  %s651, 16, %s654, %s644
        $region56: #{tpu_custom_call.1} parent=27 // pred_fallthru
          _
        // Predicated region
        $region57: #{tpu_custom_call.1} parent=27 // pred_check
          %p657 = pneg %p269
        $region58: #{tpu_custom_call.1} parent=27 // pred_check_branch
          %659 = sbr.rel (%p657) target = $region60
        $region59: #{tpu_custom_call.1} parent=27 // pred_region
          %s660 = sand.u32 %s46, 1
          %s661 = scalar_lea.sflag [#allocation16], %s660
          %s662 = sand.u32 %s259, 1
          %s663 = scalar_lea.vmem [#allocation17], %s662
          %s665 = ssub.s32 16, 16
          %666 = vsyncadd %s661, %s665
          %s667 = smul.addr %s46, 16
          %s668 = scalar_lea.hbm %s8, %s667
          %s670 = sshll.u32 %s663, 4
          %s671 = int_to_ptr.vmem [resolvable:$true] %s670
          %673 = dma.hbm_to_vmem [thread:$0]  %s668, 16, %s671, %s661
        $region60: #{tpu_custom_call.1} parent=27 // pred_fallthru
          _
        // Predicated region
        $region61: #{tpu_custom_call.1} parent=27 // pred_check
          %p674 = pneg %p295
        $region62: #{tpu_custom_call.1} parent=27 // pred_check_branch
          %676 = sbr.rel (%p674) target = $region64
        $region63: #{tpu_custom_call.1} parent=27 // pred_region
          %s677 = sand.u32 %s46, 1
          %s678 = scalar_lea.sflag [#allocation19], %s677
          %s679 = sand.u32 %s285, 1
          %s680 = scalar_lea.vmem [#allocation18], %s679
          %s682 = ssub.s32 16, 16
          %683 = vsyncadd %s678, %s682
          %s684 = smul.addr %s46, 16
          %s685 = scalar_lea.hbm %s9, %s684
          %s687 = sshll.u32 %s680, 4
          %s688 = int_to_ptr.vmem [resolvable:$true] %s687
          %690 = dma.hbm_to_vmem [thread:$0]  %s685, 16, %s688, %s678
        $region64: #{tpu_custom_call.1} parent=27 // pred_fallthru
          _
        // Predicated region
        $region65: #{tpu_custom_call.1} parent=27 // pred_check
          %p691 = pneg %p321
        $region66: #{tpu_custom_call.1} parent=27 // pred_check_branch
          %693 = sbr.rel (%p691) target = $region68
        $region67: #{tpu_custom_call.1} parent=27 // pred_region
          %s694 = sand.u32 %s46, 1
          %s695 = scalar_lea.sflag [#allocation19], %s694
          %s696 = sand.u32 %s311, 1
          %s697 = smul.addr %s696, 16
          %s698 = scalar_lea.vmem [#allocation20], %s697
          %s700 = ssub.s32 256, 256
          %701 = vsyncadd %s695, %s700
          %s702 = smul.addr %s46, 4
          %s703 = smul.addr %s702, 64
          %s704 = scalar_lea.hbm %s10, %s703
          %s705 = sshll.u32 %s698, 4
          %s706 = int_to_ptr.vmem [resolvable:$true] %s705
          %711 = dma.hbm_to_vmem [thread:$0]  %s704, 256, %s706, %s695, 64, 64, 4
        $region68: #{tpu_custom_call.1} parent=27 // pred_fallthru
          _
        // Predicated region
        $region69: #{tpu_custom_call.1} parent=27 // pred_check
          %p712 = pneg %p347
        $region70: #{tpu_custom_call.1} parent=27 // pred_check_branch
          %714 = sbr.rel (%p712) target = $region72
        $region71: #{tpu_custom_call.1} parent=27 // pred_region
          %s715 = sand.u32 %s46, 1
          %s716 = scalar_lea.sflag [#allocation22], %s715
          %s717 = sand.u32 %s337, 1
          %s718 = scalar_lea.vmem [#allocation21], %s717
          %s720 = ssub.s32 16, 16
          %721 = vsyncadd %s716, %s720
          %s722 = smul.addr %s46, 16
          %s723 = scalar_lea.hbm %s11, %s722
          %s725 = sshll.u32 %s718, 4
          %s726 = int_to_ptr.vmem [resolvable:$true] %s725
          %728 = dma.hbm_to_vmem [thread:$0]  %s723, 16, %s726, %s716
        $region72: #{tpu_custom_call.1} parent=27 // pred_fallthru
          _
        // Predicated region
        $region73: #{tpu_custom_call.1} parent=27 // pred_check
          %p729 = pneg %p373
        $region74: #{tpu_custom_call.1} parent=27 // pred_check_branch
          %731 = sbr.rel (%p729) target = $region76
        $region75: #{tpu_custom_call.1} parent=27 // pred_region
          %s732 = sand.u32 %s46, 1
          %s733 = scalar_lea.sflag [#allocation22], %s732
          %s734 = sand.u32 %s363, 1
          %s735 = smul.addr %s734, 64
          %s736 = scalar_lea.vmem [#allocation23], %s735
          %s738 = ssub.s32 1024, 1024
          %739 = vsyncadd %s733, %s738
          %s740 = smul.addr %s46, 16
          %s741 = smul.addr %s740, 64
          %s742 = scalar_lea.hbm %s12, %s741
          %s743 = sshll.u32 %s736, 4
          %s744 = int_to_ptr.vmem [resolvable:$true] %s743
          %749 = dma.hbm_to_vmem [thread:$0]  %s742, 1024, %s744, %s733, 64, 64, 4
        $region76: #{tpu_custom_call.1} parent=27 // pred_fallthru
          _
        // Predicated region
        $region77: #{tpu_custom_call.1} parent=27 // pred_check
          %p750 = pneg %p399
        $region78: #{tpu_custom_call.1} parent=27 // pred_check_branch
          %752 = sbr.rel (%p750) target = $region80
        $region79: #{tpu_custom_call.1} parent=27 // pred_region
          %s753 = sand.u32 %s46, 1
          %s754 = scalar_lea.sflag [#allocation25], %s753
          %s755 = sand.u32 %s389, 1
          %s756 = scalar_lea.vmem [#allocation24], %s755
          %s758 = ssub.s32 16, 16
          %759 = vsyncadd %s754, %s758
          %s760 = smul.addr %s46, 16
          %s761 = scalar_lea.hbm %s13, %s760
          %s763 = sshll.u32 %s756, 4
          %s764 = int_to_ptr.vmem [resolvable:$true] %s763
          %766 = dma.hbm_to_vmem [thread:$0]  %s761, 16, %s764, %s754
        $region80: #{tpu_custom_call.1} parent=27 // pred_fallthru
          _
      $region28: #{tpu_custom_call.1} parent=5 // pred_fallthru
        _
      %p767 = scmp.le.s32.totalorder 1, %s46
      %p768 = scmp.lt.s32.totalorder %s46, 4
      %p769 = pnand %p767, %p768
      %p770 = pneg %p769
      // Predicated region
      $region81: #{tpu_custom_call.1} parent=5 // pred_check
        _
      $region82: #{tpu_custom_call.1} parent=5 // pred_check_branch
        %772 = sbr.rel (%p769) target = $region84
      $region83: #{tpu_custom_call.1} parent=5 // pred_region
        %s773 = ssub.s32 %s46, 1
        // Predicated region
        $region85: #{tpu_custom_call.1} parent=83 // pred_check
          %p774 = pneg %p67
        $region86: #{tpu_custom_call.1} parent=83 // pred_check_branch
          %776 = sbr.rel (%p774) target = $region88
        $region87: #{tpu_custom_call.1} parent=83 // pred_region
          %777 = dma.done [#allocation4], 128
        $region88: #{tpu_custom_call.1} parent=83 // pred_fallthru
          _
        %s778 = sand.u32 %s51, 1
        %s779 = scalar_lea.sflag [#allocation7], %s778
        %s780 = sand.u32 %s80, 1
        %s781 = smul.addr %s780, 16
        %s782 = scalar_lea.vmem [#allocation6], %s781
        // Predicated region
        $region89: #{tpu_custom_call.1} parent=83 // pred_check
          %p783 = pneg %p93
        $region90: #{tpu_custom_call.1} parent=83 // pred_check_branch
          %785 = sbr.rel (%p783) target = $region92
        $region91: #{tpu_custom_call.1} parent=83 // pred_region
          %786 = dma.done %s779, 256
        $region92: #{tpu_custom_call.1} parent=83 // pred_fallthru
          _
        %s787 = sand.u32 %s51, 1
        %s788 = scalar_lea.sflag [#allocation7], %s787
        %s789 = sand.u32 %s106, 1
        %s790 = smul.addr %s789, 16
        %s791 = scalar_lea.vmem [#allocation8], %s790
        // Predicated region
        $region93: #{tpu_custom_call.1} parent=83 // pred_check
          %p792 = pneg %p119
        $region94: #{tpu_custom_call.1} parent=83 // pred_check_branch
          %794 = sbr.rel (%p792) target = $region96
        $region95: #{tpu_custom_call.1} parent=83 // pred_region
          %795 = dma.done %s788, 256
        $region96: #{tpu_custom_call.1} parent=83 // pred_fallthru
          _
        %s796 = sand.u32 %s51, 1
        %s797 = scalar_lea.sflag [#allocation10], %s796
        %s798 = sand.u32 %s132, 1
        %s799 = smul.addr %s798, 16
        %s800 = scalar_lea.vmem [#allocation9], %s799
        // Predicated region
        $region97: #{tpu_custom_call.1} parent=83 // pred_check
          %p801 = pneg %p145
        $region98: #{tpu_custom_call.1} parent=83 // pred_check_branch
          %803 = sbr.rel (%p801) target = $region100
        $region99: #{tpu_custom_call.1} parent=83 // pred_region
          %804 = dma.done %s797, 256
        $region100: #{tpu_custom_call.1} parent=83 // pred_fallthru
          _
        %s805 = sand.u32 %s51, 1
        %s806 = scalar_lea.sflag [#allocation10], %s805
        %s807 = sand.u32 %s158, 1
        %s808 = smul.addr %s807, 16
        %s809 = scalar_lea.vmem [#allocation11], %s808
        // Predicated region
        $region101: #{tpu_custom_call.1} parent=83 // pred_check
          %p810 = pneg %p171
        $region102: #{tpu_custom_call.1} parent=83 // pred_check_branch
          %812 = sbr.rel (%p810) target = $region104
        $region103: #{tpu_custom_call.1} parent=83 // pred_region
          %813 = dma.done %s806, 256
        $region104: #{tpu_custom_call.1} parent=83 // pred_fallthru
          _
        %s814 = sand.u32 %s51, 1
        %s815 = scalar_lea.sflag [#allocation13], %s814
        %s816 = sand.u32 %s184, 1
        %s817 = scalar_lea.vmem [#allocation12], %s816
        // Predicated region
        $region105: #{tpu_custom_call.1} parent=83 // pred_check
          %p818 = pneg %p197
        $region106: #{tpu_custom_call.1} parent=83 // pred_check_branch
          %820 = sbr.rel (%p818) target = $region108
        $region107: #{tpu_custom_call.1} parent=83 // pred_region
          %821 = dma.done %s815, 16
        $region108: #{tpu_custom_call.1} parent=83 // pred_fallthru
          _
        %s822 = sand.u32 %s51, 1
        %s823 = scalar_lea.sflag [#allocation13], %s822
        %s824 = sand.u32 %s210, 1
        %s825 = scalar_lea.vmem [#allocation14], %s824
        // Predicated region
        $region109: #{tpu_custom_call.1} parent=83 // pred_check
          %p826 = pneg %p223
        $region110: #{tpu_custom_call.1} parent=83 // pred_check_branch
          %828 = sbr.rel (%p826) target = $region112
        $region111: #{tpu_custom_call.1} parent=83 // pred_region
          %829 = dma.done %s823, 16
        $region112: #{tpu_custom_call.1} parent=83 // pred_fallthru
          _
        %s830 = sand.u32 %s51, 1
        %s831 = scalar_lea.sflag [#allocation16], %s830
        %s832 = sand.u32 %s236, 1
        %s833 = scalar_lea.vmem [#allocation15], %s832
        // Predicated region
        $region113: #{tpu_custom_call.1} parent=83 // pred_check
          %p834 = pneg %p249
        $region114: #{tpu_custom_call.1} parent=83 // pred_check_branch
          %836 = sbr.rel (%p834) target = $region116
        $region115: #{tpu_custom_call.1} parent=83 // pred_region
          %837 = dma.done %s831, 16
        $region116: #{tpu_custom_call.1} parent=83 // pred_fallthru
          _
        %s838 = sand.u32 %s51, 1
        %s839 = scalar_lea.sflag [#allocation16], %s838
        %s840 = sand.u32 %s262, 1
        %s841 = scalar_lea.vmem [#allocation17], %s840
        // Predicated region
        $region117: #{tpu_custom_call.1} parent=83 // pred_check
          %p842 = pneg %p275
        $region118: #{tpu_custom_call.1} parent=83 // pred_check_branch
          %844 = sbr.rel (%p842) target = $region120
        $region119: #{tpu_custom_call.1} parent=83 // pred_region
          %845 = dma.done %s839, 16
        $region120: #{tpu_custom_call.1} parent=83 // pred_fallthru
          _
        %s846 = sand.u32 %s51, 1
        %s847 = scalar_lea.sflag [#allocation19], %s846
        %s848 = sand.u32 %s288, 1
        %s849 = scalar_lea.vmem [#allocation18], %s848
        // Predicated region
        $region121: #{tpu_custom_call.1} parent=83 // pred_check
          %p850 = pneg %p301
        $region122: #{tpu_custom_call.1} parent=83 // pred_check_branch
          %852 = sbr.rel (%p850) target = $region124
        $region123: #{tpu_custom_call.1} parent=83 // pred_region
          %853 = dma.done %s847, 16
        $region124: #{tpu_custom_call.1} parent=83 // pred_fallthru
          _
        %s854 = sand.u32 %s51, 1
        %s855 = scalar_lea.sflag [#allocation19], %s854
        %s856 = sand.u32 %s314, 1
        %s857 = smul.addr %s856, 16
        %s858 = scalar_lea.vmem [#allocation20], %s857
        // Predicated region
        $region125: #{tpu_custom_call.1} parent=83 // pred_check
          %p859 = pneg %p327
        $region126: #{tpu_custom_call.1} parent=83 // pred_check_branch
          %861 = sbr.rel (%p859) target = $region128
        $region127: #{tpu_custom_call.1} parent=83 // pred_region
          %862 = dma.done %s855, 256
        $region128: #{tpu_custom_call.1} parent=83 // pred_fallthru
          _
        %s863 = sand.u32 %s51, 1
        %s864 = scalar_lea.sflag [#allocation22], %s863
        %s865 = sand.u32 %s340, 1
        %s866 = scalar_lea.vmem [#allocation21], %s865
        // Predicated region
        $region129: #{tpu_custom_call.1} parent=83 // pred_check
          %p867 = pneg %p353
        $region130: #{tpu_custom_call.1} parent=83 // pred_check_branch
          %869 = sbr.rel (%p867) target = $region132
        $region131: #{tpu_custom_call.1} parent=83 // pred_region
          %870 = dma.done %s864, 16
        $region132: #{tpu_custom_call.1} parent=83 // pred_fallthru
          _
        %s871 = sand.u32 %s51, 1
        %s872 = scalar_lea.sflag [#allocation22], %s871
        %s873 = sand.u32 %s366, 1
        %s874 = smul.addr %s873, 64
        %s875 = scalar_lea.vmem [#allocation23], %s874
        // Predicated region
        $region133: #{tpu_custom_call.1} parent=83 // pred_check
          %p876 = pneg %p379
        $region134: #{tpu_custom_call.1} parent=83 // pred_check_branch
          %878 = sbr.rel (%p876) target = $region136
        $region135: #{tpu_custom_call.1} parent=83 // pred_region
          %879 = dma.done %s872, 1024
        $region136: #{tpu_custom_call.1} parent=83 // pred_fallthru
          _
        %s880 = sand.u32 %s51, 1
        %s881 = scalar_lea.sflag [#allocation25], %s880
        %s882 = sand.u32 %s392, 1
        %s883 = scalar_lea.vmem [#allocation24], %s882
        // Predicated region
        $region137: #{tpu_custom_call.1} parent=83 // pred_check
          %p884 = pneg %p405
        $region138: #{tpu_custom_call.1} parent=83 // pred_check_branch
          %886 = sbr.rel (%p884) target = $region140
        $region139: #{tpu_custom_call.1} parent=83 // pred_region
          %887 = dma.done %s881, 16
        $region140: #{tpu_custom_call.1} parent=83 // pred_fallthru
          _
        // Predicated region
        $region141: #{tpu_custom_call.1} parent=83 // pred_check
          %p888 = pneg %p426
        $region142: #{tpu_custom_call.1} parent=83 // pred_check_branch
          %890 = sbr.rel (%p888) target = $region144
        $region143: #{tpu_custom_call.1} parent=83 // pred_region
          %891 = dma.done [#allocation25], 16
        $region144: #{tpu_custom_call.1} parent=83 // pred_fallthru
          _
        // Predicated region
        $region145: #{tpu_custom_call.1} parent=83 // pred_check
          %p892 = pneg %p447
        $region146: #{tpu_custom_call.1} parent=83 // pred_check_branch
          %894 = sbr.rel (%p892) target = $region148
        $region147: #{tpu_custom_call.1} parent=83 // pred_region
          %895 = dma.done [#allocation28], 16
        $region148: #{tpu_custom_call.1} parent=83 // pred_fallthru
          _
        %p896 = pneg %p67
        %p897 = pneg %p64
        %s898 = sand.u32 %s51, 1
        %s899 = scalar_lea.sflag [#allocation7], %s898
        %s900 = sand.u32 %s80, 1
        %s901 = smul.addr %s900, 16
        %s902 = scalar_lea.vmem [#allocation6], %s901
        %p903 = pneg %p93
        %p904 = pneg %p90
        %s905 = sand.u32 %s51, 1
        %s906 = scalar_lea.sflag [#allocation7], %s905
        %s907 = sand.u32 %s106, 1
        %s908 = smul.addr %s907, 16
        %s909 = scalar_lea.vmem [#allocation8], %s908
        %p910 = pneg %p119
        %p911 = pneg %p116
        %s912 = sand.u32 %s51, 1
        %s913 = scalar_lea.sflag [#allocation10], %s912
        %s914 = sand.u32 %s132, 1
        %s915 = smul.addr %s914, 16
        %s916 = scalar_lea.vmem [#allocation9], %s915
        %p917 = pneg %p145
        %p918 = pneg %p142
        %s919 = sand.u32 %s51, 1
        %s920 = scalar_lea.sflag [#allocation10], %s919
        %s921 = sand.u32 %s158, 1
        %s922 = smul.addr %s921, 16
        %s923 = scalar_lea.vmem [#allocation11], %s922
        %p924 = pneg %p171
        %p925 = pneg %p168
        %s926 = sand.u32 %s51, 1
        %s927 = scalar_lea.sflag [#allocation13], %s926
        %s928 = sand.u32 %s184, 1
        %s929 = scalar_lea.vmem [#allocation12], %s928
        %p930 = pneg %p197
        %p931 = pneg %p194
        %s932 = sand.u32 %s51, 1
        %s933 = scalar_lea.sflag [#allocation13], %s932
        %s934 = sand.u32 %s210, 1
        %s935 = scalar_lea.vmem [#allocation14], %s934
        %p936 = pneg %p223
        %p937 = pneg %p220
        %s938 = sand.u32 %s51, 1
        %s939 = scalar_lea.sflag [#allocation16], %s938
        %s940 = sand.u32 %s236, 1
        %s941 = scalar_lea.vmem [#allocation15], %s940
        %p942 = pneg %p249
        %p943 = pneg %p246
        %s944 = sand.u32 %s51, 1
        %s945 = scalar_lea.sflag [#allocation16], %s944
        %s946 = sand.u32 %s262, 1
        %s947 = scalar_lea.vmem [#allocation17], %s946
        %p948 = pneg %p275
        %p949 = pneg %p272
        %s950 = sand.u32 %s51, 1
        %s951 = scalar_lea.sflag [#allocation19], %s950
        %s952 = sand.u32 %s288, 1
        %s953 = scalar_lea.vmem [#allocation18], %s952
        %p954 = pneg %p301
        %p955 = pneg %p298
        %s956 = sand.u32 %s51, 1
        %s957 = scalar_lea.sflag [#allocation19], %s956
        %s958 = sand.u32 %s314, 1
        %s959 = smul.addr %s958, 16
        %s960 = scalar_lea.vmem [#allocation20], %s959
        %p961 = pneg %p327
        %p962 = pneg %p324
        %s963 = sand.u32 %s51, 1
        %s964 = scalar_lea.sflag [#allocation22], %s963
        %s965 = sand.u32 %s340, 1
        %s966 = scalar_lea.vmem [#allocation21], %s965
        %p967 = pneg %p353
        %p968 = pneg %p350
        %s969 = sand.u32 %s51, 1
        %s970 = scalar_lea.sflag [#allocation22], %s969
        %s971 = sand.u32 %s366, 1
        %s972 = smul.addr %s971, 64
        %s973 = scalar_lea.vmem [#allocation23], %s972
        %p974 = pneg %p379
        %p975 = pneg %p376
        %s976 = sand.u32 %s51, 1
        %s977 = scalar_lea.sflag [#allocation25], %s976
        %s978 = sand.u32 %s392, 1
        %s979 = scalar_lea.vmem [#allocation24], %s978
        %p980 = pneg %p405
        %p981 = pneg %p402
        %p982 = pneg %p426
        %p983 = pneg %p423
        %p984 = pneg %p447
        %p985 = pneg %p444
        %p986 = pneg %p468
        %p987 = pneg %p465
        %p989 = scmp.eq.s32.totalorder %s51, 0
        // Predicated region
        $region149: #{tpu_custom_call.1} parent=83 // pred_check
          %p990 = pneg %p989
        $region150: #{tpu_custom_call.1} parent=83 // pred_check_branch
          %992 = sbr.rel (%p990) target = $region152
        $region151: #{tpu_custom_call.1} parent=83 // pred_region
          %v993 = vld [vmem:[#allocation3] sm:$0xf]
          %v994 = vld [vmem:[#allocation3 + $0x4] sm:$0xf]
          %v995 = vunpack.c.l.bf16 %v993
          %v996 = vunpack.c.l.bf16 %v994
          %vm997 = vcmask 261120
          %998 = vst.msk [vmem:[#allocation2] sm:$0xff] %vm997, %v995
          %999 = vst.msk [vmem:[#allocation2 + $0x8] sm:$0xff] %vm997, %v996
        $region152: #{tpu_custom_call.1} parent=83 // pred_fallthru
          _
        %v1000 = vld [vmem:[#allocation2] sm:$0xff]
        %v1001 = vld [vmem:[#allocation2 + $0x8] sm:$0xff]
        %v1002 = vld [vmem:[%s825] sm:$0x1]
        %v1003 = vld [vmem:[%s833] sm:$0x1]
        %vm1004 = vcmask 261120
        %v1005 = vsel %vm1004, %v1000, 0.0
        %1006 = vadd.xlane.f32.xlu0 %v1005
        %v1007 = vpop.xlane.xlu0 %1006
        %v1008 = vsel %vm1004, %v1001, 0.0
        %1009 = vadd.xlane.f32.xlu0 %v1008
        %v1010 = vpop.xlane.xlu0 %1009
        %v1011 = vrcp.pop 32.0
        %v1012 = vmul.f32 %v1007, %v1011
        %v1013 = vmul.f32 %v1010, %v1011
        %v1014 = vsub.f32 %v1000, %v1012
        %v1015 = vsub.f32 %v1001, %v1013
        %v1016 = vmul.f32 %v1014, %v1014
        %v1017 = vmul.f32 %v1015, %v1015
        %v1018 = vsel %vm1004, %v1016, 0.0
        %1019 = vadd.xlane.f32.xlu0 %v1018
        %v1020 = vpop.xlane.xlu0 %1019
        %v1021 = vsel %vm1004, %v1017, 0.0
        %1022 = vadd.xlane.f32.xlu0 %v1021
        %v1023 = vpop.xlane.xlu0 %1022
        %v1024 = vmul.f32 %v1020, %v1011
        %v1025 = vmul.f32 %v1023, %v1011
        %v1026 = vadd.f32 %v1024, 1e-05
        %v1027 = vadd.f32 %v1025, 1e-05
        %v1028 = vrsqrt.pop %v1026
        %v1029 = vrsqrt.pop %v1027
        %v1030 = vmul.f32 %v1014, %v1028
        %v1031 = vmul.f32 %v1015, %v1029
        %v1033 = vlaneseq
        %v1034 = vshrl.u32 %v1033, 7
        %v1035 = vsub.s32 0, %v1034
        %v1036 = vrot.slane %v1002, %v1035
        %v1038 = vmul.f32 %v1030, %v1036
        %v1039 = vmul.f32 %v1031, %v1036
        %v1041 = vlaneseq
        %v1042 = vshrl.u32 %v1041, 7
        %v1043 = vsub.s32 0, %v1042
        %v1044 = vrot.slane %v1003, %v1043
        %v1046 = vadd.f32 %v1038, %v1044
        %v1047 = vadd.f32 %v1039, %v1044
        %v1048 = vpack.c.bf16 %v1047, %v1046
        %v1049 = vld [vmem:[%s782] sm:$0xf]
        %v1050 = vld [vmem:[%s782 + $0x4] sm:$0xf]
        %v1051 = vld [vmem:[%s782 + $0x8] sm:$0xf]
        %v1052 = vld [vmem:[%s782 + $0xc] sm:$0xf]
        %v1057 = vunpack.c.l.b16 %v1049
        %v1058 = vunpack.c.l.b16 %v1050
        %v1059 = vunpack.c.l.b16 %v1051
        %v1060 = vunpack.c.l.b16 %v1052
        %v1061 = vpack.c.b16 %v1058, %v1057
        %v1062 = vpack.c.b16 %v1060, %v1059
        %v1066 = vsel %vm1004, %v1048, 0
        %1068 = vmatprep.subr.bf16.mxu0 0
        %1069 = vmatpush1.bf16.msra.mxu0 %v1061
        %1070 = vmatprep.subr.bf16.mxu0 0
        %1071 = vmatpush1.bf16.msra.mxu0 %v1062
        %1072 = vmatprep.subr.bf16.mxu0 0
        %1073 = vmatpush1.bf16.msra.mxu0 0
        %1074 = vmatprep.subr.bf16.mxu0 0
        %1075 = vmatpush1.bf16.msra.mxu0 0
        %1076 = vmatprep.subr.bf16.mxu0 0
        %1077 = vmatpush1.bf16.msra.mxu0 0
        %1078 = vmatprep.subr.bf16.mxu0 0
        %1079 = vmatpush1.bf16.msra.mxu0 0
        %1080 = vmatprep.subr.bf16.mxu0 0
        %1081 = vmatpush1.bf16.msra.mxu0 0
        %1082 = vmatprep.subr.bf16.mxu0 0
        %1083 = vmatpush1.bf16.msra.mxu0 0
        %1084 = vmatprep.subr.bf16.mxu0 0
        %1085 = vmatpush1.bf16.msra.mxu0 0
        %1086 = vmatprep.subr.bf16.mxu0 0
        %1087 = vmatpush1.bf16.msra.mxu0 0
        %1088 = vmatprep.subr.bf16.mxu0 0
        %1089 = vmatpush1.bf16.msra.mxu0 0
        %1090 = vmatprep.subr.bf16.mxu0 0
        %1091 = vmatpush1.bf16.msra.mxu0 0
        %1092 = vmatprep.subr.bf16.mxu0 0
        %1093 = vmatpush1.bf16.msra.mxu0 0
        %1094 = vmatprep.subr.bf16.mxu0 0
        %1095 = vmatpush1.bf16.msra.mxu0 0
        %1096 = vmatprep.subr.bf16.mxu0 0
        %1097 = vmatpush1.bf16.msra.mxu0 0
        %1098 = vmatprep.subr.bf16.mxu0 0
        %1099 = vmatpush1.bf16.msra.mxu0 0
        %1100 = vmatprep.mubr.bf16.mxu0 0
        %1101 = vmatmul.mubr.bf16.gmra.mrb[0].mxu0 %v1066
        %v1102 = vpop.f32.mrb[0].mxu0
        %v1103 = vadd.f32 0.0, %v1102
        %v1104 = vpop.f32.mrb[0].mxu0
        %v1105 = vpop.f32.mrb[0].mxu0
        %v1106 = vadd.f32 0.0, %v1105
        %v1107 = vpop.f32.mrb[0].mxu0
        %1108 = vdwg.mxu0
        %v1109 = vld [vmem:[%s791] sm:$0xf]
        %v1110 = vld [vmem:[%s791 + $0x4] sm:$0xf]
        %v1111 = vld [vmem:[%s791 + $0x8] sm:$0xf]
        %v1112 = vld [vmem:[%s791 + $0xc] sm:$0xf]
        %v1117 = vunpack.c.l.b16 %v1109
        %v1118 = vunpack.c.l.b16 %v1110
        %v1119 = vunpack.c.l.b16 %v1111
        %v1120 = vunpack.c.l.b16 %v1112
        %v1121 = vpack.c.b16 %v1118, %v1117
        %v1122 = vpack.c.b16 %v1120, %v1119
        %1125 = vmatprep.subr.bf16.mxu0 0
        %1126 = vmatpush1.bf16.msra.mxu0 %v1121
        %1127 = vmatprep.subr.bf16.mxu0 0
        %1128 = vmatpush1.bf16.msra.mxu0 %v1122
        %1129 = vmatprep.subr.bf16.mxu0 0
        %1130 = vmatpush1.bf16.msra.mxu0 0
        %1131 = vmatprep.subr.bf16.mxu0 0
        %1132 = vmatpush1.bf16.msra.mxu0 0
        %1133 = vmatprep.subr.bf16.mxu0 0
        %1134 = vmatpush1.bf16.msra.mxu0 0
        %1135 = vmatprep.subr.bf16.mxu0 0
        %1136 = vmatpush1.bf16.msra.mxu0 0
        %1137 = vmatprep.subr.bf16.mxu0 0
        %1138 = vmatpush1.bf16.msra.mxu0 0
        %1139 = vmatprep.subr.bf16.mxu0 0
        %1140 = vmatpush1.bf16.msra.mxu0 0
        %1141 = vmatprep.subr.bf16.mxu0 0
        %1142 = vmatpush1.bf16.msra.mxu0 0
        %1143 = vmatprep.subr.bf16.mxu0 0
        %1144 = vmatpush1.bf16.msra.mxu0 0
        %1145 = vmatprep.subr.bf16.mxu0 0
        %1146 = vmatpush1.bf16.msra.mxu0 0
        %1147 = vmatprep.subr.bf16.mxu0 0
        %1148 = vmatpush1.bf16.msra.mxu0 0
        %1149 = vmatprep.subr.bf16.mxu0 0
        %1150 = vmatpush1.bf16.msra.mxu0 0
        %1151 = vmatprep.subr.bf16.mxu0 0
        %1152 = vmatpush1.bf16.msra.mxu0 0
        %1153 = vmatprep.subr.bf16.mxu0 0
        %1154 = vmatpush1.bf16.msra.mxu0 0
        %1155 = vmatprep.subr.bf16.mxu0 0
        %1156 = vmatpush1.bf16.msra.mxu0 0
        %1157 = vmatprep.mubr.bf16.mxu0 0
        %1158 = vmatmul.mubr.bf16.gmra.mrb[0].mxu0 %v1066
        %v1159 = vpop.f32.mrb[0].mxu0
        %v1160 = vadd.f32 0.0, %v1159
        %v1161 = vpop.f32.mrb[0].mxu0
        %v1162 = vpop.f32.mrb[0].mxu0
        %v1163 = vadd.f32 0.0, %v1162
        %v1164 = vpop.f32.mrb[0].mxu0
        %1165 = vdwg.mxu0
        %v1166 = vld [vmem:[%s800] sm:$0xf]
        %v1167 = vld [vmem:[%s800 + $0x4] sm:$0xf]
        %v1168 = vld [vmem:[%s800 + $0x8] sm:$0xf]
        %v1169 = vld [vmem:[%s800 + $0xc] sm:$0xf]
        %v1174 = vunpack.c.l.b16 %v1166
        %v1175 = vunpack.c.l.b16 %v1167
        %v1176 = vunpack.c.l.b16 %v1168
        %v1177 = vunpack.c.l.b16 %v1169
        %v1178 = vpack.c.b16 %v1175, %v1174
        %v1179 = vpack.c.b16 %v1177, %v1176
        %1182 = vmatprep.subr.bf16.mxu0 0
        %1183 = vmatpush1.bf16.msra.mxu0 %v1178
        %1184 = vmatprep.subr.bf16.mxu0 0
        %1185 = vmatpush1.bf16.msra.mxu0 %v1179
        %1186 = vmatprep.subr.bf16.mxu0 0
        %1187 = vmatpush1.bf16.msra.mxu0 0
        %1188 = vmatprep.subr.bf16.mxu0 0
        %1189 = vmatpush1.bf16.msra.mxu0 0
        %1190 = vmatprep.subr.bf16.mxu0 0
        %1191 = vmatpush1.bf16.msra.mxu0 0
        %1192 = vmatprep.subr.bf16.mxu0 0
        %1193 = vmatpush1.bf16.msra.mxu0 0
        %1194 = vmatprep.subr.bf16.mxu0 0
        %1195 = vmatpush1.bf16.msra.mxu0 0
        %1196 = vmatprep.subr.bf16.mxu0 0
        %1197 = vmatpush1.bf16.msra.mxu0 0
        %1198 = vmatprep.subr.bf16.mxu0 0
        %1199 = vmatpush1.bf16.msra.mxu0 0
        %1200 = vmatprep.subr.bf16.mxu0 0
        %1201 = vmatpush1.bf16.msra.mxu0 0
        %1202 = vmatprep.subr.bf16.mxu0 0
        %1203 = vmatpush1.bf16.msra.mxu0 0
        %1204 = vmatprep.subr.bf16.mxu0 0
        %1205 = vmatpush1.bf16.msra.mxu0 0
        %1206 = vmatprep.subr.bf16.mxu0 0
        %1207 = vmatpush1.bf16.msra.mxu0 0
        %1208 = vmatprep.subr.bf16.mxu0 0
        %1209 = vmatpush1.bf16.msra.mxu0 0
        %1210 = vmatprep.subr.bf16.mxu0 0
        %1211 = vmatpush1.bf16.msra.mxu0 0
        %1212 = vmatprep.subr.bf16.mxu0 0
        %1213 = vmatpush1.bf16.msra.mxu0 0
        %1214 = vmatprep.mubr.bf16.mxu0 0
        %1215 = vmatmul.mubr.bf16.gmra.mrb[0].mxu0 %v1066
        %v1216 = vpop.f32.mrb[0].mxu0
        %v1217 = vadd.f32 0.0, %v1216
        %v1218 = vpop.f32.mrb[0].mxu0
        %v1219 = vpop.f32.mrb[0].mxu0
        %v1220 = vadd.f32 0.0, %v1219
        %v1221 = vpop.f32.mrb[0].mxu0
        %1222 = vdwg.mxu0
        %v1223 = vlaneseq
        %v1224 = vshrl.u32 %v1223, 7
        %v1225 = vlaneseq
        %v1226 = vand.u32 %v1225, 127
        %vm1227 = vcmp.gt.s32.totalorder %v1226, %v1224
        %v1228 = vld [vmem:[%s809] sm:$0xf]
        %v1229 = vld [vmem:[%s809 + $0x4] sm:$0xf]
        %v1230 = vld [vmem:[%s809 + $0x8] sm:$0xf]
        %v1231 = vld [vmem:[%s809 + $0xc] sm:$0xf]
        %1234 = vrot.lane.b32.xlu0 %v1103, 120
        %v1235 = vpop.permute.xlu0 %1234
        %1236 = vrot.lane.b32.xlu0 %v1106, 120
        %v1237 = vpop.permute.xlu0 %1236
        %v1240 = vcombine.high %v1103, 0.0
        %v1242 = vunpack.c.l.s4 1983009808
        %v1243 = vunpack.c.0.s8 %v1242
        %v1244 = vlaneseq
        %v1245 = vshrl.u32 %v1244, 7
        %v1246 = vsub.s32 %v1243, %v1245
        %v1247 = vrot.slane %v1103, %v1246
        %v1249 = vunpack.c.l.s4 1983009808
        %v1250 = vunpack.c.0.s8 %v1249
        %v1251 = vlaneseq
        %v1252 = vshrl.u32 %v1251, 7
        %v1253 = vsub.s32 %v1250, %v1252
        %v1254 = vrot.slane %v1240, %v1253
        %v1255 = vcombine.high %v1235, 0.0
        %v1257 = vunpack.c.l.s4 1983009808
        %v1258 = vunpack.c.0.s8 %v1257
        %v1259 = vlaneseq
        %v1260 = vshrl.u32 %v1259, 7
        %v1261 = vsub.s32 %v1258, %v1260
        %v1262 = vrot.slane %v1235, %v1261
        %v1264 = vunpack.c.l.s4 1983009808
        %v1265 = vunpack.c.0.s8 %v1264
        %v1266 = vlaneseq
        %v1267 = vshrl.u32 %v1266, 7
        %v1268 = vsub.s32 %v1265, %v1267
        %v1269 = vrot.slane %v1255, %v1268
        %v1270 = vcombine.low %v1247, %v1262
        %v1271 = vcombine.high %v1247, %v1262
        %v1273 = vunpack.c.l.s4 1934713408
        %v1274 = vunpack.c.0.s8 %v1273
        %v1275 = vlaneseq
        %v1276 = vshrl.u32 %v1275, 7
        %v1277 = vsub.s32 %v1274, %v1276
        %v1278 = vrot.slane %v1270, %v1277
        %v1280 = vunpack.c.l.s4 1934713408
        %v1281 = vunpack.c.0.s8 %v1280
        %v1282 = vlaneseq
        %v1283 = vshrl.u32 %v1282, 7
        %v1284 = vsub.s32 %v1281, %v1283
        %v1285 = vrot.slane %v1271, %v1284
        %v1286 = vcombine.low %v1254, %v1269
        %v1287 = vcombine.high %v1254, %v1269
        %v1289 = vunpack.c.l.s4 1934713408
        %v1290 = vunpack.c.0.s8 %v1289
        %v1291 = vlaneseq
        %v1292 = vshrl.u32 %v1291, 7
        %v1293 = vsub.s32 %v1290, %v1292
        %v1294 = vrot.slane %v1286, %v1293
        %v1296 = vunpack.c.l.s4 1934713408
        %v1297 = vunpack.c.0.s8 %v1296
        %v1298 = vlaneseq
        %v1299 = vshrl.u32 %v1298, 7
        %v1300 = vsub.s32 %v1297, %v1299
        %v1301 = vrot.slane %v1287, %v1300
        %v1302 = vcombine.high %v1278, 0.0
        %v1303 = vcombine.high %v1285, 0.0
        %v1304 = vcombine.high %v1294, 0.0
        %v1305 = vcombine.high %v1301, 0.0
        %v1306 = vcombine.high %v1106, 0.0
        %v1308 = vunpack.c.l.s4 1983009808
        %v1309 = vunpack.c.0.s8 %v1308
        %v1310 = vlaneseq
        %v1311 = vshrl.u32 %v1310, 7
        %v1312 = vsub.s32 %v1309, %v1311
        %v1313 = vrot.slane %v1106, %v1312
        %v1315 = vunpack.c.l.s4 1983009808
        %v1316 = vunpack.c.0.s8 %v1315
        %v1317 = vlaneseq
        %v1318 = vshrl.u32 %v1317, 7
        %v1319 = vsub.s32 %v1316, %v1318
        %v1320 = vrot.slane %v1306, %v1319
        %v1321 = vcombine.high %v1237, 0.0
        %v1323 = vunpack.c.l.s4 1983009808
        %v1324 = vunpack.c.0.s8 %v1323
        %v1325 = vlaneseq
        %v1326 = vshrl.u32 %v1325, 7
        %v1327 = vsub.s32 %v1324, %v1326
        %v1328 = vrot.slane %v1237, %v1327
        %v1330 = vunpack.c.l.s4 1983009808
        %v1331 = vunpack.c.0.s8 %v1330
        %v1332 = vlaneseq
        %v1333 = vshrl.u32 %v1332, 7
        %v1334 = vsub.s32 %v1331, %v1333
        %v1335 = vrot.slane %v1321, %v1334
        %v1336 = vcombine.low %v1313, %v1328
        %v1337 = vcombine.high %v1313, %v1328
        %v1339 = vunpack.c.l.s4 1934713408
        %v1340 = vunpack.c.0.s8 %v1339
        %v1341 = vlaneseq
        %v1342 = vshrl.u32 %v1341, 7
        %v1343 = vsub.s32 %v1340, %v1342
        %v1344 = vrot.slane %v1336, %v1343
        %v1346 = vunpack.c.l.s4 1934713408
        %v1347 = vunpack.c.0.s8 %v1346
        %v1348 = vlaneseq
        %v1349 = vshrl.u32 %v1348, 7
        %v1350 = vsub.s32 %v1347, %v1349
        %v1351 = vrot.slane %v1337, %v1350
        %v1352 = vcombine.low %v1320, %v1335
        %v1353 = vcombine.high %v1320, %v1335
        %v1355 = vunpack.c.l.s4 1934713408
        %v1356 = vunpack.c.0.s8 %v1355
        %v1357 = vlaneseq
        %v1358 = vshrl.u32 %v1357, 7
        %v1359 = vsub.s32 %v1356, %v1358
        %v1360 = vrot.slane %v1352, %v1359
        %v1362 = vunpack.c.l.s4 1934713408
        %v1363 = vunpack.c.0.s8 %v1362
        %v1364 = vlaneseq
        %v1365 = vshrl.u32 %v1364, 7
        %v1366 = vsub.s32 %v1363, %v1365
        %v1367 = vrot.slane %v1353, %v1366
        %v1368 = vcombine.high %v1344, 0.0
        %v1369 = vcombine.high %v1351, 0.0
        %v1370 = vcombine.high %v1360, 0.0
        %v1371 = vcombine.high %v1367, 0.0
        %v1372 = vcombine.low %v1278, %v1285
        %v1374 = vunpack.c.l.s4 1983009808
        %v1375 = vunpack.c.0.s8 %v1374
        %v1376 = vlaneseq
        %v1377 = vshrl.u32 %v1376, 7
        %v1378 = vsub.s32 %v1375, %v1377
        %v1379 = vrot.slane %v1372, %v1378
        %v1380 = vcombine.low %v1302, %v1303
        %v1382 = vunpack.c.l.s4 1983009808
        %v1383 = vunpack.c.0.s8 %v1382
        %v1384 = vlaneseq
        %v1385 = vshrl.u32 %v1384, 7
        %v1386 = vsub.s32 %v1383, %v1385
        %v1387 = vrot.slane %v1380, %v1386
        %v1388 = vcombine.low %v1294, %v1301
        %v1390 = vunpack.c.l.s4 1983009808
        %v1391 = vunpack.c.0.s8 %v1390
        %v1392 = vlaneseq
        %v1393 = vshrl.u32 %v1392, 7
        %v1394 = vsub.s32 %v1391, %v1393
        %v1395 = vrot.slane %v1388, %v1394
        %v1396 = vcombine.low %v1304, %v1305
        %v1398 = vunpack.c.l.s4 1983009808
        %v1399 = vunpack.c.0.s8 %v1398
        %v1400 = vlaneseq
        %v1401 = vshrl.u32 %v1400, 7
        %v1402 = vsub.s32 %v1399, %v1401
        %v1403 = vrot.slane %v1396, %v1402
        %v1404 = vcombine.low %v1379, %v1387
        %v1406 = vunpack.c.l.s4 1934713408
        %v1407 = vunpack.c.0.s8 %v1406
        %v1408 = vlaneseq
        %v1409 = vshrl.u32 %v1408, 7
        %v1410 = vsub.s32 %v1407, %v1409
        %v1411 = vrot.slane %v1404, %v1410
        %v1412 = vcombine.low %v1395, %v1403
        %v1414 = vunpack.c.l.s4 1934713408
        %v1415 = vunpack.c.0.s8 %v1414
        %v1416 = vlaneseq
        %v1417 = vshrl.u32 %v1416, 7
        %v1418 = vsub.s32 %v1415, %v1417
        %v1419 = vrot.slane %v1412, %v1418
        %v1420 = vcombine.low %v1411, %v1419
        %v1421 = vcombine.high %v1411, %v1419
        %v1422 = vcombine.low %v1344, %v1351
        %v1424 = vunpack.c.l.s4 1983009808
        %v1425 = vunpack.c.0.s8 %v1424
        %v1426 = vlaneseq
        %v1427 = vshrl.u32 %v1426, 7
        %v1428 = vsub.s32 %v1425, %v1427
        %v1429 = vrot.slane %v1422, %v1428
        %v1430 = vcombine.low %v1368, %v1369
        %v1432 = vunpack.c.l.s4 1983009808
        %v1433 = vunpack.c.0.s8 %v1432
        %v1434 = vlaneseq
        %v1435 = vshrl.u32 %v1434, 7
        %v1436 = vsub.s32 %v1433, %v1435
        %v1437 = vrot.slane %v1430, %v1436
        %v1438 = vcombine.low %v1360, %v1367
        %v1440 = vunpack.c.l.s4 1983009808
        %v1441 = vunpack.c.0.s8 %v1440
        %v1442 = vlaneseq
        %v1443 = vshrl.u32 %v1442, 7
        %v1444 = vsub.s32 %v1441, %v1443
        %v1445 = vrot.slane %v1438, %v1444
        %v1446 = vcombine.low %v1370, %v1371
        %v1448 = vunpack.c.l.s4 1983009808
        %v1449 = vunpack.c.0.s8 %v1448
        %v1450 = vlaneseq
        %v1451 = vshrl.u32 %v1450, 7
        %v1452 = vsub.s32 %v1449, %v1451
        %v1453 = vrot.slane %v1446, %v1452
        %v1454 = vcombine.low %v1429, %v1437
        %v1456 = vunpack.c.l.s4 1934713408
        %v1457 = vunpack.c.0.s8 %v1456
        %v1458 = vlaneseq
        %v1459 = vshrl.u32 %v1458, 7
        %v1460 = vsub.s32 %v1457, %v1459
        %v1461 = vrot.slane %v1454, %v1460
        %v1462 = vcombine.low %v1445, %v1453
        %v1464 = vunpack.c.l.s4 1934713408
        %v1465 = vunpack.c.0.s8 %v1464
        %v1466 = vlaneseq
        %v1467 = vshrl.u32 %v1466, 7
        %v1468 = vsub.s32 %v1465, %v1467
        %v1469 = vrot.slane %v1462, %v1468
        %v1470 = vcombine.low %v1461, %v1469
        %v1471 = vcombine.high %v1461, %v1469
        %1474 = vrot.lane.b32.xlu0 %v1160, 120
        %v1475 = vpop.permute.xlu0 %1474
        %1476 = vrot.lane.b32.xlu0 %v1163, 120
        %v1477 = vpop.permute.xlu0 %1476
        %v1480 = vcombine.high %v1160, 0.0
        %v1482 = vunpack.c.l.s4 1983009808
        %v1483 = vunpack.c.0.s8 %v1482
        %v1484 = vlaneseq
        %v1485 = vshrl.u32 %v1484, 7
        %v1486 = vsub.s32 %v1483, %v1485
        %v1487 = vrot.slane %v1160, %v1486
        %v1489 = vunpack.c.l.s4 1983009808
        %v1490 = vunpack.c.0.s8 %v1489
        %v1491 = vlaneseq
        %v1492 = vshrl.u32 %v1491, 7
        %v1493 = vsub.s32 %v1490, %v1492
        %v1494 = vrot.slane %v1480, %v1493
        %v1495 = vcombine.high %v1475, 0.0
        %v1497 = vunpack.c.l.s4 1983009808
        %v1498 = vunpack.c.0.s8 %v1497
        %v1499 = vlaneseq
        %v1500 = vshrl.u32 %v1499, 7
        %v1501 = vsub.s32 %v1498, %v1500
        %v1502 = vrot.slane %v1475, %v1501
        %v1504 = vunpack.c.l.s4 1983009808
        %v1505 = vunpack.c.0.s8 %v1504
        %v1506 = vlaneseq
        %v1507 = vshrl.u32 %v1506, 7
        %v1508 = vsub.s32 %v1505, %v1507
        %v1509 = vrot.slane %v1495, %v1508
        %v1510 = vcombine.low %v1487, %v1502
        %v1511 = vcombine.high %v1487, %v1502
        %v1513 = vunpack.c.l.s4 1934713408
        %v1514 = vunpack.c.0.s8 %v1513
        %v1515 = vlaneseq
        %v1516 = vshrl.u32 %v1515, 7
        %v1517 = vsub.s32 %v1514, %v1516
        %v1518 = vrot.slane %v1510, %v1517
        %v1520 = vunpack.c.l.s4 1934713408
        %v1521 = vunpack.c.0.s8 %v1520
        %v1522 = vlaneseq
        %v1523 = vshrl.u32 %v1522, 7
        %v1524 = vsub.s32 %v1521, %v1523
        %v1525 = vrot.slane %v1511, %v1524
        %v1526 = vcombine.low %v1494, %v1509
        %v1527 = vcombine.high %v1494, %v1509
        %v1529 = vunpack.c.l.s4 1934713408
        %v1530 = vunpack.c.0.s8 %v1529
        %v1531 = vlaneseq
        %v1532 = vshrl.u32 %v1531, 7
        %v1533 = vsub.s32 %v1530, %v1532
        %v1534 = vrot.slane %v1526, %v1533
        %v1536 = vunpack.c.l.s4 1934713408
        %v1537 = vunpack.c.0.s8 %v1536
        %v1538 = vlaneseq
        %v1539 = vshrl.u32 %v1538, 7
        %v1540 = vsub.s32 %v1537, %v1539
        %v1541 = vrot.slane %v1527, %v1540
        %v1542 = vcombine.high %v1518, 0.0
        %v1543 = vcombine.high %v1525, 0.0
        %v1544 = vcombine.high %v1534, 0.0
        %v1545 = vcombine.high %v1541, 0.0
        %v1546 = vcombine.high %v1163, 0.0
        %v1548 = vunpack.c.l.s4 1983009808
        %v1549 = vunpack.c.0.s8 %v1548
        %v1550 = vlaneseq
        %v1551 = vshrl.u32 %v1550, 7
        %v1552 = vsub.s32 %v1549, %v1551
        %v1553 = vrot.slane %v1163, %v1552
        %v1555 = vunpack.c.l.s4 1983009808
        %v1556 = vunpack.c.0.s8 %v1555
        %v1557 = vlaneseq
        %v1558 = vshrl.u32 %v1557, 7
        %v1559 = vsub.s32 %v1556, %v1558
        %v1560 = vrot.slane %v1546, %v1559
        %v1561 = vcombine.high %v1477, 0.0
        %v1563 = vunpack.c.l.s4 1983009808
        %v1564 = vunpack.c.0.s8 %v1563
        %v1565 = vlaneseq
        %v1566 = vshrl.u32 %v1565, 7
        %v1567 = vsub.s32 %v1564, %v1566
        %v1568 = vrot.slane %v1477, %v1567
        %v1570 = vunpack.c.l.s4 1983009808
        %v1571 = vunpack.c.0.s8 %v1570
        %v1572 = vlaneseq
        %v1573 = vshrl.u32 %v1572, 7
        %v1574 = vsub.s32 %v1571, %v1573
        %v1575 = vrot.slane %v1561, %v1574
        %v1576 = vcombine.low %v1553, %v1568
        %v1577 = vcombine.high %v1553, %v1568
        %v1579 = vunpack.c.l.s4 1934713408
        %v1580 = vunpack.c.0.s8 %v1579
        %v1581 = vlaneseq
        %v1582 = vshrl.u32 %v1581, 7
        %v1583 = vsub.s32 %v1580, %v1582
        %v1584 = vrot.slane %v1576, %v1583
        %v1586 = vunpack.c.l.s4 1934713408
        %v1587 = vunpack.c.0.s8 %v1586
        %v1588 = vlaneseq
        %v1589 = vshrl.u32 %v1588, 7
        %v1590 = vsub.s32 %v1587, %v1589
        %v1591 = vrot.slane %v1577, %v1590
        %v1592 = vcombine.low %v1560, %v1575
        %v1593 = vcombine.high %v1560, %v1575
        %v1595 = vunpack.c.l.s4 1934713408
        %v1596 = vunpack.c.0.s8 %v1595
        %v1597 = vlaneseq
        %v1598 = vshrl.u32 %v1597, 7
        %v1599 = vsub.s32 %v1596, %v1598
        %v1600 = vrot.slane %v1592, %v1599
        %v1602 = vunpack.c.l.s4 1934713408
        %v1603 = vunpack.c.0.s8 %v1602
        %v1604 = vlaneseq
        %v1605 = vshrl.u32 %v1604, 7
        %v1606 = vsub.s32 %v1603, %v1605
        %v1607 = vrot.slane %v1593, %v1606
        %v1608 = vcombine.high %v1584, 0.0
        %v1609 = vcombine.high %v1591, 0.0
        %v1610 = vcombine.high %v1600, 0.0
        %v1611 = vcombine.high %v1607, 0.0
        %v1612 = vcombine.low %v1518, %v1525
        %v1614 = vunpack.c.l.s4 1983009808
        %v1615 = vunpack.c.0.s8 %v1614
        %v1616 = vlaneseq
        %v1617 = vshrl.u32 %v1616, 7
        %v1618 = vsub.s32 %v1615, %v1617
        %v1619 = vrot.slane %v1612, %v1618
        %v1620 = vcombine.low %v1542, %v1543
        %v1622 = vunpack.c.l.s4 1983009808
        %v1623 = vunpack.c.0.s8 %v1622
        %v1624 = vlaneseq
        %v1625 = vshrl.u32 %v1624, 7
        %v1626 = vsub.s32 %v1623, %v1625
        %v1627 = vrot.slane %v1620, %v1626
        %v1628 = vcombine.low %v1534, %v1541
        %v1630 = vunpack.c.l.s4 1983009808
        %v1631 = vunpack.c.0.s8 %v1630
        %v1632 = vlaneseq
        %v1633 = vshrl.u32 %v1632, 7
        %v1634 = vsub.s32 %v1631, %v1633
        %v1635 = vrot.slane %v1628, %v1634
        %v1636 = vcombine.low %v1544, %v1545
        %v1638 = vunpack.c.l.s4 1983009808
        %v1639 = vunpack.c.0.s8 %v1638
        %v1640 = vlaneseq
        %v1641 = vshrl.u32 %v1640, 7
        %v1642 = vsub.s32 %v1639, %v1641
        %v1643 = vrot.slane %v1636, %v1642
        %v1644 = vcombine.low %v1619, %v1627
        %v1646 = vunpack.c.l.s4 1934713408
        %v1647 = vunpack.c.0.s8 %v1646
        %v1648 = vlaneseq
        %v1649 = vshrl.u32 %v1648, 7
        %v1650 = vsub.s32 %v1647, %v1649
        %v1651 = vrot.slane %v1644, %v1650
        %v1652 = vcombine.low %v1635, %v1643
        %v1654 = vunpack.c.l.s4 1934713408
        %v1655 = vunpack.c.0.s8 %v1654
        %v1656 = vlaneseq
        %v1657 = vshrl.u32 %v1656, 7
        %v1658 = vsub.s32 %v1655, %v1657
        %v1659 = vrot.slane %v1652, %v1658
        %v1660 = vcombine.low %v1651, %v1659
        %v1661 = vcombine.high %v1651, %v1659
        %v1662 = vcombine.low %v1584, %v1591
        %v1664 = vunpack.c.l.s4 1983009808
        %v1665 = vunpack.c.0.s8 %v1664
        %v1666 = vlaneseq
        %v1667 = vshrl.u32 %v1666, 7
        %v1668 = vsub.s32 %v1665, %v1667
        %v1669 = vrot.slane %v1662, %v1668
        %v1670 = vcombine.low %v1608, %v1609
        %v1672 = vunpack.c.l.s4 1983009808
        %v1673 = vunpack.c.0.s8 %v1672
        %v1674 = vlaneseq
        %v1675 = vshrl.u32 %v1674, 7
        %v1676 = vsub.s32 %v1673, %v1675
        %v1677 = vrot.slane %v1670, %v1676
        %v1678 = vcombine.low %v1600, %v1607
        %v1680 = vunpack.c.l.s4 1983009808
        %v1681 = vunpack.c.0.s8 %v1680
        %v1682 = vlaneseq
        %v1683 = vshrl.u32 %v1682, 7
        %v1684 = vsub.s32 %v1681, %v1683
        %v1685 = vrot.slane %v1678, %v1684
        %v1686 = vcombine.low %v1610, %v1611
        %v1688 = vunpack.c.l.s4 1983009808
        %v1689 = vunpack.c.0.s8 %v1688
        %v1690 = vlaneseq
        %v1691 = vshrl.u32 %v1690, 7
        %v1692 = vsub.s32 %v1689, %v1691
        %v1693 = vrot.slane %v1686, %v1692
        %v1694 = vcombine.low %v1669, %v1677
        %v1696 = vunpack.c.l.s4 1934713408
        %v1697 = vunpack.c.0.s8 %v1696
        %v1698 = vlaneseq
        %v1699 = vshrl.u32 %v1698, 7
        %v1700 = vsub.s32 %v1697, %v1699
        %v1701 = vrot.slane %v1694, %v1700
        %v1702 = vcombine.low %v1685, %v1693
        %v1704 = vunpack.c.l.s4 1934713408
        %v1705 = vunpack.c.0.s8 %v1704
        %v1706 = vlaneseq
        %v1707 = vshrl.u32 %v1706, 7
        %v1708 = vsub.s32 %v1705, %v1707
        %v1709 = vrot.slane %v1702, %v1708
        %v1710 = vcombine.low %v1701, %v1709
        %v1711 = vcombine.high %v1701, %v1709
        %1714 = vrot.lane.b32.xlu0 %v1217, 120
        %v1715 = vpop.permute.xlu0 %1714
        %1716 = vrot.lane.b32.xlu0 %v1220, 120
        %v1717 = vpop.permute.xlu0 %1716
        %v1720 = vcombine.high %v1217, 0.0
        %v1722 = vunpack.c.l.s4 1983009808
        %v1723 = vunpack.c.0.s8 %v1722
        %v1724 = vlaneseq
        %v1725 = vshrl.u32 %v1724, 7
        %v1726 = vsub.s32 %v1723, %v1725
        %v1727 = vrot.slane %v1217, %v1726
        %v1729 = vunpack.c.l.s4 1983009808
        %v1730 = vunpack.c.0.s8 %v1729
        %v1731 = vlaneseq
        %v1732 = vshrl.u32 %v1731, 7
        %v1733 = vsub.s32 %v1730, %v1732
        %v1734 = vrot.slane %v1720, %v1733
        %v1735 = vcombine.high %v1715, 0.0
        %v1737 = vunpack.c.l.s4 1983009808
        %v1738 = vunpack.c.0.s8 %v1737
        %v1739 = vlaneseq
        %v1740 = vshrl.u32 %v1739, 7
        %v1741 = vsub.s32 %v1738, %v1740
        %v1742 = vrot.slane %v1715, %v1741
        %v1744 = vunpack.c.l.s4 1983009808
        %v1745 = vunpack.c.0.s8 %v1744
        %v1746 = vlaneseq
        %v1747 = vshrl.u32 %v1746, 7
        %v1748 = vsub.s32 %v1745, %v1747
        %v1749 = vrot.slane %v1735, %v1748
        %v1750 = vcombine.low %v1727, %v1742
        %v1751 = vcombine.high %v1727, %v1742
        %v1753 = vunpack.c.l.s4 1934713408
        %v1754 = vunpack.c.0.s8 %v1753
        %v1755 = vlaneseq
        %v1756 = vshrl.u32 %v1755, 7
        %v1757 = vsub.s32 %v1754, %v1756
        %v1758 = vrot.slane %v1750, %v1757
        %v1760 = vunpack.c.l.s4 1934713408
        %v1761 = vunpack.c.0.s8 %v1760
        %v1762 = vlaneseq
        %v1763 = vshrl.u32 %v1762, 7
        %v1764 = vsub.s32 %v1761, %v1763
        %v1765 = vrot.slane %v1751, %v1764
        %v1766 = vcombine.low %v1734, %v1749
        %v1767 = vcombine.high %v1734, %v1749
        %v1769 = vunpack.c.l.s4 1934713408
        %v1770 = vunpack.c.0.s8 %v1769
        %v1771 = vlaneseq
        %v1772 = vshrl.u32 %v1771, 7
        %v1773 = vsub.s32 %v1770, %v1772
        %v1774 = vrot.slane %v1766, %v1773
        %v1776 = vunpack.c.l.s4 1934713408
        %v1777 = vunpack.c.0.s8 %v1776
        %v1778 = vlaneseq
        %v1779 = vshrl.u32 %v1778, 7
        %v1780 = vsub.s32 %v1777, %v1779
        %v1781 = vrot.slane %v1767, %v1780
        %v1782 = vcombine.high %v1758, 0.0
        %v1783 = vcombine.high %v1765, 0.0
        %v1784 = vcombine.high %v1774, 0.0
        %v1785 = vcombine.high %v1781, 0.0
        %v1786 = vcombine.high %v1220, 0.0
        %v1788 = vunpack.c.l.s4 1983009808
        %v1789 = vunpack.c.0.s8 %v1788
        %v1790 = vlaneseq
        %v1791 = vshrl.u32 %v1790, 7
        %v1792 = vsub.s32 %v1789, %v1791
        %v1793 = vrot.slane %v1220, %v1792
        %v1795 = vunpack.c.l.s4 1983009808
        %v1796 = vunpack.c.0.s8 %v1795
        %v1797 = vlaneseq
        %v1798 = vshrl.u32 %v1797, 7
        %v1799 = vsub.s32 %v1796, %v1798
        %v1800 = vrot.slane %v1786, %v1799
        %v1801 = vcombine.high %v1717, 0.0
        %v1803 = vunpack.c.l.s4 1983009808
        %v1804 = vunpack.c.0.s8 %v1803
        %v1805 = vlaneseq
        %v1806 = vshrl.u32 %v1805, 7
        %v1807 = vsub.s32 %v1804, %v1806
        %v1808 = vrot.slane %v1717, %v1807
        %v1810 = vunpack.c.l.s4 1983009808
        %v1811 = vunpack.c.0.s8 %v1810
        %v1812 = vlaneseq
        %v1813 = vshrl.u32 %v1812, 7
        %v1814 = vsub.s32 %v1811, %v1813
        %v1815 = vrot.slane %v1801, %v1814
        %v1816 = vcombine.low %v1793, %v1808
        %v1817 = vcombine.high %v1793, %v1808
        %v1819 = vunpack.c.l.s4 1934713408
        %v1820 = vunpack.c.0.s8 %v1819
        %v1821 = vlaneseq
        %v1822 = vshrl.u32 %v1821, 7
        %v1823 = vsub.s32 %v1820, %v1822
        %v1824 = vrot.slane %v1816, %v1823
        %v1826 = vunpack.c.l.s4 1934713408
        %v1827 = vunpack.c.0.s8 %v1826
        %v1828 = vlaneseq
        %v1829 = vshrl.u32 %v1828, 7
        %v1830 = vsub.s32 %v1827, %v1829
        %v1831 = vrot.slane %v1817, %v1830
        %v1832 = vcombine.low %v1800, %v1815
        %v1833 = vcombine.high %v1800, %v1815
        %v1835 = vunpack.c.l.s4 1934713408
        %v1836 = vunpack.c.0.s8 %v1835
        %v1837 = vlaneseq
        %v1838 = vshrl.u32 %v1837, 7
        %v1839 = vsub.s32 %v1836, %v1838
        %v1840 = vrot.slane %v1832, %v1839
        %v1842 = vunpack.c.l.s4 1934713408
        %v1843 = vunpack.c.0.s8 %v1842
        %v1844 = vlaneseq
        %v1845 = vshrl.u32 %v1844, 7
        %v1846 = vsub.s32 %v1843, %v1845
        %v1847 = vrot.slane %v1833, %v1846
        %v1848 = vcombine.high %v1824, 0.0
        %v1849 = vcombine.high %v1831, 0.0
        %v1850 = vcombine.high %v1840, 0.0
        %v1851 = vcombine.high %v1847, 0.0
        %v1852 = vcombine.low %v1758, %v1765
        %v1854 = vunpack.c.l.s4 1983009808
        %v1855 = vunpack.c.0.s8 %v1854
        %v1856 = vlaneseq
        %v1857 = vshrl.u32 %v1856, 7
        %v1858 = vsub.s32 %v1855, %v1857
        %v1859 = vrot.slane %v1852, %v1858
        %v1860 = vcombine.low %v1782, %v1783
        %v1862 = vunpack.c.l.s4 1983009808
        %v1863 = vunpack.c.0.s8 %v1862
        %v1864 = vlaneseq
        %v1865 = vshrl.u32 %v1864, 7
        %v1866 = vsub.s32 %v1863, %v1865
        %v1867 = vrot.slane %v1860, %v1866
        %v1868 = vcombine.low %v1774, %v1781
        %v1870 = vunpack.c.l.s4 1983009808
        %v1871 = vunpack.c.0.s8 %v1870
        %v1872 = vlaneseq
        %v1873 = vshrl.u32 %v1872, 7
        %v1874 = vsub.s32 %v1871, %v1873
        %v1875 = vrot.slane %v1868, %v1874
        %v1876 = vcombine.low %v1784, %v1785
        %v1878 = vunpack.c.l.s4 1983009808
        %v1879 = vunpack.c.0.s8 %v1878
        %v1880 = vlaneseq
        %v1881 = vshrl.u32 %v1880, 7
        %v1882 = vsub.s32 %v1879, %v1881
        %v1883 = vrot.slane %v1876, %v1882
        %v1884 = vcombine.low %v1859, %v1867
        %v1886 = vunpack.c.l.s4 1934713408
        %v1887 = vunpack.c.0.s8 %v1886
        %v1888 = vlaneseq
        %v1889 = vshrl.u32 %v1888, 7
        %v1890 = vsub.s32 %v1887, %v1889
        %v1891 = vrot.slane %v1884, %v1890
        %v1892 = vcombine.low %v1875, %v1883
        %v1894 = vunpack.c.l.s4 1934713408
        %v1895 = vunpack.c.0.s8 %v1894
        %v1896 = vlaneseq
        %v1897 = vshrl.u32 %v1896, 7
        %v1898 = vsub.s32 %v1895, %v1897
        %v1899 = vrot.slane %v1892, %v1898
        %v1900 = vcombine.low %v1891, %v1899
        %v1901 = vcombine.high %v1891, %v1899
        %v1902 = vcombine.low %v1824, %v1831
        %v1904 = vunpack.c.l.s4 1983009808
        %v1905 = vunpack.c.0.s8 %v1904
        %v1906 = vlaneseq
        %v1907 = vshrl.u32 %v1906, 7
        %v1908 = vsub.s32 %v1905, %v1907
        %v1909 = vrot.slane %v1902, %v1908
        %v1910 = vcombine.low %v1848, %v1849
        %v1912 = vunpack.c.l.s4 1983009808
        %v1913 = vunpack.c.0.s8 %v1912
        %v1914 = vlaneseq
        %v1915 = vshrl.u32 %v1914, 7
        %v1916 = vsub.s32 %v1913, %v1915
        %v1917 = vrot.slane %v1910, %v1916
        %v1918 = vcombine.low %v1840, %v1847
        %v1920 = vunpack.c.l.s4 1983009808
        %v1921 = vunpack.c.0.s8 %v1920
        %v1922 = vlaneseq
        %v1923 = vshrl.u32 %v1922, 7
        %v1924 = vsub.s32 %v1921, %v1923
        %v1925 = vrot.slane %v1918, %v1924
        %v1926 = vcombine.low %v1850, %v1851
        %v1928 = vunpack.c.l.s4 1983009808
        %v1929 = vunpack.c.0.s8 %v1928
        %v1930 = vlaneseq
        %v1931 = vshrl.u32 %v1930, 7
        %v1932 = vsub.s32 %v1929, %v1931
        %v1933 = vrot.slane %v1926, %v1932
        %v1934 = vcombine.low %v1909, %v1917
        %v1936 = vunpack.c.l.s4 1934713408
        %v1937 = vunpack.c.0.s8 %v1936
        %v1938 = vlaneseq
        %v1939 = vshrl.u32 %v1938, 7
        %v1940 = vsub.s32 %v1937, %v1939
        %v1941 = vrot.slane %v1934, %v1940
        %v1942 = vcombine.low %v1925, %v1933
        %v1944 = vunpack.c.l.s4 1934713408
        %v1945 = vunpack.c.0.s8 %v1944
        %v1946 = vlaneseq
        %v1947 = vshrl.u32 %v1946, 7
        %v1948 = vsub.s32 %v1945, %v1947
        %v1949 = vrot.slane %v1942, %v1948
        %v1950 = vcombine.low %v1941, %v1949
        %v1951 = vcombine.high %v1941, %v1949
        %v1952 = vpack.c.bf16 %v1420, %v1420
        %v1953 = vpack.c.bf16 %v1470, %v1470
        %v1954 = vpack.c.bf16 %v1421, %v1421
        %v1955 = vpack.c.bf16 %v1471, %v1471
        %v1956 = vpack.c.bf16 %v1660, %v1660
        %v1957 = vpack.c.bf16 %v1710, %v1710
        %v1958 = vpack.c.bf16 %v1661, %v1661
        %v1959 = vpack.c.bf16 %v1711, %v1711
        %vm1960 = vcmask 64512
        %v1962 = vsel %vm1960, %v1952, 0
        %v1965 = vsel %vm1960, %v1956, 0
        %1967 = vmatprep.subr.bf16.mxu0 0
        %1968 = vmatpush1.bf16.xpose.msra.mxu0 %v1965
        %1969 = vmatprep.subr.bf16.mxu0 0
        %1970 = vmatpush1.bf16.xpose.msra.mxu0 0
        %1971 = vmatprep.subr.bf16.mxu0 0
        %1972 = vmatpush1.bf16.xpose.msra.mxu0 0
        %1973 = vmatprep.subr.bf16.mxu0 0
        %1974 = vmatpush1.bf16.xpose.msra.mxu0 0
        %1975 = vmatprep.subr.bf16.mxu0 0
        %1976 = vmatpush1.bf16.xpose.msra.mxu0 0
        %1977 = vmatprep.subr.bf16.mxu0 0
        %1978 = vmatpush1.bf16.xpose.msra.mxu0 0
        %1979 = vmatprep.subr.bf16.mxu0 0
        %1980 = vmatpush1.bf16.xpose.msra.mxu0 0
        %1981 = vmatprep.subr.bf16.mxu0 0
        %1982 = vmatpush1.bf16.xpose.msra.mxu0 0
        %1983 = vmatprep.subr.bf16.mxu0 0
        %1984 = vmatpush1.bf16.xpose.msra.mxu0 0
        %1985 = vmatprep.subr.bf16.mxu0 0
        %1986 = vmatpush1.bf16.xpose.msra.mxu0 0
        %1987 = vmatprep.subr.bf16.mxu0 0
        %1988 = vmatpush1.bf16.xpose.msra.mxu0 0
        %1989 = vmatprep.subr.bf16.mxu0 0
        %1990 = vmatpush1.bf16.xpose.msra.mxu0 0
        %1991 = vmatprep.subr.bf16.mxu0 0
        %1992 = vmatpush1.bf16.xpose.msra.mxu0 0
        %1993 = vmatprep.subr.bf16.mxu0 0
        %1994 = vmatpush1.bf16.xpose.msra.mxu0 0
        %1995 = vmatprep.subr.bf16.mxu0 0
        %1996 = vmatpush1.bf16.xpose.msra.mxu0 0
        %1997 = vmatprep.subr.bf16.mxu0 0
        %1998 = vmatpush1.bf16.xpose.msra.mxu0 0
        %1999 = vmatprep.mubr.bf16.mxu0 0
        %2000 = vmatmul.mubr.bf16.gmra.mrb[0].mxu0 %v1962
        %v2001 = vpop.f32.mrb[0].mxu0
        %v2002 = vadd.f32 0.0, %v2001
        %v2003 = vpop.f32.mrb[0].mxu0
        %v2004 = vpop.f32.mrb[0].mxu0
        %v2005 = vpop.f32.mrb[0].mxu0
        %2006 = vdwg.mxu0
        %v2008 = vsel %vm1960, %v1953, 0
        %v2011 = vsel %vm1960, %v1957, 0
        %2013 = vmatprep.subr.bf16.mxu0 0
        %2014 = vmatpush1.bf16.xpose.msra.mxu0 %v2011
        %2015 = vmatprep.subr.bf16.mxu0 0
        %2016 = vmatpush1.bf16.xpose.msra.mxu0 0
        %2017 = vmatprep.subr.bf16.mxu0 0
        %2018 = vmatpush1.bf16.xpose.msra.mxu0 0
        %2019 = vmatprep.subr.bf16.mxu0 0
        %2020 = vmatpush1.bf16.xpose.msra.mxu0 0
        %2021 = vmatprep.subr.bf16.mxu0 0
        %2022 = vmatpush1.bf16.xpose.msra.mxu0 0
        %2023 = vmatprep.subr.bf16.mxu0 0
        %2024 = vmatpush1.bf16.xpose.msra.mxu0 0
        %2025 = vmatprep.subr.bf16.mxu0 0
        %2026 = vmatpush1.bf16.xpose.msra.mxu0 0
        %2027 = vmatprep.subr.bf16.mxu0 0
        %2028 = vmatpush1.bf16.xpose.msra.mxu0 0
        %2029 = vmatprep.subr.bf16.mxu0 0
        %2030 = vmatpush1.bf16.xpose.msra.mxu0 0
        %2031 = vmatprep.subr.bf16.mxu0 0
        %2032 = vmatpush1.bf16.xpose.msra.mxu0 0
        %2033 = vmatprep.subr.bf16.mxu0 0
        %2034 = vmatpush1.bf16.xpose.msra.mxu0 0
        %2035 = vmatprep.subr.bf16.mxu0 0
        %2036 = vmatpush1.bf16.xpose.msra.mxu0 0
        %2037 = vmatprep.subr.bf16.mxu0 0
        %2038 = vmatpush1.bf16.xpose.msra.mxu0 0
        %2039 = vmatprep.subr.bf16.mxu0 0
        %2040 = vmatpush1.bf16.xpose.msra.mxu0 0
        %2041 = vmatprep.subr.bf16.mxu0 0
        %2042 = vmatpush1.bf16.xpose.msra.mxu0 0
        %2043 = vmatprep.subr.bf16.mxu0 0
        %2044 = vmatpush1.bf16.xpose.msra.mxu0 0
        %2045 = vmatprep.mubr.bf16.mxu0 0
        %2046 = vmatmul.mubr.bf16.gmra.mrb[0].mxu0 %v2008
        %v2047 = vpop.f32.mrb[0].mxu0
        %v2048 = vadd.f32 0.0, %v2047
        %v2049 = vpop.f32.mrb[0].mxu0
        %v2050 = vpop.f32.mrb[0].mxu0
        %v2051 = vpop.f32.mrb[0].mxu0
        %2052 = vdwg.mxu0
        %v2054 = vsel %vm1960, %v1954, 0
        %v2057 = vsel %vm1960, %v1958, 0
        %2059 = vmatprep.subr.bf16.mxu0 0
        %2060 = vmatpush1.bf16.xpose.msra.mxu0 %v2057
        %2061 = vmatprep.subr.bf16.mxu0 0
        %2062 = vmatpush1.bf16.xpose.msra.mxu0 0
        %2063 = vmatprep.subr.bf16.mxu0 0
        %2064 = vmatpush1.bf16.xpose.msra.mxu0 0
        %2065 = vmatprep.subr.bf16.mxu0 0
        %2066 = vmatpush1.bf16.xpose.msra.mxu0 0
        %2067 = vmatprep.subr.bf16.mxu0 0
        %2068 = vmatpush1.bf16.xpose.msra.mxu0 0
        %2069 = vmatprep.subr.bf16.mxu0 0
        %2070 = vmatpush1.bf16.xpose.msra.mxu0 0
        %2071 = vmatprep.subr.bf16.mxu0 0
        %2072 = vmatpush1.bf16.xpose.msra.mxu0 0
        %2073 = vmatprep.subr.bf16.mxu0 0
        %2074 = vmatpush1.bf16.xpose.msra.mxu0 0
        %2075 = vmatprep.subr.bf16.mxu0 0
        %2076 = vmatpush1.bf16.xpose.msra.mxu0 0
        %2077 = vmatprep.subr.bf16.mxu0 0
        %2078 = vmatpush1.bf16.xpose.msra.mxu0 0
        %2079 = vmatprep.subr.bf16.mxu0 0
        %2080 = vmatpush1.bf16.xpose.msra.mxu0 0
        %2081 = vmatprep.subr.bf16.mxu0 0
        %2082 = vmatpush1.bf16.xpose.msra.mxu0 0
        %2083 = vmatprep.subr.bf16.mxu0 0
        %2084 = vmatpush1.bf16.xpose.msra.mxu0 0
        %2085 = vmatprep.subr.bf16.mxu0 0
        %2086 = vmatpush1.bf16.xpose.msra.mxu0 0
        %2087 = vmatprep.subr.bf16.mxu0 0
        %2088 = vmatpush1.bf16.xpose.msra.mxu0 0
        %2089 = vmatprep.subr.bf16.mxu0 0
        %2090 = vmatpush1.bf16.xpose.msra.mxu0 0
        %2091 = vmatprep.mubr.bf16.mxu0 0
        %2092 = vmatmul.mubr.bf16.gmra.mrb[0].mxu0 %v2054
        %v2093 = vpop.f32.mrb[0].mxu0
        %v2094 = vadd.f32 0.0, %v2093
        %v2095 = vpop.f32.mrb[0].mxu0
        %v2096 = vpop.f32.mrb[0].mxu0
        %v2097 = vpop.f32.mrb[0].mxu0
        %2098 = vdwg.mxu0
        %v2100 = vsel %vm1960, %v1955, 0
        %v2103 = vsel %vm1960, %v1959, 0
        %2105 = vmatprep.subr.bf16.mxu0 0
        %2106 = vmatpush1.bf16.xpose.msra.mxu0 %v2103
        %2107 = vmatprep.subr.bf16.mxu0 0
        %2108 = vmatpush1.bf16.xpose.msra.mxu0 0
        %2109 = vmatprep.subr.bf16.mxu0 0
        %2110 = vmatpush1.bf16.xpose.msra.mxu0 0
        %2111 = vmatprep.subr.bf16.mxu0 0
        %2112 = vmatpush1.bf16.xpose.msra.mxu0 0
        %2113 = vmatprep.subr.bf16.mxu0 0
        %2114 = vmatpush1.bf16.xpose.msra.mxu0 0
        %2115 = vmatprep.subr.bf16.mxu0 0
        %2116 = vmatpush1.bf16.xpose.msra.mxu0 0
        %2117 = vmatprep.subr.bf16.mxu0 0
        %2118 = vmatpush1.bf16.xpose.msra.mxu0 0
        %2119 = vmatprep.subr.bf16.mxu0 0
        %2120 = vmatpush1.bf16.xpose.msra.mxu0 0
        %2121 = vmatprep.subr.bf16.mxu0 0
        %2122 = vmatpush1.bf16.xpose.msra.mxu0 0
        %2123 = vmatprep.subr.bf16.mxu0 0
        %2124 = vmatpush1.bf16.xpose.msra.mxu0 0
        %2125 = vmatprep.subr.bf16.mxu0 0
        %2126 = vmatpush1.bf16.xpose.msra.mxu0 0
        %2127 = vmatprep.subr.bf16.mxu0 0
        %2128 = vmatpush1.bf16.xpose.msra.mxu0 0
        %2129 = vmatprep.subr.bf16.mxu0 0
        %2130 = vmatpush1.bf16.xpose.msra.mxu0 0
        %2131 = vmatprep.subr.bf16.mxu0 0
        %2132 = vmatpush1.bf16.xpose.msra.mxu0 0
        %2133 = vmatprep.subr.bf16.mxu0 0
        %2134 = vmatpush1.bf16.xpose.msra.mxu0 0
        %2135 = vmatprep.subr.bf16.mxu0 0
        %2136 = vmatpush1.bf16.xpose.msra.mxu0 0
        %2137 = vmatprep.mubr.bf16.mxu0 0
        %2138 = vmatmul.mubr.bf16.gmra.mrb[0].mxu0 %v2100
        %v2139 = vpop.f32.mrb[0].mxu0
        %v2140 = vadd.f32 0.0, %v2139
        %v2141 = vpop.f32.mrb[0].mxu0
        %v2142 = vpop.f32.mrb[0].mxu0
        %v2143 = vpop.f32.mrb[0].mxu0
        %2144 = vdwg.mxu0
        %v2145 = vsel %vm1227, 1, 0
        %vm2146 = vcmp.eq.s32.totalorder %v2145, 1
        %v2147 = vsel %vm2146, -1e+30, %v2002
        %v2148 = vsel %vm2146, -1e+30, %v2048
        %v2149 = vsel %vm2146, -1e+30, %v2094
        %v2150 = vsel %vm2146, -1e+30, %v2140
        %v2151 = vsel %vm1960, %v2147, -inf
        %2152 = vmax.xlane.f32.xlu0 %v2151
        %v2153 = vpop.xlane.xlu0 %2152
        %v2154 = vsel %vm1960, %v2148, -inf
        %2155 = vmax.xlane.f32.xlu0 %v2154
        %v2156 = vpop.xlane.xlu0 %2155
        %v2157 = vsel %vm1960, %v2149, -inf
        %2158 = vmax.xlane.f32.xlu0 %v2157
        %v2159 = vpop.xlane.xlu0 %2158
        %v2160 = vsel %vm1960, %v2150, -inf
        %2161 = vmax.xlane.f32.xlu0 %v2160
        %v2162 = vpop.xlane.xlu0 %2161
        %v2163 = vsub.f32 %v2147, %v2153
        %v2164 = vsub.f32 %v2148, %v2156
        %v2165 = vsub.f32 %v2149, %v2159
        %v2166 = vsub.f32 %v2150, %v2162
        %v2167 = vmul.f32 %v2163, 1.442695
        %v2168 = vpow.pop %v2167
        %v2169 = vmul.f32 %v2164, 1.442695
        %v2170 = vpow.pop %v2169
        %v2171 = vmul.f32 %v2165, 1.442695
        %v2172 = vpow.pop %v2171
        %v2173 = vmul.f32 %v2166, 1.442695
        %v2174 = vpow.pop %v2173
        %v2175 = vsel %vm1960, %v2168, 0.0
        %2176 = vadd.xlane.f32.xlu0 %v2175
        %v2177 = vpop.xlane.xlu0 %2176
        %v2178 = vsel %vm1960, %v2170, 0.0
        %2179 = vadd.xlane.f32.xlu0 %v2178
        %v2180 = vpop.xlane.xlu0 %2179
        %v2181 = vsel %vm1960, %v2172, 0.0
        %2182 = vadd.xlane.f32.xlu0 %v2181
        %v2183 = vpop.xlane.xlu0 %2182
        %v2184 = vsel %vm1960, %v2174, 0.0
        %2185 = vadd.xlane.f32.xlu0 %v2184
        %v2186 = vpop.xlane.xlu0 %2185
        %v2187 = vrcp.pop %v2177
        %v2188 = vrcp.pop %v2180
        %v2189 = vrcp.pop %v2183
        %v2190 = vrcp.pop %v2186
        %v2191 = vmul.f32 %v2168, %v2187
        %v2192 = vmul.f32 %v2170, %v2188
        %v2193 = vmul.f32 %v2172, %v2189
        %v2194 = vmul.f32 %v2174, %v2190
        %v2195 = vpack.c.bf16 %v2191, %v2191
        %v2196 = vpack.c.bf16 %v2192, %v2192
        %v2197 = vpack.c.bf16 %v2193, %v2193
        %v2198 = vpack.c.bf16 %v2194, %v2194
        %v2199 = vpack.c.bf16 %v1900, %v1900
        %v2200 = vpack.c.bf16 %v1950, %v1950
        %v2201 = vpack.c.bf16 %v1901, %v1901
        %v2202 = vpack.c.bf16 %v1951, %v1951
        %v2204 = vsel %vm1960, %v2195, 0
        %vm2206 = vcmask 1043456
        %v2208 = vsel %vm2206, %v2199, 0
        %2210 = vmatprep.subr.bf16.mxu0 0
        %2211 = vmatpush1.bf16.msra.mxu0 %v2208
        %2212 = vmatprep.subr.bf16.mxu0 0
        %2213 = vmatpush1.bf16.msra.mxu0 0
        %2214 = vmatprep.subr.bf16.mxu0 0
        %2215 = vmatpush1.bf16.msra.mxu0 0
        %2216 = vmatprep.subr.bf16.mxu0 0
        %2217 = vmatpush1.bf16.msra.mxu0 0
        %2218 = vmatprep.subr.bf16.mxu0 0
        %2219 = vmatpush1.bf16.msra.mxu0 0
        %2220 = vmatprep.subr.bf16.mxu0 0
        %2221 = vmatpush1.bf16.msra.mxu0 0
        %2222 = vmatprep.subr.bf16.mxu0 0
        %2223 = vmatpush1.bf16.msra.mxu0 0
        %2224 = vmatprep.subr.bf16.mxu0 0
        %2225 = vmatpush1.bf16.msra.mxu0 0
        %2226 = vmatprep.subr.bf16.mxu0 0
        %2227 = vmatpush1.bf16.msra.mxu0 0
        %2228 = vmatprep.subr.bf16.mxu0 0
        %2229 = vmatpush1.bf16.msra.mxu0 0
        %2230 = vmatprep.subr.bf16.mxu0 0
        %2231 = vmatpush1.bf16.msra.mxu0 0
        %2232 = vmatprep.subr.bf16.mxu0 0
        %2233 = vmatpush1.bf16.msra.mxu0 0
        %2234 = vmatprep.subr.bf16.mxu0 0
        %2235 = vmatpush1.bf16.msra.mxu0 0
        %2236 = vmatprep.subr.bf16.mxu0 0
        %2237 = vmatpush1.bf16.msra.mxu0 0
        %2238 = vmatprep.subr.bf16.mxu0 0
        %2239 = vmatpush1.bf16.msra.mxu0 0
        %2240 = vmatprep.subr.bf16.mxu0 0
        %2241 = vmatpush1.bf16.msra.mxu0 0
        %2242 = vmatprep.mubr.bf16.mxu0 0
        %2243 = vmatmul.mubr.bf16.gmra.mrb[0].mxu0 %v2204
        %v2244 = vpop.f32.mrb[0].mxu0
        %v2245 = vadd.f32 0.0, %v2244
        %v2246 = vpop.f32.mrb[0].mxu0
        %v2247 = vpop.f32.mrb[0].mxu0
        %v2248 = vpop.f32.mrb[0].mxu0
        %2249 = vdwg.mxu0
        %v2251 = vsel %vm1960, %v2196, 0
        %v2254 = vsel %vm2206, %v2200, 0
        %2256 = vmatprep.subr.bf16.mxu0 0
        %2257 = vmatpush1.bf16.msra.mxu0 %v2254
        %2258 = vmatprep.subr.bf16.mxu0 0
        %2259 = vmatpush1.bf16.msra.mxu0 0
        %2260 = vmatprep.subr.bf16.mxu0 0
        %2261 = vmatpush1.bf16.msra.mxu0 0
        %2262 = vmatprep.subr.bf16.mxu0 0
        %2263 = vmatpush1.bf16.msra.mxu0 0
        %2264 = vmatprep.subr.bf16.mxu0 0
        %2265 = vmatpush1.bf16.msra.mxu0 0
        %2266 = vmatprep.subr.bf16.mxu0 0
        %2267 = vmatpush1.bf16.msra.mxu0 0
        %2268 = vmatprep.subr.bf16.mxu0 0
        %2269 = vmatpush1.bf16.msra.mxu0 0
        %2270 = vmatprep.subr.bf16.mxu0 0
        %2271 = vmatpush1.bf16.msra.mxu0 0
        %2272 = vmatprep.subr.bf16.mxu0 0
        %2273 = vmatpush1.bf16.msra.mxu0 0
        %2274 = vmatprep.subr.bf16.mxu0 0
        %2275 = vmatpush1.bf16.msra.mxu0 0
        %2276 = vmatprep.subr.bf16.mxu0 0
        %2277 = vmatpush1.bf16.msra.mxu0 0
        %2278 = vmatprep.subr.bf16.mxu0 0
        %2279 = vmatpush1.bf16.msra.mxu0 0
        %2280 = vmatprep.subr.bf16.mxu0 0
        %2281 = vmatpush1.bf16.msra.mxu0 0
        %2282 = vmatprep.subr.bf16.mxu0 0
        %2283 = vmatpush1.bf16.msra.mxu0 0
        %2284 = vmatprep.subr.bf16.mxu0 0
        %2285 = vmatpush1.bf16.msra.mxu0 0
        %2286 = vmatprep.subr.bf16.mxu0 0
        %2287 = vmatpush1.bf16.msra.mxu0 0
        %2288 = vmatprep.mubr.bf16.mxu0 0
        %2289 = vmatmul.mubr.bf16.gmra.mrb[0].mxu0 %v2251
        %v2290 = vpop.f32.mrb[0].mxu0
        %v2291 = vadd.f32 0.0, %v2290
        %v2292 = vpop.f32.mrb[0].mxu0
        %v2293 = vpop.f32.mrb[0].mxu0
        %v2294 = vpop.f32.mrb[0].mxu0
        %2295 = vdwg.mxu0
        %v2297 = vsel %vm1960, %v2197, 0
        %v2300 = vsel %vm2206, %v2201, 0
        %2302 = vmatprep.subr.bf16.mxu0 0
        %2303 = vmatpush1.bf16.msra.mxu0 %v2300
        %2304 = vmatprep.subr.bf16.mxu0 0
        %2305 = vmatpush1.bf16.msra.mxu0 0
        %2306 = vmatprep.subr.bf16.mxu0 0
        %2307 = vmatpush1.bf16.msra.mxu0 0
        %2308 = vmatprep.subr.bf16.mxu0 0
        %2309 = vmatpush1.bf16.msra.mxu0 0
        %2310 = vmatprep.subr.bf16.mxu0 0
        %2311 = vmatpush1.bf16.msra.mxu0 0
        %2312 = vmatprep.subr.bf16.mxu0 0
        %2313 = vmatpush1.bf16.msra.mxu0 0
        %2314 = vmatprep.subr.bf16.mxu0 0
        %2315 = vmatpush1.bf16.msra.mxu0 0
        %2316 = vmatprep.subr.bf16.mxu0 0
        %2317 = vmatpush1.bf16.msra.mxu0 0
        %2318 = vmatprep.subr.bf16.mxu0 0
        %2319 = vmatpush1.bf16.msra.mxu0 0
        %2320 = vmatprep.subr.bf16.mxu0 0
        %2321 = vmatpush1.bf16.msra.mxu0 0
        %2322 = vmatprep.subr.bf16.mxu0 0
        %2323 = vmatpush1.bf16.msra.mxu0 0
        %2324 = vmatprep.subr.bf16.mxu0 0
        %2325 = vmatpush1.bf16.msra.mxu0 0
        %2326 = vmatprep.subr.bf16.mxu0 0
        %2327 = vmatpush1.bf16.msra.mxu0 0
        %2328 = vmatprep.subr.bf16.mxu0 0
        %2329 = vmatpush1.bf16.msra.mxu0 0
        %2330 = vmatprep.subr.bf16.mxu0 0
        %2331 = vmatpush1.bf16.msra.mxu0 0
        %2332 = vmatprep.subr.bf16.mxu0 0
        %2333 = vmatpush1.bf16.msra.mxu0 0
        %2334 = vmatprep.mubr.bf16.mxu0 0
        %2335 = vmatmul.mubr.bf16.gmra.mrb[0].mxu0 %v2297
        %v2336 = vpop.f32.mrb[0].mxu0
        %v2337 = vadd.f32 0.0, %v2336
        %v2338 = vpop.f32.mrb[0].mxu0
        %v2339 = vpop.f32.mrb[0].mxu0
        %v2340 = vpop.f32.mrb[0].mxu0
        %2341 = vdwg.mxu0
        %v2343 = vsel %vm1960, %v2198, 0
        %v2346 = vsel %vm2206, %v2202, 0
        %2348 = vmatprep.subr.bf16.mxu0 0
        %2349 = vmatpush1.bf16.msra.mxu0 %v2346
        %2350 = vmatprep.subr.bf16.mxu0 0
        %2351 = vmatpush1.bf16.msra.mxu0 0
        %2352 = vmatprep.subr.bf16.mxu0 0
        %2353 = vmatpush1.bf16.msra.mxu0 0
        %2354 = vmatprep.subr.bf16.mxu0 0
        %2355 = vmatpush1.bf16.msra.mxu0 0
        %2356 = vmatprep.subr.bf16.mxu0 0
        %2357 = vmatpush1.bf16.msra.mxu0 0
        %2358 = vmatprep.subr.bf16.mxu0 0
        %2359 = vmatpush1.bf16.msra.mxu0 0
        %2360 = vmatprep.subr.bf16.mxu0 0
        %2361 = vmatpush1.bf16.msra.mxu0 0
        %2362 = vmatprep.subr.bf16.mxu0 0
        %2363 = vmatpush1.bf16.msra.mxu0 0
        %2364 = vmatprep.subr.bf16.mxu0 0
        %2365 = vmatpush1.bf16.msra.mxu0 0
        %2366 = vmatprep.subr.bf16.mxu0 0
        %2367 = vmatpush1.bf16.msra.mxu0 0
        %2368 = vmatprep.subr.bf16.mxu0 0
        %2369 = vmatpush1.bf16.msra.mxu0 0
        %2370 = vmatprep.subr.bf16.mxu0 0
        %2371 = vmatpush1.bf16.msra.mxu0 0
        %2372 = vmatprep.subr.bf16.mxu0 0
        %2373 = vmatpush1.bf16.msra.mxu0 0
        %2374 = vmatprep.subr.bf16.mxu0 0
        %2375 = vmatpush1.bf16.msra.mxu0 0
        %2376 = vmatprep.subr.bf16.mxu0 0
        %2377 = vmatpush1.bf16.msra.mxu0 0
        %2378 = vmatprep.subr.bf16.mxu0 0
        %2379 = vmatpush1.bf16.msra.mxu0 0
        %2380 = vmatprep.mubr.bf16.mxu0 0
        %2381 = vmatmul.mubr.bf16.gmra.mrb[0].mxu0 %v2343
        %v2382 = vpop.f32.mrb[0].mxu0
        %v2383 = vadd.f32 0.0, %v2382
        %v2384 = vpop.f32.mrb[0].mxu0
        %v2385 = vpop.f32.mrb[0].mxu0
        %v2386 = vpop.f32.mrb[0].mxu0
        %2387 = vdwg.mxu0
        %v2388 = vcombine.high %v2245, 0.0
        %v2390 = vunpack.c.l.s4 1983009808
        %v2391 = vunpack.c.0.s8 %v2390
        %v2392 = vlaneseq
        %v2393 = vshrl.u32 %v2392, 7
        %v2394 = vsub.s32 %v2391, %v2393
        %v2395 = vrot.slane %v2245, %v2394
        %v2397 = vunpack.c.l.s4 1983009808
        %v2398 = vunpack.c.0.s8 %v2397
        %v2399 = vlaneseq
        %v2400 = vshrl.u32 %v2399, 7
        %v2401 = vsub.s32 %v2398, %v2400
        %v2402 = vrot.slane %v2388, %v2401
        %v2403 = vcombine.high %v2337, 0.0
        %v2405 = vunpack.c.l.s4 1983009808
        %v2406 = vunpack.c.0.s8 %v2405
        %v2407 = vlaneseq
        %v2408 = vshrl.u32 %v2407, 7
        %v2409 = vsub.s32 %v2406, %v2408
        %v2410 = vrot.slane %v2337, %v2409
        %v2412 = vunpack.c.l.s4 1983009808
        %v2413 = vunpack.c.0.s8 %v2412
        %v2414 = vlaneseq
        %v2415 = vshrl.u32 %v2414, 7
        %v2416 = vsub.s32 %v2413, %v2415
        %v2417 = vrot.slane %v2403, %v2416
        %v2418 = vcombine.low %v2395, %v2410
        %v2419 = vcombine.high %v2395, %v2410
        %v2421 = vunpack.c.l.s4 1934713408
        %v2422 = vunpack.c.0.s8 %v2421
        %v2423 = vlaneseq
        %v2424 = vshrl.u32 %v2423, 7
        %v2425 = vsub.s32 %v2422, %v2424
        %v2426 = vrot.slane %v2418, %v2425
        %v2428 = vunpack.c.l.s4 1934713408
        %v2429 = vunpack.c.0.s8 %v2428
        %v2430 = vlaneseq
        %v2431 = vshrl.u32 %v2430, 7
        %v2432 = vsub.s32 %v2429, %v2431
        %v2433 = vrot.slane %v2419, %v2432
        %v2434 = vcombine.low %v2402, %v2417
        %v2435 = vcombine.high %v2402, %v2417
        %v2437 = vunpack.c.l.s4 1934713408
        %v2438 = vunpack.c.0.s8 %v2437
        %v2439 = vlaneseq
        %v2440 = vshrl.u32 %v2439, 7
        %v2441 = vsub.s32 %v2438, %v2440
        %v2442 = vrot.slane %v2434, %v2441
        %v2444 = vunpack.c.l.s4 1934713408
        %v2445 = vunpack.c.0.s8 %v2444
        %v2446 = vlaneseq
        %v2447 = vshrl.u32 %v2446, 7
        %v2448 = vsub.s32 %v2445, %v2447
        %v2449 = vrot.slane %v2435, %v2448
        %v2450 = vcombine.high %v2426, 0.0
        %v2451 = vcombine.high %v2433, 0.0
        %v2452 = vcombine.high %v2442, 0.0
        %v2453 = vcombine.high %v2449, 0.0
        %v2454 = vcombine.high %v2291, 0.0
        %v2456 = vunpack.c.l.s4 1983009808
        %v2457 = vunpack.c.0.s8 %v2456
        %v2458 = vlaneseq
        %v2459 = vshrl.u32 %v2458, 7
        %v2460 = vsub.s32 %v2457, %v2459
        %v2461 = vrot.slane %v2291, %v2460
        %v2463 = vunpack.c.l.s4 1983009808
        %v2464 = vunpack.c.0.s8 %v2463
        %v2465 = vlaneseq
        %v2466 = vshrl.u32 %v2465, 7
        %v2467 = vsub.s32 %v2464, %v2466
        %v2468 = vrot.slane %v2454, %v2467
        %v2469 = vcombine.high %v2383, 0.0
        %v2471 = vunpack.c.l.s4 1983009808
        %v2472 = vunpack.c.0.s8 %v2471
        %v2473 = vlaneseq
        %v2474 = vshrl.u32 %v2473, 7
        %v2475 = vsub.s32 %v2472, %v2474
        %v2476 = vrot.slane %v2383, %v2475
        %v2478 = vunpack.c.l.s4 1983009808
        %v2479 = vunpack.c.0.s8 %v2478
        %v2480 = vlaneseq
        %v2481 = vshrl.u32 %v2480, 7
        %v2482 = vsub.s32 %v2479, %v2481
        %v2483 = vrot.slane %v2469, %v2482
        %v2484 = vcombine.low %v2461, %v2476
        %v2485 = vcombine.high %v2461, %v2476
        %v2487 = vunpack.c.l.s4 1934713408
        %v2488 = vunpack.c.0.s8 %v2487
        %v2489 = vlaneseq
        %v2490 = vshrl.u32 %v2489, 7
        %v2491 = vsub.s32 %v2488, %v2490
        %v2492 = vrot.slane %v2484, %v2491
        %v2494 = vunpack.c.l.s4 1934713408
        %v2495 = vunpack.c.0.s8 %v2494
        %v2496 = vlaneseq
        %v2497 = vshrl.u32 %v2496, 7
        %v2498 = vsub.s32 %v2495, %v2497
        %v2499 = vrot.slane %v2485, %v2498
        %v2500 = vcombine.low %v2468, %v2483
        %v2501 = vcombine.high %v2468, %v2483
        %v2503 = vunpack.c.l.s4 1934713408
        %v2504 = vunpack.c.0.s8 %v2503
        %v2505 = vlaneseq
        %v2506 = vshrl.u32 %v2505, 7
        %v2507 = vsub.s32 %v2504, %v2506
        %v2508 = vrot.slane %v2500, %v2507
        %v2510 = vunpack.c.l.s4 1934713408
        %v2511 = vunpack.c.0.s8 %v2510
        %v2512 = vlaneseq
        %v2513 = vshrl.u32 %v2512, 7
        %v2514 = vsub.s32 %v2511, %v2513
        %v2515 = vrot.slane %v2501, %v2514
        %v2516 = vcombine.high %v2492, 0.0
        %v2517 = vcombine.high %v2499, 0.0
        %v2518 = vcombine.high %v2508, 0.0
        %v2519 = vcombine.high %v2515, 0.0
        %v2520 = vcombine.low %v2426, %v2433
        %v2522 = vunpack.c.l.s4 1983009808
        %v2523 = vunpack.c.0.s8 %v2522
        %v2524 = vlaneseq
        %v2525 = vshrl.u32 %v2524, 7
        %v2526 = vsub.s32 %v2523, %v2525
        %v2527 = vrot.slane %v2520, %v2526
        %v2528 = vcombine.low %v2450, %v2451
        %v2530 = vunpack.c.l.s4 1983009808
        %v2531 = vunpack.c.0.s8 %v2530
        %v2532 = vlaneseq
        %v2533 = vshrl.u32 %v2532, 7
        %v2534 = vsub.s32 %v2531, %v2533
        %v2535 = vrot.slane %v2528, %v2534
        %v2536 = vcombine.low %v2442, %v2449
        %v2538 = vunpack.c.l.s4 1983009808
        %v2539 = vunpack.c.0.s8 %v2538
        %v2540 = vlaneseq
        %v2541 = vshrl.u32 %v2540, 7
        %v2542 = vsub.s32 %v2539, %v2541
        %v2543 = vrot.slane %v2536, %v2542
        %v2544 = vcombine.low %v2452, %v2453
        %v2546 = vunpack.c.l.s4 1983009808
        %v2547 = vunpack.c.0.s8 %v2546
        %v2548 = vlaneseq
        %v2549 = vshrl.u32 %v2548, 7
        %v2550 = vsub.s32 %v2547, %v2549
        %v2551 = vrot.slane %v2544, %v2550
        %v2552 = vcombine.low %v2527, %v2535
        %v2554 = vunpack.c.l.s4 1934713408
        %v2555 = vunpack.c.0.s8 %v2554
        %v2556 = vlaneseq
        %v2557 = vshrl.u32 %v2556, 7
        %v2558 = vsub.s32 %v2555, %v2557
        %v2559 = vrot.slane %v2552, %v2558
        %v2560 = vcombine.low %v2543, %v2551
        %v2562 = vunpack.c.l.s4 1934713408
        %v2563 = vunpack.c.0.s8 %v2562
        %v2564 = vlaneseq
        %v2565 = vshrl.u32 %v2564, 7
        %v2566 = vsub.s32 %v2563, %v2565
        %v2567 = vrot.slane %v2560, %v2566
        %v2568 = vcombine.low %v2559, %v2567
        %v2569 = vcombine.high %v2559, %v2567
        %v2570 = vcombine.low %v2492, %v2499
        %v2572 = vunpack.c.l.s4 1983009808
        %v2573 = vunpack.c.0.s8 %v2572
        %v2574 = vlaneseq
        %v2575 = vshrl.u32 %v2574, 7
        %v2576 = vsub.s32 %v2573, %v2575
        %v2577 = vrot.slane %v2570, %v2576
        %v2578 = vcombine.low %v2516, %v2517
        %v2580 = vunpack.c.l.s4 1983009808
        %v2581 = vunpack.c.0.s8 %v2580
        %v2582 = vlaneseq
        %v2583 = vshrl.u32 %v2582, 7
        %v2584 = vsub.s32 %v2581, %v2583
        %v2585 = vrot.slane %v2578, %v2584
        %v2586 = vcombine.low %v2508, %v2515
        %v2588 = vunpack.c.l.s4 1983009808
        %v2589 = vunpack.c.0.s8 %v2588
        %v2590 = vlaneseq
        %v2591 = vshrl.u32 %v2590, 7
        %v2592 = vsub.s32 %v2589, %v2591
        %v2593 = vrot.slane %v2586, %v2592
        %v2594 = vcombine.low %v2518, %v2519
        %v2596 = vunpack.c.l.s4 1983009808
        %v2597 = vunpack.c.0.s8 %v2596
        %v2598 = vlaneseq
        %v2599 = vshrl.u32 %v2598, 7
        %v2600 = vsub.s32 %v2597, %v2599
        %v2601 = vrot.slane %v2594, %v2600
        %v2602 = vcombine.low %v2577, %v2585
        %v2604 = vunpack.c.l.s4 1934713408
        %v2605 = vunpack.c.0.s8 %v2604
        %v2606 = vlaneseq
        %v2607 = vshrl.u32 %v2606, 7
        %v2608 = vsub.s32 %v2605, %v2607
        %v2609 = vrot.slane %v2602, %v2608
        %v2610 = vcombine.low %v2593, %v2601
        %v2612 = vunpack.c.l.s4 1934713408
        %v2613 = vunpack.c.0.s8 %v2612
        %v2614 = vlaneseq
        %v2615 = vshrl.u32 %v2614, 7
        %v2616 = vsub.s32 %v2613, %v2615
        %v2617 = vrot.slane %v2610, %v2616
        %v2618 = vcombine.low %v2609, %v2617
        %v2619 = vcombine.high %v2609, %v2617
        %2622 = vrot.lane.b32.xlu0 %v2569, 8
        %v2623 = vpop.permute.xlu0 %2622
        %2624 = vrot.lane.b32.xlu0 %v2619, 8
        %v2625 = vpop.permute.xlu0 %2624
        %v2628 = vsel %vm1960, %v2568, %v2623
        %v2629 = vsel %vm1960, %v2618, %v2625
        %v2630 = vpack.c.bf16 %v2629, %v2628
        %2631 = vrot.lane.b32.xlu0 %v1103, 112
        %v2632 = vpop.permute.xlu0 %2631
        %2633 = vrot.lane.b32.xlu0 %v1106, 112
        %v2634 = vpop.permute.xlu0 %2633
        %2635 = vrot.lane.b32.xlu0 %v1235, 112
        %v2636 = vpop.permute.xlu0 %2635
        %2637 = vrot.lane.b32.xlu0 %v1237, 112
        %v2638 = vpop.permute.xlu0 %2637
        %v2643 = vcombine.high %v2632, 0.0
        %v2645 = vunpack.c.l.s4 1983009808
        %v2646 = vunpack.c.0.s8 %v2645
        %v2647 = vlaneseq
        %v2648 = vshrl.u32 %v2647, 7
        %v2649 = vsub.s32 %v2646, %v2648
        %v2650 = vrot.slane %v2632, %v2649
        %v2652 = vunpack.c.l.s4 1983009808
        %v2653 = vunpack.c.0.s8 %v2652
        %v2654 = vlaneseq
        %v2655 = vshrl.u32 %v2654, 7
        %v2656 = vsub.s32 %v2653, %v2655
        %v2657 = vrot.slane %v2643, %v2656
        %v2658 = vcombine.high %v2636, 0.0
        %v2660 = vunpack.c.l.s4 1983009808
        %v2661 = vunpack.c.0.s8 %v2660
        %v2662 = vlaneseq
        %v2663 = vshrl.u32 %v2662, 7
        %v2664 = vsub.s32 %v2661, %v2663
        %v2665 = vrot.slane %v2636, %v2664
        %v2667 = vunpack.c.l.s4 1983009808
        %v2668 = vunpack.c.0.s8 %v2667
        %v2669 = vlaneseq
        %v2670 = vshrl.u32 %v2669, 7
        %v2671 = vsub.s32 %v2668, %v2670
        %v2672 = vrot.slane %v2658, %v2671
        %v2673 = vcombine.low %v2650, %v2665
        %v2674 = vcombine.high %v2650, %v2665
        %v2676 = vunpack.c.l.s4 1934713408
        %v2677 = vunpack.c.0.s8 %v2676
        %v2678 = vlaneseq
        %v2679 = vshrl.u32 %v2678, 7
        %v2680 = vsub.s32 %v2677, %v2679
        %v2681 = vrot.slane %v2673, %v2680
        %v2683 = vunpack.c.l.s4 1934713408
        %v2684 = vunpack.c.0.s8 %v2683
        %v2685 = vlaneseq
        %v2686 = vshrl.u32 %v2685, 7
        %v2687 = vsub.s32 %v2684, %v2686
        %v2688 = vrot.slane %v2674, %v2687
        %v2689 = vcombine.low %v2657, %v2672
        %v2690 = vcombine.high %v2657, %v2672
        %v2692 = vunpack.c.l.s4 1934713408
        %v2693 = vunpack.c.0.s8 %v2692
        %v2694 = vlaneseq
        %v2695 = vshrl.u32 %v2694, 7
        %v2696 = vsub.s32 %v2693, %v2695
        %v2697 = vrot.slane %v2689, %v2696
        %v2699 = vunpack.c.l.s4 1934713408
        %v2700 = vunpack.c.0.s8 %v2699
        %v2701 = vlaneseq
        %v2702 = vshrl.u32 %v2701, 7
        %v2703 = vsub.s32 %v2700, %v2702
        %v2704 = vrot.slane %v2690, %v2703
        %v2705 = vcombine.high %v2681, 0.0
        %v2706 = vcombine.high %v2688, 0.0
        %v2707 = vcombine.high %v2697, 0.0
        %v2708 = vcombine.high %v2704, 0.0
        %v2709 = vcombine.high %v2634, 0.0
        %v2711 = vunpack.c.l.s4 1983009808
        %v2712 = vunpack.c.0.s8 %v2711
        %v2713 = vlaneseq
        %v2714 = vshrl.u32 %v2713, 7
        %v2715 = vsub.s32 %v2712, %v2714
        %v2716 = vrot.slane %v2634, %v2715
        %v2718 = vunpack.c.l.s4 1983009808
        %v2719 = vunpack.c.0.s8 %v2718
        %v2720 = vlaneseq
        %v2721 = vshrl.u32 %v2720, 7
        %v2722 = vsub.s32 %v2719, %v2721
        %v2723 = vrot.slane %v2709, %v2722
        %v2724 = vcombine.high %v2638, 0.0
        %v2726 = vunpack.c.l.s4 1983009808
        %v2727 = vunpack.c.0.s8 %v2726
        %v2728 = vlaneseq
        %v2729 = vshrl.u32 %v2728, 7
        %v2730 = vsub.s32 %v2727, %v2729
        %v2731 = vrot.slane %v2638, %v2730
        %v2733 = vunpack.c.l.s4 1983009808
        %v2734 = vunpack.c.0.s8 %v2733
        %v2735 = vlaneseq
        %v2736 = vshrl.u32 %v2735, 7
        %v2737 = vsub.s32 %v2734, %v2736
        %v2738 = vrot.slane %v2724, %v2737
        %v2739 = vcombine.low %v2716, %v2731
        %v2740 = vcombine.high %v2716, %v2731
        %v2742 = vunpack.c.l.s4 1934713408
        %v2743 = vunpack.c.0.s8 %v2742
        %v2744 = vlaneseq
        %v2745 = vshrl.u32 %v2744, 7
        %v2746 = vsub.s32 %v2743, %v2745
        %v2747 = vrot.slane %v2739, %v2746
        %v2749 = vunpack.c.l.s4 1934713408
        %v2750 = vunpack.c.0.s8 %v2749
        %v2751 = vlaneseq
        %v2752 = vshrl.u32 %v2751, 7
        %v2753 = vsub.s32 %v2750, %v2752
        %v2754 = vrot.slane %v2740, %v2753
        %v2755 = vcombine.low %v2723, %v2738
        %v2756 = vcombine.high %v2723, %v2738
        %v2758 = vunpack.c.l.s4 1934713408
        %v2759 = vunpack.c.0.s8 %v2758
        %v2760 = vlaneseq
        %v2761 = vshrl.u32 %v2760, 7
        %v2762 = vsub.s32 %v2759, %v2761
        %v2763 = vrot.slane %v2755, %v2762
        %v2765 = vunpack.c.l.s4 1934713408
        %v2766 = vunpack.c.0.s8 %v2765
        %v2767 = vlaneseq
        %v2768 = vshrl.u32 %v2767, 7
        %v2769 = vsub.s32 %v2766, %v2768
        %v2770 = vrot.slane %v2756, %v2769
        %v2771 = vcombine.high %v2747, 0.0
        %v2772 = vcombine.high %v2754, 0.0
        %v2773 = vcombine.high %v2763, 0.0
        %v2774 = vcombine.high %v2770, 0.0
        %v2775 = vcombine.low %v2681, %v2688
        %v2777 = vunpack.c.l.s4 1983009808
        %v2778 = vunpack.c.0.s8 %v2777
        %v2779 = vlaneseq
        %v2780 = vshrl.u32 %v2779, 7
        %v2781 = vsub.s32 %v2778, %v2780
        %v2782 = vrot.slane %v2775, %v2781
        %v2783 = vcombine.low %v2705, %v2706
        %v2785 = vunpack.c.l.s4 1983009808
        %v2786 = vunpack.c.0.s8 %v2785
        %v2787 = vlaneseq
        %v2788 = vshrl.u32 %v2787, 7
        %v2789 = vsub.s32 %v2786, %v2788
        %v2790 = vrot.slane %v2783, %v2789
        %v2791 = vcombine.low %v2697, %v2704
        %v2793 = vunpack.c.l.s4 1983009808
        %v2794 = vunpack.c.0.s8 %v2793
        %v2795 = vlaneseq
        %v2796 = vshrl.u32 %v2795, 7
        %v2797 = vsub.s32 %v2794, %v2796
        %v2798 = vrot.slane %v2791, %v2797
        %v2799 = vcombine.low %v2707, %v2708
        %v2801 = vunpack.c.l.s4 1983009808
        %v2802 = vunpack.c.0.s8 %v2801
        %v2803 = vlaneseq
        %v2804 = vshrl.u32 %v2803, 7
        %v2805 = vsub.s32 %v2802, %v2804
        %v2806 = vrot.slane %v2799, %v2805
        %v2807 = vcombine.low %v2782, %v2790
        %v2809 = vunpack.c.l.s4 1934713408
        %v2810 = vunpack.c.0.s8 %v2809
        %v2811 = vlaneseq
        %v2812 = vshrl.u32 %v2811, 7
        %v2813 = vsub.s32 %v2810, %v2812
        %v2814 = vrot.slane %v2807, %v2813
        %v2815 = vcombine.low %v2798, %v2806
        %v2817 = vunpack.c.l.s4 1934713408
        %v2818 = vunpack.c.0.s8 %v2817
        %v2819 = vlaneseq
        %v2820 = vshrl.u32 %v2819, 7
        %v2821 = vsub.s32 %v2818, %v2820
        %v2822 = vrot.slane %v2815, %v2821
        %v2823 = vcombine.low %v2814, %v2822
        %v2824 = vcombine.high %v2814, %v2822
        %v2825 = vcombine.low %v2747, %v2754
        %v2827 = vunpack.c.l.s4 1983009808
        %v2828 = vunpack.c.0.s8 %v2827
        %v2829 = vlaneseq
        %v2830 = vshrl.u32 %v2829, 7
        %v2831 = vsub.s32 %v2828, %v2830
        %v2832 = vrot.slane %v2825, %v2831
        %v2833 = vcombine.low %v2771, %v2772
        %v2835 = vunpack.c.l.s4 1983009808
        %v2836 = vunpack.c.0.s8 %v2835
        %v2837 = vlaneseq
        %v2838 = vshrl.u32 %v2837, 7
        %v2839 = vsub.s32 %v2836, %v2838
        %v2840 = vrot.slane %v2833, %v2839
        %v2841 = vcombine.low %v2763, %v2770
        %v2843 = vunpack.c.l.s4 1983009808
        %v2844 = vunpack.c.0.s8 %v2843
        %v2845 = vlaneseq
        %v2846 = vshrl.u32 %v2845, 7
        %v2847 = vsub.s32 %v2844, %v2846
        %v2848 = vrot.slane %v2841, %v2847
        %v2849 = vcombine.low %v2773, %v2774
        %v2851 = vunpack.c.l.s4 1983009808
        %v2852 = vunpack.c.0.s8 %v2851
        %v2853 = vlaneseq
        %v2854 = vshrl.u32 %v2853, 7
        %v2855 = vsub.s32 %v2852, %v2854
        %v2856 = vrot.slane %v2849, %v2855
        %v2857 = vcombine.low %v2832, %v2840
        %v2859 = vunpack.c.l.s4 1934713408
        %v2860 = vunpack.c.0.s8 %v2859
        %v2861 = vlaneseq
        %v2862 = vshrl.u32 %v2861, 7
        %v2863 = vsub.s32 %v2860, %v2862
        %v2864 = vrot.slane %v2857, %v2863
        %v2865 = vcombine.low %v2848, %v2856
        %v2867 = vunpack.c.l.s4 1934713408
        %v2868 = vunpack.c.0.s8 %v2867
        %v2869 = vlaneseq
        %v2870 = vshrl.u32 %v2869, 7
        %v2871 = vsub.s32 %v2868, %v2870
        %v2872 = vrot.slane %v2865, %v2871
        %v2873 = vcombine.low %v2864, %v2872
        %v2874 = vcombine.high %v2864, %v2872
        %2875 = vrot.lane.b32.xlu0 %v1160, 112
        %v2876 = vpop.permute.xlu0 %2875
        %2877 = vrot.lane.b32.xlu0 %v1163, 112
        %v2878 = vpop.permute.xlu0 %2877
        %2879 = vrot.lane.b32.xlu0 %v1475, 112
        %v2880 = vpop.permute.xlu0 %2879
        %2881 = vrot.lane.b32.xlu0 %v1477, 112
        %v2882 = vpop.permute.xlu0 %2881
        %v2887 = vcombine.high %v2876, 0.0
        %v2889 = vunpack.c.l.s4 1983009808
        %v2890 = vunpack.c.0.s8 %v2889
        %v2891 = vlaneseq
        %v2892 = vshrl.u32 %v2891, 7
        %v2893 = vsub.s32 %v2890, %v2892
        %v2894 = vrot.slane %v2876, %v2893
        %v2896 = vunpack.c.l.s4 1983009808
        %v2897 = vunpack.c.0.s8 %v2896
        %v2898 = vlaneseq
        %v2899 = vshrl.u32 %v2898, 7
        %v2900 = vsub.s32 %v2897, %v2899
        %v2901 = vrot.slane %v2887, %v2900
        %v2902 = vcombine.high %v2880, 0.0
        %v2904 = vunpack.c.l.s4 1983009808
        %v2905 = vunpack.c.0.s8 %v2904
        %v2906 = vlaneseq
        %v2907 = vshrl.u32 %v2906, 7
        %v2908 = vsub.s32 %v2905, %v2907
        %v2909 = vrot.slane %v2880, %v2908
        %v2911 = vunpack.c.l.s4 1983009808
        %v2912 = vunpack.c.0.s8 %v2911
        %v2913 = vlaneseq
        %v2914 = vshrl.u32 %v2913, 7
        %v2915 = vsub.s32 %v2912, %v2914
        %v2916 = vrot.slane %v2902, %v2915
        %v2917 = vcombine.low %v2894, %v2909
        %v2918 = vcombine.high %v2894, %v2909
        %v2920 = vunpack.c.l.s4 1934713408
        %v2921 = vunpack.c.0.s8 %v2920
        %v2922 = vlaneseq
        %v2923 = vshrl.u32 %v2922, 7
        %v2924 = vsub.s32 %v2921, %v2923
        %v2925 = vrot.slane %v2917, %v2924
        %v2927 = vunpack.c.l.s4 1934713408
        %v2928 = vunpack.c.0.s8 %v2927
        %v2929 = vlaneseq
        %v2930 = vshrl.u32 %v2929, 7
        %v2931 = vsub.s32 %v2928, %v2930
        %v2932 = vrot.slane %v2918, %v2931
        %v2933 = vcombine.low %v2901, %v2916
        %v2934 = vcombine.high %v2901, %v2916
        %v2936 = vunpack.c.l.s4 1934713408
        %v2937 = vunpack.c.0.s8 %v2936
        %v2938 = vlaneseq
        %v2939 = vshrl.u32 %v2938, 7
        %v2940 = vsub.s32 %v2937, %v2939
        %v2941 = vrot.slane %v2933, %v2940
        %v2943 = vunpack.c.l.s4 1934713408
        %v2944 = vunpack.c.0.s8 %v2943
        %v2945 = vlaneseq
        %v2946 = vshrl.u32 %v2945, 7
        %v2947 = vsub.s32 %v2944, %v2946
        %v2948 = vrot.slane %v2934, %v2947
        %v2949 = vcombine.high %v2925, 0.0
        %v2950 = vcombine.high %v2932, 0.0
        %v2951 = vcombine.high %v2941, 0.0
        %v2952 = vcombine.high %v2948, 0.0
        %v2953 = vcombine.high %v2878, 0.0
        %v2955 = vunpack.c.l.s4 1983009808
        %v2956 = vunpack.c.0.s8 %v2955
        %v2957 = vlaneseq
        %v2958 = vshrl.u32 %v2957, 7
        %v2959 = vsub.s32 %v2956, %v2958
        %v2960 = vrot.slane %v2878, %v2959
        %v2962 = vunpack.c.l.s4 1983009808
        %v2963 = vunpack.c.0.s8 %v2962
        %v2964 = vlaneseq
        %v2965 = vshrl.u32 %v2964, 7
        %v2966 = vsub.s32 %v2963, %v2965
        %v2967 = vrot.slane %v2953, %v2966
        %v2968 = vcombine.high %v2882, 0.0
        %v2970 = vunpack.c.l.s4 1983009808
        %v2971 = vunpack.c.0.s8 %v2970
        %v2972 = vlaneseq
        %v2973 = vshrl.u32 %v2972, 7
        %v2974 = vsub.s32 %v2971, %v2973
        %v2975 = vrot.slane %v2882, %v2974
        %v2977 = vunpack.c.l.s4 1983009808
        %v2978 = vunpack.c.0.s8 %v2977
        %v2979 = vlaneseq
        %v2980 = vshrl.u32 %v2979, 7
        %v2981 = vsub.s32 %v2978, %v2980
        %v2982 = vrot.slane %v2968, %v2981
        %v2983 = vcombine.low %v2960, %v2975
        %v2984 = vcombine.high %v2960, %v2975
        %v2986 = vunpack.c.l.s4 1934713408
        %v2987 = vunpack.c.0.s8 %v2986
        %v2988 = vlaneseq
        %v2989 = vshrl.u32 %v2988, 7
        %v2990 = vsub.s32 %v2987, %v2989
        %v2991 = vrot.slane %v2983, %v2990
        %v2993 = vunpack.c.l.s4 1934713408
        %v2994 = vunpack.c.0.s8 %v2993
        %v2995 = vlaneseq
        %v2996 = vshrl.u32 %v2995, 7
        %v2997 = vsub.s32 %v2994, %v2996
        %v2998 = vrot.slane %v2984, %v2997
        %v2999 = vcombine.low %v2967, %v2982
        %v3000 = vcombine.high %v2967, %v2982
        %v3002 = vunpack.c.l.s4 1934713408
        %v3003 = vunpack.c.0.s8 %v3002
        %v3004 = vlaneseq
        %v3005 = vshrl.u32 %v3004, 7
        %v3006 = vsub.s32 %v3003, %v3005
        %v3007 = vrot.slane %v2999, %v3006
        %v3009 = vunpack.c.l.s4 1934713408
        %v3010 = vunpack.c.0.s8 %v3009
        %v3011 = vlaneseq
        %v3012 = vshrl.u32 %v3011, 7
        %v3013 = vsub.s32 %v3010, %v3012
        %v3014 = vrot.slane %v3000, %v3013
        %v3015 = vcombine.high %v2991, 0.0
        %v3016 = vcombine.high %v2998, 0.0
        %v3017 = vcombine.high %v3007, 0.0
        %v3018 = vcombine.high %v3014, 0.0
        %v3019 = vcombine.low %v2925, %v2932
        %v3021 = vunpack.c.l.s4 1983009808
        %v3022 = vunpack.c.0.s8 %v3021
        %v3023 = vlaneseq
        %v3024 = vshrl.u32 %v3023, 7
        %v3025 = vsub.s32 %v3022, %v3024
        %v3026 = vrot.slane %v3019, %v3025
        %v3027 = vcombine.low %v2949, %v2950
        %v3029 = vunpack.c.l.s4 1983009808
        %v3030 = vunpack.c.0.s8 %v3029
        %v3031 = vlaneseq
        %v3032 = vshrl.u32 %v3031, 7
        %v3033 = vsub.s32 %v3030, %v3032
        %v3034 = vrot.slane %v3027, %v3033
        %v3035 = vcombine.low %v2941, %v2948
        %v3037 = vunpack.c.l.s4 1983009808
        %v3038 = vunpack.c.0.s8 %v3037
        %v3039 = vlaneseq
        %v3040 = vshrl.u32 %v3039, 7
        %v3041 = vsub.s32 %v3038, %v3040
        %v3042 = vrot.slane %v3035, %v3041
        %v3043 = vcombine.low %v2951, %v2952
        %v3045 = vunpack.c.l.s4 1983009808
        %v3046 = vunpack.c.0.s8 %v3045
        %v3047 = vlaneseq
        %v3048 = vshrl.u32 %v3047, 7
        %v3049 = vsub.s32 %v3046, %v3048
        %v3050 = vrot.slane %v3043, %v3049
        %v3051 = vcombine.low %v3026, %v3034
        %v3053 = vunpack.c.l.s4 1934713408
        %v3054 = vunpack.c.0.s8 %v3053
        %v3055 = vlaneseq
        %v3056 = vshrl.u32 %v3055, 7
        %v3057 = vsub.s32 %v3054, %v3056
        %v3058 = vrot.slane %v3051, %v3057
        %v3059 = vcombine.low %v3042, %v3050
        %v3061 = vunpack.c.l.s4 1934713408
        %v3062 = vunpack.c.0.s8 %v3061
        %v3063 = vlaneseq
        %v3064 = vshrl.u32 %v3063, 7
        %v3065 = vsub.s32 %v3062, %v3064
        %v3066 = vrot.slane %v3059, %v3065
        %v3067 = vcombine.low %v3058, %v3066
        %v3068 = vcombine.high %v3058, %v3066
        %v3069 = vcombine.low %v2991, %v2998
        %v3071 = vunpack.c.l.s4 1983009808
        %v3072 = vunpack.c.0.s8 %v3071
        %v3073 = vlaneseq
        %v3074 = vshrl.u32 %v3073, 7
        %v3075 = vsub.s32 %v3072, %v3074
        %v3076 = vrot.slane %v3069, %v3075
        %v3077 = vcombine.low %v3015, %v3016
        %v3079 = vunpack.c.l.s4 1983009808
        %v3080 = vunpack.c.0.s8 %v3079
        %v3081 = vlaneseq
        %v3082 = vshrl.u32 %v3081, 7
        %v3083 = vsub.s32 %v3080, %v3082
        %v3084 = vrot.slane %v3077, %v3083
        %v3085 = vcombine.low %v3007, %v3014
        %v3087 = vunpack.c.l.s4 1983009808
        %v3088 = vunpack.c.0.s8 %v3087
        %v3089 = vlaneseq
        %v3090 = vshrl.u32 %v3089, 7
        %v3091 = vsub.s32 %v3088, %v3090
        %v3092 = vrot.slane %v3085, %v3091
        %v3093 = vcombine.low %v3017, %v3018
        %v3095 = vunpack.c.l.s4 1983009808
        %v3096 = vunpack.c.0.s8 %v3095
        %v3097 = vlaneseq
        %v3098 = vshrl.u32 %v3097, 7
        %v3099 = vsub.s32 %v3096, %v3098
        %v3100 = vrot.slane %v3093, %v3099
        %v3101 = vcombine.low %v3076, %v3084
        %v3103 = vunpack.c.l.s4 1934713408
        %v3104 = vunpack.c.0.s8 %v3103
        %v3105 = vlaneseq
        %v3106 = vshrl.u32 %v3105, 7
        %v3107 = vsub.s32 %v3104, %v3106
        %v3108 = vrot.slane %v3101, %v3107
        %v3109 = vcombine.low %v3092, %v3100
        %v3111 = vunpack.c.l.s4 1934713408
        %v3112 = vunpack.c.0.s8 %v3111
        %v3113 = vlaneseq
        %v3114 = vshrl.u32 %v3113, 7
        %v3115 = vsub.s32 %v3112, %v3114
        %v3116 = vrot.slane %v3109, %v3115
        %v3117 = vcombine.low %v3108, %v3116
        %v3118 = vcombine.high %v3108, %v3116
        %3119 = vrot.lane.b32.xlu0 %v1217, 112
        %v3120 = vpop.permute.xlu0 %3119
        %3121 = vrot.lane.b32.xlu0 %v1220, 112
        %v3122 = vpop.permute.xlu0 %3121
        %3123 = vrot.lane.b32.xlu0 %v1715, 112
        %v3124 = vpop.permute.xlu0 %3123
        %3125 = vrot.lane.b32.xlu0 %v1717, 112
        %v3126 = vpop.permute.xlu0 %3125
        %v3131 = vcombine.high %v3120, 0.0
        %v3133 = vunpack.c.l.s4 1983009808
        %v3134 = vunpack.c.0.s8 %v3133
        %v3135 = vlaneseq
        %v3136 = vshrl.u32 %v3135, 7
        %v3137 = vsub.s32 %v3134, %v3136
        %v3138 = vrot.slane %v3120, %v3137
        %v3140 = vunpack.c.l.s4 1983009808
        %v3141 = vunpack.c.0.s8 %v3140
        %v3142 = vlaneseq
        %v3143 = vshrl.u32 %v3142, 7
        %v3144 = vsub.s32 %v3141, %v3143
        %v3145 = vrot.slane %v3131, %v3144
        %v3146 = vcombine.high %v3124, 0.0
        %v3148 = vunpack.c.l.s4 1983009808
        %v3149 = vunpack.c.0.s8 %v3148
        %v3150 = vlaneseq
        %v3151 = vshrl.u32 %v3150, 7
        %v3152 = vsub.s32 %v3149, %v3151
        %v3153 = vrot.slane %v3124, %v3152
        %v3155 = vunpack.c.l.s4 1983009808
        %v3156 = vunpack.c.0.s8 %v3155
        %v3157 = vlaneseq
        %v3158 = vshrl.u32 %v3157, 7
        %v3159 = vsub.s32 %v3156, %v3158
        %v3160 = vrot.slane %v3146, %v3159
        %v3161 = vcombine.low %v3138, %v3153
        %v3162 = vcombine.high %v3138, %v3153
        %v3164 = vunpack.c.l.s4 1934713408
        %v3165 = vunpack.c.0.s8 %v3164
        %v3166 = vlaneseq
        %v3167 = vshrl.u32 %v3166, 7
        %v3168 = vsub.s32 %v3165, %v3167
        %v3169 = vrot.slane %v3161, %v3168
        %v3171 = vunpack.c.l.s4 1934713408
        %v3172 = vunpack.c.0.s8 %v3171
        %v3173 = vlaneseq
        %v3174 = vshrl.u32 %v3173, 7
        %v3175 = vsub.s32 %v3172, %v3174
        %v3176 = vrot.slane %v3162, %v3175
        %v3177 = vcombine.low %v3145, %v3160
        %v3178 = vcombine.high %v3145, %v3160
        %v3180 = vunpack.c.l.s4 1934713408
        %v3181 = vunpack.c.0.s8 %v3180
        %v3182 = vlaneseq
        %v3183 = vshrl.u32 %v3182, 7
        %v3184 = vsub.s32 %v3181, %v3183
        %v3185 = vrot.slane %v3177, %v3184
        %v3187 = vunpack.c.l.s4 1934713408
        %v3188 = vunpack.c.0.s8 %v3187
        %v3189 = vlaneseq
        %v3190 = vshrl.u32 %v3189, 7
        %v3191 = vsub.s32 %v3188, %v3190
        %v3192 = vrot.slane %v3178, %v3191
        %v3193 = vcombine.high %v3169, 0.0
        %v3194 = vcombine.high %v3176, 0.0
        %v3195 = vcombine.high %v3185, 0.0
        %v3196 = vcombine.high %v3192, 0.0
        %v3197 = vcombine.high %v3122, 0.0
        %v3199 = vunpack.c.l.s4 1983009808
        %v3200 = vunpack.c.0.s8 %v3199
        %v3201 = vlaneseq
        %v3202 = vshrl.u32 %v3201, 7
        %v3203 = vsub.s32 %v3200, %v3202
        %v3204 = vrot.slane %v3122, %v3203
        %v3206 = vunpack.c.l.s4 1983009808
        %v3207 = vunpack.c.0.s8 %v3206
        %v3208 = vlaneseq
        %v3209 = vshrl.u32 %v3208, 7
        %v3210 = vsub.s32 %v3207, %v3209
        %v3211 = vrot.slane %v3197, %v3210
        %v3212 = vcombine.high %v3126, 0.0
        %v3214 = vunpack.c.l.s4 1983009808
        %v3215 = vunpack.c.0.s8 %v3214
        %v3216 = vlaneseq
        %v3217 = vshrl.u32 %v3216, 7
        %v3218 = vsub.s32 %v3215, %v3217
        %v3219 = vrot.slane %v3126, %v3218
        %v3221 = vunpack.c.l.s4 1983009808
        %v3222 = vunpack.c.0.s8 %v3221
        %v3223 = vlaneseq
        %v3224 = vshrl.u32 %v3223, 7
        %v3225 = vsub.s32 %v3222, %v3224
        %v3226 = vrot.slane %v3212, %v3225
        %v3227 = vcombine.low %v3204, %v3219
        %v3228 = vcombine.high %v3204, %v3219
        %v3230 = vunpack.c.l.s4 1934713408
        %v3231 = vunpack.c.0.s8 %v3230
        %v3232 = vlaneseq
        %v3233 = vshrl.u32 %v3232, 7
        %v3234 = vsub.s32 %v3231, %v3233
        %v3235 = vrot.slane %v3227, %v3234
        %v3237 = vunpack.c.l.s4 1934713408
        %v3238 = vunpack.c.0.s8 %v3237
        %v3239 = vlaneseq
        %v3240 = vshrl.u32 %v3239, 7
        %v3241 = vsub.s32 %v3238, %v3240
        %v3242 = vrot.slane %v3228, %v3241
        %v3243 = vcombine.low %v3211, %v3226
        %v3244 = vcombine.high %v3211, %v3226
        %v3246 = vunpack.c.l.s4 1934713408
        %v3247 = vunpack.c.0.s8 %v3246
        %v3248 = vlaneseq
        %v3249 = vshrl.u32 %v3248, 7
        %v3250 = vsub.s32 %v3247, %v3249
        %v3251 = vrot.slane %v3243, %v3250
        %v3253 = vunpack.c.l.s4 1934713408
        %v3254 = vunpack.c.0.s8 %v3253
        %v3255 = vlaneseq
        %v3256 = vshrl.u32 %v3255, 7
        %v3257 = vsub.s32 %v3254, %v3256
        %v3258 = vrot.slane %v3244, %v3257
        %v3259 = vcombine.high %v3235, 0.0
        %v3260 = vcombine.high %v3242, 0.0
        %v3261 = vcombine.high %v3251, 0.0
        %v3262 = vcombine.high %v3258, 0.0
        %v3263 = vcombine.low %v3169, %v3176
        %v3265 = vunpack.c.l.s4 1983009808
        %v3266 = vunpack.c.0.s8 %v3265
        %v3267 = vlaneseq
        %v3268 = vshrl.u32 %v3267, 7
        %v3269 = vsub.s32 %v3266, %v3268
        %v3270 = vrot.slane %v3263, %v3269
        %v3271 = vcombine.low %v3193, %v3194
        %v3273 = vunpack.c.l.s4 1983009808
        %v3274 = vunpack.c.0.s8 %v3273
        %v3275 = vlaneseq
        %v3276 = vshrl.u32 %v3275, 7
        %v3277 = vsub.s32 %v3274, %v3276
        %v3278 = vrot.slane %v3271, %v3277
        %v3279 = vcombine.low %v3185, %v3192
        %v3281 = vunpack.c.l.s4 1983009808
        %v3282 = vunpack.c.0.s8 %v3281
        %v3283 = vlaneseq
        %v3284 = vshrl.u32 %v3283, 7
        %v3285 = vsub.s32 %v3282, %v3284
        %v3286 = vrot.slane %v3279, %v3285
        %v3287 = vcombine.low %v3195, %v3196
        %v3289 = vunpack.c.l.s4 1983009808
        %v3290 = vunpack.c.0.s8 %v3289
        %v3291 = vlaneseq
        %v3292 = vshrl.u32 %v3291, 7
        %v3293 = vsub.s32 %v3290, %v3292
        %v3294 = vrot.slane %v3287, %v3293
        %v3295 = vcombine.low %v3270, %v3278
        %v3297 = vunpack.c.l.s4 1934713408
        %v3298 = vunpack.c.0.s8 %v3297
        %v3299 = vlaneseq
        %v3300 = vshrl.u32 %v3299, 7
        %v3301 = vsub.s32 %v3298, %v3300
        %v3302 = vrot.slane %v3295, %v3301
        %v3303 = vcombine.low %v3286, %v3294
        %v3305 = vunpack.c.l.s4 1934713408
        %v3306 = vunpack.c.0.s8 %v3305
        %v3307 = vlaneseq
        %v3308 = vshrl.u32 %v3307, 7
        %v3309 = vsub.s32 %v3306, %v3308
        %v3310 = vrot.slane %v3303, %v3309
        %v3311 = vcombine.low %v3302, %v3310
        %v3312 = vcombine.high %v3302, %v3310
        %v3313 = vcombine.low %v3235, %v3242
        %v3315 = vunpack.c.l.s4 1983009808
        %v3316 = vunpack.c.0.s8 %v3315
        %v3317 = vlaneseq
        %v3318 = vshrl.u32 %v3317, 7
        %v3319 = vsub.s32 %v3316, %v3318
        %v3320 = vrot.slane %v3313, %v3319
        %v3321 = vcombine.low %v3259, %v3260
        %v3323 = vunpack.c.l.s4 1983009808
        %v3324 = vunpack.c.0.s8 %v3323
        %v3325 = vlaneseq
        %v3326 = vshrl.u32 %v3325, 7
        %v3327 = vsub.s32 %v3324, %v3326
        %v3328 = vrot.slane %v3321, %v3327
        %v3329 = vcombine.low %v3251, %v3258
        %v3331 = vunpack.c.l.s4 1983009808
        %v3332 = vunpack.c.0.s8 %v3331
        %v3333 = vlaneseq
        %v3334 = vshrl.u32 %v3333, 7
        %v3335 = vsub.s32 %v3332, %v3334
        %v3336 = vrot.slane %v3329, %v3335
        %v3337 = vcombine.low %v3261, %v3262
        %v3339 = vunpack.c.l.s4 1983009808
        %v3340 = vunpack.c.0.s8 %v3339
        %v3341 = vlaneseq
        %v3342 = vshrl.u32 %v3341, 7
        %v3343 = vsub.s32 %v3340, %v3342
        %v3344 = vrot.slane %v3337, %v3343
        %v3345 = vcombine.low %v3320, %v3328
        %v3347 = vunpack.c.l.s4 1934713408
        %v3348 = vunpack.c.0.s8 %v3347
        %v3349 = vlaneseq
        %v3350 = vshrl.u32 %v3349, 7
        %v3351 = vsub.s32 %v3348, %v3350
        %v3352 = vrot.slane %v3345, %v3351
        %v3353 = vcombine.low %v3336, %v3344
        %v3355 = vunpack.c.l.s4 1934713408
        %v3356 = vunpack.c.0.s8 %v3355
        %v3357 = vlaneseq
        %v3358 = vshrl.u32 %v3357, 7
        %v3359 = vsub.s32 %v3356, %v3358
        %v3360 = vrot.slane %v3353, %v3359
        %v3361 = vcombine.low %v3352, %v3360
        %v3362 = vcombine.high %v3352, %v3360
        %v3363 = vpack.c.bf16 %v2823, %v2823
        %v3364 = vpack.c.bf16 %v2873, %v2873
        %v3365 = vpack.c.bf16 %v2824, %v2824
        %v3366 = vpack.c.bf16 %v2874, %v2874
        %v3367 = vpack.c.bf16 %v3067, %v3067
        %v3368 = vpack.c.bf16 %v3117, %v3117
        %v3369 = vpack.c.bf16 %v3068, %v3068
        %v3370 = vpack.c.bf16 %v3118, %v3118
        %v3372 = vsel %vm1960, %v3363, 0
        %v3375 = vsel %vm1960, %v3367, 0
        %3377 = vmatprep.subr.bf16.mxu0 0
        %3378 = vmatpush1.bf16.xpose.msra.mxu0 %v3375
        %3379 = vmatprep.subr.bf16.mxu0 0
        %3380 = vmatpush1.bf16.xpose.msra.mxu0 0
        %3381 = vmatprep.subr.bf16.mxu0 0
        %3382 = vmatpush1.bf16.xpose.msra.mxu0 0
        %3383 = vmatprep.subr.bf16.mxu0 0
        %3384 = vmatpush1.bf16.xpose.msra.mxu0 0
        %3385 = vmatprep.subr.bf16.mxu0 0
        %3386 = vmatpush1.bf16.xpose.msra.mxu0 0
        %3387 = vmatprep.subr.bf16.mxu0 0
        %3388 = vmatpush1.bf16.xpose.msra.mxu0 0
        %3389 = vmatprep.subr.bf16.mxu0 0
        %3390 = vmatpush1.bf16.xpose.msra.mxu0 0
        %3391 = vmatprep.subr.bf16.mxu0 0
        %3392 = vmatpush1.bf16.xpose.msra.mxu0 0
        %3393 = vmatprep.subr.bf16.mxu0 0
        %3394 = vmatpush1.bf16.xpose.msra.mxu0 0
        %3395 = vmatprep.subr.bf16.mxu0 0
        %3396 = vmatpush1.bf16.xpose.msra.mxu0 0
        %3397 = vmatprep.subr.bf16.mxu0 0
        %3398 = vmatpush1.bf16.xpose.msra.mxu0 0
        %3399 = vmatprep.subr.bf16.mxu0 0
        %3400 = vmatpush1.bf16.xpose.msra.mxu0 0
        %3401 = vmatprep.subr.bf16.mxu0 0
        %3402 = vmatpush1.bf16.xpose.msra.mxu0 0
        %3403 = vmatprep.subr.bf16.mxu0 0
        %3404 = vmatpush1.bf16.xpose.msra.mxu0 0
        %3405 = vmatprep.subr.bf16.mxu0 0
        %3406 = vmatpush1.bf16.xpose.msra.mxu0 0
        %3407 = vmatprep.subr.bf16.mxu0 0
        %3408 = vmatpush1.bf16.xpose.msra.mxu0 0
        %3409 = vmatprep.mubr.bf16.mxu0 0
        %3410 = vmatmul.mubr.bf16.gmra.mrb[0].mxu0 %v3372
        %v3411 = vpop.f32.mrb[0].mxu0
        %v3412 = vadd.f32 0.0, %v3411
        %v3413 = vpop.f32.mrb[0].mxu0
        %v3414 = vpop.f32.mrb[0].mxu0
        %v3415 = vpop.f32.mrb[0].mxu0
        %3416 = vdwg.mxu0
        %v3418 = vsel %vm1960, %v3364, 0
        %v3421 = vsel %vm1960, %v3368, 0
        %3423 = vmatprep.subr.bf16.mxu0 0
        %3424 = vmatpush1.bf16.xpose.msra.mxu0 %v3421
        %3425 = vmatprep.subr.bf16.mxu0 0
        %3426 = vmatpush1.bf16.xpose.msra.mxu0 0
        %3427 = vmatprep.subr.bf16.mxu0 0
        %3428 = vmatpush1.bf16.xpose.msra.mxu0 0
        %3429 = vmatprep.subr.bf16.mxu0 0
        %3430 = vmatpush1.bf16.xpose.msra.mxu0 0
        %3431 = vmatprep.subr.bf16.mxu0 0
        %3432 = vmatpush1.bf16.xpose.msra.mxu0 0
        %3433 = vmatprep.subr.bf16.mxu0 0
        %3434 = vmatpush1.bf16.xpose.msra.mxu0 0
        %3435 = vmatprep.subr.bf16.mxu0 0
        %3436 = vmatpush1.bf16.xpose.msra.mxu0 0
        %3437 = vmatprep.subr.bf16.mxu0 0
        %3438 = vmatpush1.bf16.xpose.msra.mxu0 0
        %3439 = vmatprep.subr.bf16.mxu0 0
        %3440 = vmatpush1.bf16.xpose.msra.mxu0 0
        %3441 = vmatprep.subr.bf16.mxu0 0
        %3442 = vmatpush1.bf16.xpose.msra.mxu0 0
        %3443 = vmatprep.subr.bf16.mxu0 0
        %3444 = vmatpush1.bf16.xpose.msra.mxu0 0
        %3445 = vmatprep.subr.bf16.mxu0 0
        %3446 = vmatpush1.bf16.xpose.msra.mxu0 0
        %3447 = vmatprep.subr.bf16.mxu0 0
        %3448 = vmatpush1.bf16.xpose.msra.mxu0 0
        %3449 = vmatprep.subr.bf16.mxu0 0
        %3450 = vmatpush1.bf16.xpose.msra.mxu0 0
        %3451 = vmatprep.subr.bf16.mxu0 0
        %3452 = vmatpush1.bf16.xpose.msra.mxu0 0
        %3453 = vmatprep.subr.bf16.mxu0 0
        %3454 = vmatpush1.bf16.xpose.msra.mxu0 0
        %3455 = vmatprep.mubr.bf16.mxu0 0
        %3456 = vmatmul.mubr.bf16.gmra.mrb[0].mxu0 %v3418
        %v3457 = vpop.f32.mrb[0].mxu0
        %v3458 = vadd.f32 0.0, %v3457
        %v3459 = vpop.f32.mrb[0].mxu0
        %v3460 = vpop.f32.mrb[0].mxu0
        %v3461 = vpop.f32.mrb[0].mxu0
        %3462 = vdwg.mxu0
        %v3464 = vsel %vm1960, %v3365, 0
        %v3467 = vsel %vm1960, %v3369, 0
        %3469 = vmatprep.subr.bf16.mxu0 0
        %3470 = vmatpush1.bf16.xpose.msra.mxu0 %v3467
        %3471 = vmatprep.subr.bf16.mxu0 0
        %3472 = vmatpush1.bf16.xpose.msra.mxu0 0
        %3473 = vmatprep.subr.bf16.mxu0 0
        %3474 = vmatpush1.bf16.xpose.msra.mxu0 0
        %3475 = vmatprep.subr.bf16.mxu0 0
        %3476 = vmatpush1.bf16.xpose.msra.mxu0 0
        %3477 = vmatprep.subr.bf16.mxu0 0
        %3478 = vmatpush1.bf16.xpose.msra.mxu0 0
        %3479 = vmatprep.subr.bf16.mxu0 0
        %3480 = vmatpush1.bf16.xpose.msra.mxu0 0
        %3481 = vmatprep.subr.bf16.mxu0 0
        %3482 = vmatpush1.bf16.xpose.msra.mxu0 0
        %3483 = vmatprep.subr.bf16.mxu0 0
        %3484 = vmatpush1.bf16.xpose.msra.mxu0 0
        %3485 = vmatprep.subr.bf16.mxu0 0
        %3486 = vmatpush1.bf16.xpose.msra.mxu0 0
        %3487 = vmatprep.subr.bf16.mxu0 0
        %3488 = vmatpush1.bf16.xpose.msra.mxu0 0
        %3489 = vmatprep.subr.bf16.mxu0 0
        %3490 = vmatpush1.bf16.xpose.msra.mxu0 0
        %3491 = vmatprep.subr.bf16.mxu0 0
        %3492 = vmatpush1.bf16.xpose.msra.mxu0 0
        %3493 = vmatprep.subr.bf16.mxu0 0
        %3494 = vmatpush1.bf16.xpose.msra.mxu0 0
        %3495 = vmatprep.subr.bf16.mxu0 0
        %3496 = vmatpush1.bf16.xpose.msra.mxu0 0
        %3497 = vmatprep.subr.bf16.mxu0 0
        %3498 = vmatpush1.bf16.xpose.msra.mxu0 0
        %3499 = vmatprep.subr.bf16.mxu0 0
        %3500 = vmatpush1.bf16.xpose.msra.mxu0 0
        %3501 = vmatprep.mubr.bf16.mxu0 0
        %3502 = vmatmul.mubr.bf16.gmra.mrb[0].mxu0 %v3464
        %v3503 = vpop.f32.mrb[0].mxu0
        %v3504 = vadd.f32 0.0, %v3503
        %v3505 = vpop.f32.mrb[0].mxu0
        %v3506 = vpop.f32.mrb[0].mxu0
        %v3507 = vpop.f32.mrb[0].mxu0
        %3508 = vdwg.mxu0
        %v3510 = vsel %vm1960, %v3366, 0
        %v3513 = vsel %vm1960, %v3370, 0
        %3515 = vmatprep.subr.bf16.mxu0 0
        %3516 = vmatpush1.bf16.xpose.msra.mxu0 %v3513
        %3517 = vmatprep.subr.bf16.mxu0 0
        %3518 = vmatpush1.bf16.xpose.msra.mxu0 0
        %3519 = vmatprep.subr.bf16.mxu0 0
        %3520 = vmatpush1.bf16.xpose.msra.mxu0 0
        %3521 = vmatprep.subr.bf16.mxu0 0
        %3522 = vmatpush1.bf16.xpose.msra.mxu0 0
        %3523 = vmatprep.subr.bf16.mxu0 0
        %3524 = vmatpush1.bf16.xpose.msra.mxu0 0
        %3525 = vmatprep.subr.bf16.mxu0 0
        %3526 = vmatpush1.bf16.xpose.msra.mxu0 0
        %3527 = vmatprep.subr.bf16.mxu0 0
        %3528 = vmatpush1.bf16.xpose.msra.mxu0 0
        %3529 = vmatprep.subr.bf16.mxu0 0
        %3530 = vmatpush1.bf16.xpose.msra.mxu0 0
        %3531 = vmatprep.subr.bf16.mxu0 0
        %3532 = vmatpush1.bf16.xpose.msra.mxu0 0
        %3533 = vmatprep.subr.bf16.mxu0 0
        %3534 = vmatpush1.bf16.xpose.msra.mxu0 0
        %3535 = vmatprep.subr.bf16.mxu0 0
        %3536 = vmatpush1.bf16.xpose.msra.mxu0 0
        %3537 = vmatprep.subr.bf16.mxu0 0
        %3538 = vmatpush1.bf16.xpose.msra.mxu0 0
        %3539 = vmatprep.subr.bf16.mxu0 0
        %3540 = vmatpush1.bf16.xpose.msra.mxu0 0
        %3541 = vmatprep.subr.bf16.mxu0 0
        %3542 = vmatpush1.bf16.xpose.msra.mxu0 0
        %3543 = vmatprep.subr.bf16.mxu0 0
        %3544 = vmatpush1.bf16.xpose.msra.mxu0 0
        %3545 = vmatprep.subr.bf16.mxu0 0
        %3546 = vmatpush1.bf16.xpose.msra.mxu0 0
        %3547 = vmatprep.mubr.bf16.mxu0 0
        %3548 = vmatmul.mubr.bf16.gmra.mrb[0].mxu0 %v3510
        %v3549 = vpop.f32.mrb[0].mxu0
        %v3550 = vadd.f32 0.0, %v3549
        %v3551 = vpop.f32.mrb[0].mxu0
        %v3552 = vpop.f32.mrb[0].mxu0
        %v3553 = vpop.f32.mrb[0].mxu0
        %3554 = vdwg.mxu0
        %v3555 = vsel %vm2146, -1e+30, %v3412
        %v3556 = vsel %vm2146, -1e+30, %v3458
        %v3557 = vsel %vm2146, -1e+30, %v3504
        %v3558 = vsel %vm2146, -1e+30, %v3550
        %v3559 = vsel %vm1960, %v3555, -inf
        %3560 = vmax.xlane.f32.xlu0 %v3559
        %v3561 = vpop.xlane.xlu0 %3560
        %v3562 = vsel %vm1960, %v3556, -inf
        %3563 = vmax.xlane.f32.xlu0 %v3562
        %v3564 = vpop.xlane.xlu0 %3563
        %v3565 = vsel %vm1960, %v3557, -inf
        %3566 = vmax.xlane.f32.xlu0 %v3565
        %v3567 = vpop.xlane.xlu0 %3566
        %v3568 = vsel %vm1960, %v3558, -inf
        %3569 = vmax.xlane.f32.xlu0 %v3568
        %v3570 = vpop.xlane.xlu0 %3569
        %v3571 = vsub.f32 %v3555, %v3561
        %v3572 = vsub.f32 %v3556, %v3564
        %v3573 = vsub.f32 %v3557, %v3567
        %v3574 = vsub.f32 %v3558, %v3570
        %v3575 = vmul.f32 %v3571, 1.442695
        %v3576 = vpow.pop %v3575
        %v3577 = vmul.f32 %v3572, 1.442695
        %v3578 = vpow.pop %v3577
        %v3579 = vmul.f32 %v3573, 1.442695
        %v3580 = vpow.pop %v3579
        %v3581 = vmul.f32 %v3574, 1.442695
        %v3582 = vpow.pop %v3581
        %v3583 = vsel %vm1960, %v3576, 0.0
        %3584 = vadd.xlane.f32.xlu0 %v3583
        %v3585 = vpop.xlane.xlu0 %3584
        %v3586 = vsel %vm1960, %v3578, 0.0
        %3587 = vadd.xlane.f32.xlu0 %v3586
        %v3588 = vpop.xlane.xlu0 %3587
        %v3589 = vsel %vm1960, %v3580, 0.0
        %3590 = vadd.xlane.f32.xlu0 %v3589
        %v3591 = vpop.xlane.xlu0 %3590
        %v3592 = vsel %vm1960, %v3582, 0.0
        %3593 = vadd.xlane.f32.xlu0 %v3592
        %v3594 = vpop.xlane.xlu0 %3593
        %v3595 = vrcp.pop %v3585
        %v3596 = vrcp.pop %v3588
        %v3597 = vrcp.pop %v3591
        %v3598 = vrcp.pop %v3594
        %v3599 = vmul.f32 %v3576, %v3595
        %v3600 = vmul.f32 %v3578, %v3596
        %v3601 = vmul.f32 %v3580, %v3597
        %v3602 = vmul.f32 %v3582, %v3598
        %v3603 = vpack.c.bf16 %v3599, %v3599
        %v3604 = vpack.c.bf16 %v3600, %v3600
        %v3605 = vpack.c.bf16 %v3601, %v3601
        %v3606 = vpack.c.bf16 %v3602, %v3602
        %v3607 = vpack.c.bf16 %v3311, %v3311
        %v3608 = vpack.c.bf16 %v3361, %v3361
        %v3609 = vpack.c.bf16 %v3312, %v3312
        %v3610 = vpack.c.bf16 %v3362, %v3362
        %v3612 = vsel %vm1960, %v3603, 0
        %v3615 = vsel %vm2206, %v3607, 0
        %3617 = vmatprep.subr.bf16.mxu0 0
        %3618 = vmatpush1.bf16.msra.mxu0 %v3615
        %3619 = vmatprep.subr.bf16.mxu0 0
        %3620 = vmatpush1.bf16.msra.mxu0 0
        %3621 = vmatprep.subr.bf16.mxu0 0
        %3622 = vmatpush1.bf16.msra.mxu0 0
        %3623 = vmatprep.subr.bf16.mxu0 0
        %3624 = vmatpush1.bf16.msra.mxu0 0
        %3625 = vmatprep.subr.bf16.mxu0 0
        %3626 = vmatpush1.bf16.msra.mxu0 0
        %3627 = vmatprep.subr.bf16.mxu0 0
        %3628 = vmatpush1.bf16.msra.mxu0 0
        %3629 = vmatprep.subr.bf16.mxu0 0
        %3630 = vmatpush1.bf16.msra.mxu0 0
        %3631 = vmatprep.subr.bf16.mxu0 0
        %3632 = vmatpush1.bf16.msra.mxu0 0
        %3633 = vmatprep.subr.bf16.mxu0 0
        %3634 = vmatpush1.bf16.msra.mxu0 0
        %3635 = vmatprep.subr.bf16.mxu0 0
        %3636 = vmatpush1.bf16.msra.mxu0 0
        %3637 = vmatprep.subr.bf16.mxu0 0
        %3638 = vmatpush1.bf16.msra.mxu0 0
        %3639 = vmatprep.subr.bf16.mxu0 0
        %3640 = vmatpush1.bf16.msra.mxu0 0
        %3641 = vmatprep.subr.bf16.mxu0 0
        %3642 = vmatpush1.bf16.msra.mxu0 0
        %3643 = vmatprep.subr.bf16.mxu0 0
        %3644 = vmatpush1.bf16.msra.mxu0 0
        %3645 = vmatprep.subr.bf16.mxu0 0
        %3646 = vmatpush1.bf16.msra.mxu0 0
        %3647 = vmatprep.subr.bf16.mxu0 0
        %3648 = vmatpush1.bf16.msra.mxu0 0
        %3649 = vmatprep.mubr.bf16.mxu0 0
        %3650 = vmatmul.mubr.bf16.gmra.mrb[0].mxu0 %v3612
        %v3651 = vpop.f32.mrb[0].mxu0
        %v3652 = vadd.f32 0.0, %v3651
        %v3653 = vpop.f32.mrb[0].mxu0
        %v3654 = vpop.f32.mrb[0].mxu0
        %v3655 = vpop.f32.mrb[0].mxu0
        %3656 = vdwg.mxu0
        %v3658 = vsel %vm1960, %v3604, 0
        %v3661 = vsel %vm2206, %v3608, 0
        %3663 = vmatprep.subr.bf16.mxu0 0
        %3664 = vmatpush1.bf16.msra.mxu0 %v3661
        %3665 = vmatprep.subr.bf16.mxu0 0
        %3666 = vmatpush1.bf16.msra.mxu0 0
        %3667 = vmatprep.subr.bf16.mxu0 0
        %3668 = vmatpush1.bf16.msra.mxu0 0
        %3669 = vmatprep.subr.bf16.mxu0 0
        %3670 = vmatpush1.bf16.msra.mxu0 0
        %3671 = vmatprep.subr.bf16.mxu0 0
        %3672 = vmatpush1.bf16.msra.mxu0 0
        %3673 = vmatprep.subr.bf16.mxu0 0
        %3674 = vmatpush1.bf16.msra.mxu0 0
        %3675 = vmatprep.subr.bf16.mxu0 0
        %3676 = vmatpush1.bf16.msra.mxu0 0
        %3677 = vmatprep.subr.bf16.mxu0 0
        %3678 = vmatpush1.bf16.msra.mxu0 0
        %3679 = vmatprep.subr.bf16.mxu0 0
        %3680 = vmatpush1.bf16.msra.mxu0 0
        %3681 = vmatprep.subr.bf16.mxu0 0
        %3682 = vmatpush1.bf16.msra.mxu0 0
        %3683 = vmatprep.subr.bf16.mxu0 0
        %3684 = vmatpush1.bf16.msra.mxu0 0
        %3685 = vmatprep.subr.bf16.mxu0 0
        %3686 = vmatpush1.bf16.msra.mxu0 0
        %3687 = vmatprep.subr.bf16.mxu0 0
        %3688 = vmatpush1.bf16.msra.mxu0 0
        %3689 = vmatprep.subr.bf16.mxu0 0
        %3690 = vmatpush1.bf16.msra.mxu0 0
        %3691 = vmatprep.subr.bf16.mxu0 0
        %3692 = vmatpush1.bf16.msra.mxu0 0
        %3693 = vmatprep.subr.bf16.mxu0 0
        %3694 = vmatpush1.bf16.msra.mxu0 0
        %3695 = vmatprep.mubr.bf16.mxu0 0
        %3696 = vmatmul.mubr.bf16.gmra.mrb[0].mxu0 %v3658
        %v3697 = vpop.f32.mrb[0].mxu0
        %v3698 = vadd.f32 0.0, %v3697
        %v3699 = vpop.f32.mrb[0].mxu0
        %v3700 = vpop.f32.mrb[0].mxu0
        %v3701 = vpop.f32.mrb[0].mxu0
        %3702 = vdwg.mxu0
        %v3704 = vsel %vm1960, %v3605, 0
        %v3707 = vsel %vm2206, %v3609, 0
        %3709 = vmatprep.subr.bf16.mxu0 0
        %3710 = vmatpush1.bf16.msra.mxu0 %v3707
        %3711 = vmatprep.subr.bf16.mxu0 0
        %3712 = vmatpush1.bf16.msra.mxu0 0
        %3713 = vmatprep.subr.bf16.mxu0 0
        %3714 = vmatpush1.bf16.msra.mxu0 0
        %3715 = vmatprep.subr.bf16.mxu0 0
        %3716 = vmatpush1.bf16.msra.mxu0 0
        %3717 = vmatprep.subr.bf16.mxu0 0
        %3718 = vmatpush1.bf16.msra.mxu0 0
        %3719 = vmatprep.subr.bf16.mxu0 0
        %3720 = vmatpush1.bf16.msra.mxu0 0
        %3721 = vmatprep.subr.bf16.mxu0 0
        %3722 = vmatpush1.bf16.msra.mxu0 0
        %3723 = vmatprep.subr.bf16.mxu0 0
        %3724 = vmatpush1.bf16.msra.mxu0 0
        %3725 = vmatprep.subr.bf16.mxu0 0
        %3726 = vmatpush1.bf16.msra.mxu0 0
        %3727 = vmatprep.subr.bf16.mxu0 0
        %3728 = vmatpush1.bf16.msra.mxu0 0
        %3729 = vmatprep.subr.bf16.mxu0 0
        %3730 = vmatpush1.bf16.msra.mxu0 0
        %3731 = vmatprep.subr.bf16.mxu0 0
        %3732 = vmatpush1.bf16.msra.mxu0 0
        %3733 = vmatprep.subr.bf16.mxu0 0
        %3734 = vmatpush1.bf16.msra.mxu0 0
        %3735 = vmatprep.subr.bf16.mxu0 0
        %3736 = vmatpush1.bf16.msra.mxu0 0
        %3737 = vmatprep.subr.bf16.mxu0 0
        %3738 = vmatpush1.bf16.msra.mxu0 0
        %3739 = vmatprep.subr.bf16.mxu0 0
        %3740 = vmatpush1.bf16.msra.mxu0 0
        %3741 = vmatprep.mubr.bf16.mxu0 0
        %3742 = vmatmul.mubr.bf16.gmra.mrb[0].mxu0 %v3704
        %v3743 = vpop.f32.mrb[0].mxu0
        %v3744 = vadd.f32 0.0, %v3743
        %v3745 = vpop.f32.mrb[0].mxu0
        %v3746 = vpop.f32.mrb[0].mxu0
        %v3747 = vpop.f32.mrb[0].mxu0
        %3748 = vdwg.mxu0
        %v3750 = vsel %vm1960, %v3606, 0
        %v3753 = vsel %vm2206, %v3610, 0
        %3755 = vmatprep.subr.bf16.mxu0 0
        %3756 = vmatpush1.bf16.msra.mxu0 %v3753
        %3757 = vmatprep.subr.bf16.mxu0 0
        %3758 = vmatpush1.bf16.msra.mxu0 0
        %3759 = vmatprep.subr.bf16.mxu0 0
        %3760 = vmatpush1.bf16.msra.mxu0 0
        %3761 = vmatprep.subr.bf16.mxu0 0
        %3762 = vmatpush1.bf16.msra.mxu0 0
        %3763 = vmatprep.subr.bf16.mxu0 0
        %3764 = vmatpush1.bf16.msra.mxu0 0
        %3765 = vmatprep.subr.bf16.mxu0 0
        %3766 = vmatpush1.bf16.msra.mxu0 0
        %3767 = vmatprep.subr.bf16.mxu0 0
        %3768 = vmatpush1.bf16.msra.mxu0 0
        %3769 = vmatprep.subr.bf16.mxu0 0
        %3770 = vmatpush1.bf16.msra.mxu0 0
        %3771 = vmatprep.subr.bf16.mxu0 0
        %3772 = vmatpush1.bf16.msra.mxu0 0
        %3773 = vmatprep.subr.bf16.mxu0 0
        %3774 = vmatpush1.bf16.msra.mxu0 0
        %3775 = vmatprep.subr.bf16.mxu0 0
        %3776 = vmatpush1.bf16.msra.mxu0 0
        %3777 = vmatprep.subr.bf16.mxu0 0
        %3778 = vmatpush1.bf16.msra.mxu0 0
        %3779 = vmatprep.subr.bf16.mxu0 0
        %3780 = vmatpush1.bf16.msra.mxu0 0
        %3781 = vmatprep.subr.bf16.mxu0 0
        %3782 = vmatpush1.bf16.msra.mxu0 0
        %3783 = vmatprep.subr.bf16.mxu0 0
        %3784 = vmatpush1.bf16.msra.mxu0 0
        %3785 = vmatprep.subr.bf16.mxu0 0
        %3786 = vmatpush1.bf16.msra.mxu0 0
        %3787 = vmatprep.mubr.bf16.mxu0 0
        %3788 = vmatmul.mubr.bf16.gmra.mrb[0].mxu0 %v3750
        %v3789 = vpop.f32.mrb[0].mxu0
        %v3790 = vadd.f32 0.0, %v3789
        %v3791 = vpop.f32.mrb[0].mxu0
        %v3792 = vpop.f32.mrb[0].mxu0
        %v3793 = vpop.f32.mrb[0].mxu0
        %3794 = vdwg.mxu0
        %v3795 = vcombine.high %v3652, 0.0
        %v3797 = vunpack.c.l.s4 1983009808
        %v3798 = vunpack.c.0.s8 %v3797
        %v3799 = vlaneseq
        %v3800 = vshrl.u32 %v3799, 7
        %v3801 = vsub.s32 %v3798, %v3800
        %v3802 = vrot.slane %v3652, %v3801
        %v3804 = vunpack.c.l.s4 1983009808
        %v3805 = vunpack.c.0.s8 %v3804
        %v3806 = vlaneseq
        %v3807 = vshrl.u32 %v3806, 7
        %v3808 = vsub.s32 %v3805, %v3807
        %v3809 = vrot.slane %v3795, %v3808
        %v3810 = vcombine.high %v3744, 0.0
        %v3812 = vunpack.c.l.s4 1983009808
        %v3813 = vunpack.c.0.s8 %v3812
        %v3814 = vlaneseq
        %v3815 = vshrl.u32 %v3814, 7
        %v3816 = vsub.s32 %v3813, %v3815
        %v3817 = vrot.slane %v3744, %v3816
        %v3819 = vunpack.c.l.s4 1983009808
        %v3820 = vunpack.c.0.s8 %v3819
        %v3821 = vlaneseq
        %v3822 = vshrl.u32 %v3821, 7
        %v3823 = vsub.s32 %v3820, %v3822
        %v3824 = vrot.slane %v3810, %v3823
        %v3825 = vcombine.low %v3802, %v3817
        %v3826 = vcombine.high %v3802, %v3817
        %v3828 = vunpack.c.l.s4 1934713408
        %v3829 = vunpack.c.0.s8 %v3828
        %v3830 = vlaneseq
        %v3831 = vshrl.u32 %v3830, 7
        %v3832 = vsub.s32 %v3829, %v3831
        %v3833 = vrot.slane %v3825, %v3832
        %v3835 = vunpack.c.l.s4 1934713408
        %v3836 = vunpack.c.0.s8 %v3835
        %v3837 = vlaneseq
        %v3838 = vshrl.u32 %v3837, 7
        %v3839 = vsub.s32 %v3836, %v3838
        %v3840 = vrot.slane %v3826, %v3839
        %v3841 = vcombine.low %v3809, %v3824
        %v3842 = vcombine.high %v3809, %v3824
        %v3844 = vunpack.c.l.s4 1934713408
        %v3845 = vunpack.c.0.s8 %v3844
        %v3846 = vlaneseq
        %v3847 = vshrl.u32 %v3846, 7
        %v3848 = vsub.s32 %v3845, %v3847
        %v3849 = vrot.slane %v3841, %v3848
        %v3851 = vunpack.c.l.s4 1934713408
        %v3852 = vunpack.c.0.s8 %v3851
        %v3853 = vlaneseq
        %v3854 = vshrl.u32 %v3853, 7
        %v3855 = vsub.s32 %v3852, %v3854
        %v3856 = vrot.slane %v3842, %v3855
        %v3857 = vcombine.high %v3833, 0.0
        %v3858 = vcombine.high %v3840, 0.0
        %v3859 = vcombine.high %v3849, 0.0
        %v3860 = vcombine.high %v3856, 0.0
        %v3861 = vcombine.high %v3698, 0.0
        %v3863 = vunpack.c.l.s4 1983009808
        %v3864 = vunpack.c.0.s8 %v3863
        %v3865 = vlaneseq
        %v3866 = vshrl.u32 %v3865, 7
        %v3867 = vsub.s32 %v3864, %v3866
        %v3868 = vrot.slane %v3698, %v3867
        %v3870 = vunpack.c.l.s4 1983009808
        %v3871 = vunpack.c.0.s8 %v3870
        %v3872 = vlaneseq
        %v3873 = vshrl.u32 %v3872, 7
        %v3874 = vsub.s32 %v3871, %v3873
        %v3875 = vrot.slane %v3861, %v3874
        %v3876 = vcombine.high %v3790, 0.0
        %v3878 = vunpack.c.l.s4 1983009808
        %v3879 = vunpack.c.0.s8 %v3878
        %v3880 = vlaneseq
        %v3881 = vshrl.u32 %v3880, 7
        %v3882 = vsub.s32 %v3879, %v3881
        %v3883 = vrot.slane %v3790, %v3882
        %v3885 = vunpack.c.l.s4 1983009808
        %v3886 = vunpack.c.0.s8 %v3885
        %v3887 = vlaneseq
        %v3888 = vshrl.u32 %v3887, 7
        %v3889 = vsub.s32 %v3886, %v3888
        %v3890 = vrot.slane %v3876, %v3889
        %v3891 = vcombine.low %v3868, %v3883
        %v3892 = vcombine.high %v3868, %v3883
        %v3894 = vunpack.c.l.s4 1934713408
        %v3895 = vunpack.c.0.s8 %v3894
        %v3896 = vlaneseq
        %v3897 = vshrl.u32 %v3896, 7
        %v3898 = vsub.s32 %v3895, %v3897
        %v3899 = vrot.slane %v3891, %v3898
        %v3901 = vunpack.c.l.s4 1934713408
        %v3902 = vunpack.c.0.s8 %v3901
        %v3903 = vlaneseq
        %v3904 = vshrl.u32 %v3903, 7
        %v3905 = vsub.s32 %v3902, %v3904
        %v3906 = vrot.slane %v3892, %v3905
        %v3907 = vcombine.low %v3875, %v3890
        %v3908 = vcombine.high %v3875, %v3890
        %v3910 = vunpack.c.l.s4 1934713408
        %v3911 = vunpack.c.0.s8 %v3910
        %v3912 = vlaneseq
        %v3913 = vshrl.u32 %v3912, 7
        %v3914 = vsub.s32 %v3911, %v3913
        %v3915 = vrot.slane %v3907, %v3914
        %v3917 = vunpack.c.l.s4 1934713408
        %v3918 = vunpack.c.0.s8 %v3917
        %v3919 = vlaneseq
        %v3920 = vshrl.u32 %v3919, 7
        %v3921 = vsub.s32 %v3918, %v3920
        %v3922 = vrot.slane %v3908, %v3921
        %v3923 = vcombine.high %v3899, 0.0
        %v3924 = vcombine.high %v3906, 0.0
        %v3925 = vcombine.high %v3915, 0.0
        %v3926 = vcombine.high %v3922, 0.0
        %v3927 = vcombine.low %v3833, %v3840
        %v3929 = vunpack.c.l.s4 1983009808
        %v3930 = vunpack.c.0.s8 %v3929
        %v3931 = vlaneseq
        %v3932 = vshrl.u32 %v3931, 7
        %v3933 = vsub.s32 %v3930, %v3932
        %v3934 = vrot.slane %v3927, %v3933
        %v3935 = vcombine.low %v3857, %v3858
        %v3937 = vunpack.c.l.s4 1983009808
        %v3938 = vunpack.c.0.s8 %v3937
        %v3939 = vlaneseq
        %v3940 = vshrl.u32 %v3939, 7
        %v3941 = vsub.s32 %v3938, %v3940
        %v3942 = vrot.slane %v3935, %v3941
        %v3943 = vcombine.low %v3849, %v3856
        %v3945 = vunpack.c.l.s4 1983009808
        %v3946 = vunpack.c.0.s8 %v3945
        %v3947 = vlaneseq
        %v3948 = vshrl.u32 %v3947, 7
        %v3949 = vsub.s32 %v3946, %v3948
        %v3950 = vrot.slane %v3943, %v3949
        %v3951 = vcombine.low %v3859, %v3860
        %v3953 = vunpack.c.l.s4 1983009808
        %v3954 = vunpack.c.0.s8 %v3953
        %v3955 = vlaneseq
        %v3956 = vshrl.u32 %v3955, 7
        %v3957 = vsub.s32 %v3954, %v3956
        %v3958 = vrot.slane %v3951, %v3957
        %v3959 = vcombine.low %v3934, %v3942
        %v3961 = vunpack.c.l.s4 1934713408
        %v3962 = vunpack.c.0.s8 %v3961
        %v3963 = vlaneseq
        %v3964 = vshrl.u32 %v3963, 7
        %v3965 = vsub.s32 %v3962, %v3964
        %v3966 = vrot.slane %v3959, %v3965
        %v3967 = vcombine.low %v3950, %v3958
        %v3969 = vunpack.c.l.s4 1934713408
        %v3970 = vunpack.c.0.s8 %v3969
        %v3971 = vlaneseq
        %v3972 = vshrl.u32 %v3971, 7
        %v3973 = vsub.s32 %v3970, %v3972
        %v3974 = vrot.slane %v3967, %v3973
        %v3975 = vcombine.low %v3966, %v3974
        %v3976 = vcombine.high %v3966, %v3974
        %v3977 = vcombine.low %v3899, %v3906
        %v3979 = vunpack.c.l.s4 1983009808
        %v3980 = vunpack.c.0.s8 %v3979
        %v3981 = vlaneseq
        %v3982 = vshrl.u32 %v3981, 7
        %v3983 = vsub.s32 %v3980, %v3982
        %v3984 = vrot.slane %v3977, %v3983
        %v3985 = vcombine.low %v3923, %v3924
        %v3987 = vunpack.c.l.s4 1983009808
        %v3988 = vunpack.c.0.s8 %v3987
        %v3989 = vlaneseq
        %v3990 = vshrl.u32 %v3989, 7
        %v3991 = vsub.s32 %v3988, %v3990
        %v3992 = vrot.slane %v3985, %v3991
        %v3993 = vcombine.low %v3915, %v3922
        %v3995 = vunpack.c.l.s4 1983009808
        %v3996 = vunpack.c.0.s8 %v3995
        %v3997 = vlaneseq
        %v3998 = vshrl.u32 %v3997, 7
        %v3999 = vsub.s32 %v3996, %v3998
        %v4000 = vrot.slane %v3993, %v3999
        %v4001 = vcombine.low %v3925, %v3926
        %v4003 = vunpack.c.l.s4 1983009808
        %v4004 = vunpack.c.0.s8 %v4003
        %v4005 = vlaneseq
        %v4006 = vshrl.u32 %v4005, 7
        %v4007 = vsub.s32 %v4004, %v4006
        %v4008 = vrot.slane %v4001, %v4007
        %v4009 = vcombine.low %v3984, %v3992
        %v4011 = vunpack.c.l.s4 1934713408
        %v4012 = vunpack.c.0.s8 %v4011
        %v4013 = vlaneseq
        %v4014 = vshrl.u32 %v4013, 7
        %v4015 = vsub.s32 %v4012, %v4014
        %v4016 = vrot.slane %v4009, %v4015
        %v4017 = vcombine.low %v4000, %v4008
        %v4019 = vunpack.c.l.s4 1934713408
        %v4020 = vunpack.c.0.s8 %v4019
        %v4021 = vlaneseq
        %v4022 = vshrl.u32 %v4021, 7
        %v4023 = vsub.s32 %v4020, %v4022
        %v4024 = vrot.slane %v4017, %v4023
        %v4025 = vcombine.low %v4016, %v4024
        %v4026 = vcombine.high %v4016, %v4024
        %4029 = vrot.lane.b32.xlu0 %v3976, 8
        %v4030 = vpop.permute.xlu0 %4029
        %4031 = vrot.lane.b32.xlu0 %v4026, 8
        %v4032 = vpop.permute.xlu0 %4031
        %v4035 = vsel %vm1960, %v3975, %v4030
        %v4036 = vsel %vm1960, %v4025, %v4032
        %v4037 = vpack.c.bf16 %v4036, %v4035
        %v4040 = vunpack.c.l.b16 %v1230
        %v4041 = vunpack.c.l.b16 %v1231
        %v4042 = vpack.c.b16 %v4041, %v4040
        %vm4044 = vcmask 130048
        %v4046 = vsel %vm4044, %v4037, 0
        %4048 = vmatprep.subr.bf16.mxu0 0
        %4049 = vmatpush1.bf16.msra.mxu0 %v4042
        %4050 = vmatprep.subr.bf16.mxu0 0
        %4051 = vmatpush1.bf16.msra.mxu0 0
        %4052 = vmatprep.subr.bf16.mxu0 0
        %4053 = vmatpush1.bf16.msra.mxu0 0
        %4054 = vmatprep.subr.bf16.mxu0 0
        %4055 = vmatpush1.bf16.msra.mxu0 0
        %4056 = vmatprep.subr.bf16.mxu0 0
        %4057 = vmatpush1.bf16.msra.mxu0 0
        %4058 = vmatprep.subr.bf16.mxu0 0
        %4059 = vmatpush1.bf16.msra.mxu0 0
        %4060 = vmatprep.subr.bf16.mxu0 0
        %4061 = vmatpush1.bf16.msra.mxu0 0
        %4062 = vmatprep.subr.bf16.mxu0 0
        %4063 = vmatpush1.bf16.msra.mxu0 0
        %4064 = vmatprep.subr.bf16.mxu0 0
        %4065 = vmatpush1.bf16.msra.mxu0 0
        %4066 = vmatprep.subr.bf16.mxu0 0
        %4067 = vmatpush1.bf16.msra.mxu0 0
        %4068 = vmatprep.subr.bf16.mxu0 0
        %4069 = vmatpush1.bf16.msra.mxu0 0
        %4070 = vmatprep.subr.bf16.mxu0 0
        %4071 = vmatpush1.bf16.msra.mxu0 0
        %4072 = vmatprep.subr.bf16.mxu0 0
        %4073 = vmatpush1.bf16.msra.mxu0 0
        %4074 = vmatprep.subr.bf16.mxu0 0
        %4075 = vmatpush1.bf16.msra.mxu0 0
        %4076 = vmatprep.subr.bf16.mxu0 0
        %4077 = vmatpush1.bf16.msra.mxu0 0
        %4078 = vmatprep.subr.bf16.mxu0 0
        %4079 = vmatpush1.bf16.msra.mxu0 0
        %4080 = vmatprep.mubr.bf16.mxu0 0
        %4081 = vmatmul.mubr.bf16.gmra.mrb[0].mxu0 %v4046
        %v4082 = vpop.f32.mrb[0].mxu0
        %v4083 = vadd.f32 0.0, %v4082
        %v4084 = vpop.f32.mrb[0].mxu0
        %v4085 = vpop.f32.mrb[0].mxu0
        %v4086 = vadd.f32 0.0, %v4085
        %v4087 = vpop.f32.mrb[0].mxu0
        %4088 = vdwg.mxu0
        %v4091 = vunpack.c.l.b16 %v1228
        %v4092 = vunpack.c.l.b16 %v1229
        %v4093 = vpack.c.b16 %v4092, %v4091
        %v4096 = vsel %vm4044, %v2630, 0
        %4098 = vmatprep.subr.bf16.mxu0 0
        %4099 = vmatpush1.bf16.msra.mxu0 %v4093
        %4100 = vmatprep.subr.bf16.mxu0 0
        %4101 = vmatpush1.bf16.msra.mxu0 0
        %4102 = vmatprep.subr.bf16.mxu0 0
        %4103 = vmatpush1.bf16.msra.mxu0 0
        %4104 = vmatprep.subr.bf16.mxu0 0
        %4105 = vmatpush1.bf16.msra.mxu0 0
        %4106 = vmatprep.subr.bf16.mxu0 0
        %4107 = vmatpush1.bf16.msra.mxu0 0
        %4108 = vmatprep.subr.bf16.mxu0 0
        %4109 = vmatpush1.bf16.msra.mxu0 0
        %4110 = vmatprep.subr.bf16.mxu0 0
        %4111 = vmatpush1.bf16.msra.mxu0 0
        %4112 = vmatprep.subr.bf16.mxu0 0
        %4113 = vmatpush1.bf16.msra.mxu0 0
        %4114 = vmatprep.subr.bf16.mxu0 0
        %4115 = vmatpush1.bf16.msra.mxu0 0
        %4116 = vmatprep.subr.bf16.mxu0 0
        %4117 = vmatpush1.bf16.msra.mxu0 0
        %4118 = vmatprep.subr.bf16.mxu0 0
        %4119 = vmatpush1.bf16.msra.mxu0 0
        %4120 = vmatprep.subr.bf16.mxu0 0
        %4121 = vmatpush1.bf16.msra.mxu0 0
        %4122 = vmatprep.subr.bf16.mxu0 0
        %4123 = vmatpush1.bf16.msra.mxu0 0
        %4124 = vmatprep.subr.bf16.mxu0 0
        %4125 = vmatpush1.bf16.msra.mxu0 0
        %4126 = vmatprep.subr.bf16.mxu0 0
        %4127 = vmatpush1.bf16.msra.mxu0 0
        %4128 = vmatprep.subr.bf16.mxu0 0
        %4129 = vmatpush1.bf16.msra.mxu0 0
        %4130 = vmatprep.mubr.bf16.mxu0 0
        %4131 = vmatmul.mubr.bf16.gmra.mrb[0].mxu0 %v4096
        %v4132 = vpop.f32.mrb[0].mxu0
        %v4133 = vadd.f32 %v4083, %v4132
        %v4134 = vpop.f32.mrb[0].mxu0
        %v4135 = vpop.f32.mrb[0].mxu0
        %v4136 = vadd.f32 %v4086, %v4135
        %v4137 = vpop.f32.mrb[0].mxu0
        %4138 = vdwg.mxu0
        %v4139 = vadd.f32 %v1000, %v4133
        %v4140 = vadd.f32 %v1001, %v4136
        %v4141 = vld [vmem:[%s817] sm:$0x1]
        %v4143 = vlaneseq
        %v4144 = vshrl.u32 %v4143, 7
        %v4145 = vsub.s32 0, %v4144
        %v4146 = vrot.slane %v4141, %v4145
        %v4148 = vadd.f32 %v4139, %v4146
        %v4149 = vadd.f32 %v4140, %v4146
        %v4150 = vld [vmem:[%s841] sm:$0x1]
        %v4151 = vld [vmem:[%s849] sm:$0x1]
        %v4152 = vsel %vm1004, %v4148, 0.0
        %4153 = vadd.xlane.f32.xlu0 %v4152
        %v4154 = vpop.xlane.xlu0 %4153
        %v4155 = vsel %vm1004, %v4149, 0.0
        %4156 = vadd.xlane.f32.xlu0 %v4155
        %v4157 = vpop.xlane.xlu0 %4156
        %v4158 = vmul.f32 %v4154, %v1011
        %v4159 = vmul.f32 %v4157, %v1011
        %v4160 = vsub.f32 %v4148, %v4158
        %v4161 = vsub.f32 %v4149, %v4159
        %v4162 = vmul.f32 %v4160, %v4160
        %v4163 = vmul.f32 %v4161, %v4161
        %v4164 = vsel %vm1004, %v4162, 0.0
        %4165 = vadd.xlane.f32.xlu0 %v4164
        %v4166 = vpop.xlane.xlu0 %4165
        %v4167 = vsel %vm1004, %v4163, 0.0
        %4168 = vadd.xlane.f32.xlu0 %v4167
        %v4169 = vpop.xlane.xlu0 %4168
        %v4170 = vmul.f32 %v4166, %v1011
        %v4171 = vmul.f32 %v4169, %v1011
        %v4172 = vadd.f32 %v4170, 1e-05
        %v4173 = vadd.f32 %v4171, 1e-05
        %v4174 = vrsqrt.pop %v4172
        %v4175 = vrsqrt.pop %v4173
        %v4176 = vmul.f32 %v4160, %v4174
        %v4177 = vmul.f32 %v4161, %v4175
        %v4179 = vlaneseq
        %v4180 = vshrl.u32 %v4179, 7
        %v4181 = vsub.s32 0, %v4180
        %v4182 = vrot.slane %v4150, %v4181
        %v4184 = vmul.f32 %v4176, %v4182
        %v4185 = vmul.f32 %v4177, %v4182
        %v4187 = vlaneseq
        %v4188 = vshrl.u32 %v4187, 7
        %v4189 = vsub.s32 0, %v4188
        %v4190 = vrot.slane %v4151, %v4189
        %v4192 = vadd.f32 %v4184, %v4190
        %v4193 = vadd.f32 %v4185, %v4190
        %v4194 = vpack.c.bf16 %v4193, %v4192
        %v4195 = vld [vmem:[%s858] sm:$0xf]
        %v4196 = vld [vmem:[%s858 + $0x4] sm:$0xf]
        %v4197 = vld [vmem:[%s858 + $0x8] sm:$0xf]
        %v4198 = vld [vmem:[%s858 + $0xc] sm:$0xf]
        %v4199 = vld [vmem:[%s866] sm:$0x1]
        %v4200 = vld [vmem:[%s875] sm:$0xf]
        %v4201 = vld [vmem:[%s875 + $0x4] sm:$0xf]
        %v4202 = vld [vmem:[%s875 + $0x8] sm:$0xf]
        %v4203 = vld [vmem:[%s875 + $0xc] sm:$0xf]
        %v4204 = vld [vmem:[%s875 + $0x10] sm:$0xf]
        %v4205 = vld [vmem:[%s875 + $0x14] sm:$0xf]
        %v4206 = vld [vmem:[%s875 + $0x18] sm:$0xf]
        %v4207 = vld [vmem:[%s875 + $0x1c] sm:$0xf]
        %v4208 = vld [vmem:[%s875 + $0x20] sm:$0xf]
        %v4209 = vld [vmem:[%s875 + $0x24] sm:$0xf]
        %v4210 = vld [vmem:[%s875 + $0x28] sm:$0xf]
        %v4211 = vld [vmem:[%s875 + $0x2c] sm:$0xf]
        %v4212 = vld [vmem:[%s875 + $0x30] sm:$0xf]
        %v4213 = vld [vmem:[%s875 + $0x34] sm:$0xf]
        %v4214 = vld [vmem:[%s875 + $0x38] sm:$0xf]
        %v4215 = vld [vmem:[%s875 + $0x3c] sm:$0xf]
        %v4217 = vlaneseq
        %v4218 = vshrl.u32 %v4217, 7
        %v4219 = vsub.s32 0, %v4218
        %v4220 = vrot.slane %v4199, %v4219
        %v4226 = vunpack.c.l.b16 %v4195
        %v4227 = vunpack.c.l.b16 %v4196
        %v4228 = vunpack.c.l.b16 %v4197
        %v4229 = vunpack.c.l.b16 %v4198
        %v4230 = vpack.c.b16 %v4227, %v4226
        %v4231 = vpack.c.b16 %v4229, %v4228
        %v4235 = vsel %vm1004, %v4194, 0
        %4237 = vmatprep.subr.bf16.mxu0 0
        %4238 = vmatpush1.bf16.msra.mxu0 %v4230
        %4239 = vmatprep.subr.bf16.mxu0 0
        %4240 = vmatpush1.bf16.msra.mxu0 %v4231
        %4241 = vmatprep.subr.bf16.mxu0 0
        %4242 = vmatpush1.bf16.msra.mxu0 0
        %4243 = vmatprep.subr.bf16.mxu0 0
        %4244 = vmatpush1.bf16.msra.mxu0 0
        %4245 = vmatprep.subr.bf16.mxu0 0
        %4246 = vmatpush1.bf16.msra.mxu0 0
        %4247 = vmatprep.subr.bf16.mxu0 0
        %4248 = vmatpush1.bf16.msra.mxu0 0
        %4249 = vmatprep.subr.bf16.mxu0 0
        %4250 = vmatpush1.bf16.msra.mxu0 0
        %4251 = vmatprep.subr.bf16.mxu0 0
        %4252 = vmatpush1.bf16.msra.mxu0 0
        %4253 = vmatprep.subr.bf16.mxu0 0
        %4254 = vmatpush1.bf16.msra.mxu0 0
        %4255 = vmatprep.subr.bf16.mxu0 0
        %4256 = vmatpush1.bf16.msra.mxu0 0
        %4257 = vmatprep.subr.bf16.mxu0 0
        %4258 = vmatpush1.bf16.msra.mxu0 0
        %4259 = vmatprep.subr.bf16.mxu0 0
        %4260 = vmatpush1.bf16.msra.mxu0 0
        %4261 = vmatprep.subr.bf16.mxu0 0
        %4262 = vmatpush1.bf16.msra.mxu0 0
        %4263 = vmatprep.subr.bf16.mxu0 0
        %4264 = vmatpush1.bf16.msra.mxu0 0
        %4265 = vmatprep.subr.bf16.mxu0 0
        %4266 = vmatpush1.bf16.msra.mxu0 0
        %4267 = vmatprep.subr.bf16.mxu0 0
        %4268 = vmatpush1.bf16.msra.mxu0 0
        %4269 = vmatprep.mubr.bf16.mxu0 0
        %4270 = vmatmul.mubr.bf16.gmra.mrb[0].mxu0 %v4235
        %v4271 = vpop.f32.mrb[0].mxu0
        %v4272 = vadd.f32 %v4220, %v4271
        %v4273 = vpop.f32.mrb[0].mxu0
        %v4274 = vpop.f32.mrb[0].mxu0
        %v4275 = vadd.f32 %v4220, %v4274
        %v4276 = vpop.f32.mrb[0].mxu0
        %4277 = vdwg.mxu0
        %v4278 = vmul.f32 %v4272, 0.5
        %v4279 = vmul.f32 %v4275, 0.5
        %v4280 = vmul.f32 %v4272, 0.044715
        %v4281 = vmul.f32 %v4275, 0.044715
        %v4282 = vmul.f32 %v4280, %v4272
        %v4283 = vmul.f32 %v4281, %v4275
        %v4284 = vmul.f32 %v4282, %v4272
        %v4285 = vmul.f32 %v4283, %v4275
        %v4286 = vadd.f32 %v4272, %v4284
        %v4287 = vadd.f32 %v4275, %v4285
        %v4288 = vmul.f32 %v4286, 0.7978846
        %v4289 = vmul.f32 %v4287, 0.7978846
        %v4290 = vtanh.pop %v4288
        %v4291 = vtanh.pop %v4289
        %v4292 = vadd.f32 %v4290, 1.0
        %v4293 = vadd.f32 %v4291, 1.0
        %v4294 = vmul.f32 %v4278, %v4292
        %v4295 = vmul.f32 %v4279, %v4293
        %v4296 = vpack.c.bf16 %v4295, %v4294
        %v4313 = vunpack.c.l.b16 %v4200
        %v4314 = vunpack.c.l.b16 %v4201
        %v4315 = vunpack.c.l.b16 %v4202
        %v4316 = vunpack.c.l.b16 %v4203
        %v4317 = vunpack.c.l.b16 %v4204
        %v4318 = vunpack.c.l.b16 %v4205
        %v4319 = vunpack.c.l.b16 %v4206
        %v4320 = vunpack.c.l.b16 %v4207
        %v4321 = vunpack.c.l.b16 %v4208
        %v4322 = vunpack.c.l.b16 %v4209
        %v4323 = vunpack.c.l.b16 %v4210
        %v4324 = vunpack.c.l.b16 %v4211
        %v4325 = vunpack.c.l.b16 %v4212
        %v4326 = vunpack.c.l.b16 %v4213
        %v4327 = vunpack.c.l.b16 %v4214
        %v4328 = vunpack.c.l.b16 %v4215
        %v4329 = vpack.c.b16 %v4314, %v4313
        %v4330 = vpack.c.b16 %v4316, %v4315
        %v4331 = vpack.c.b16 %v4318, %v4317
        %v4332 = vpack.c.b16 %v4320, %v4319
        %v4333 = vpack.c.b16 %v4322, %v4321
        %v4334 = vpack.c.b16 %v4324, %v4323
        %v4335 = vpack.c.b16 %v4326, %v4325
        %v4336 = vpack.c.b16 %v4328, %v4327
        %4345 = vmatprep.subr.bf16.mxu0 0
        %4346 = vmatpush1.bf16.msra.mxu0 %v4329
        %4347 = vmatprep.subr.bf16.mxu0 0
        %4348 = vmatpush1.bf16.msra.mxu0 %v4330
        %4349 = vmatprep.subr.bf16.mxu0 0
        %4350 = vmatpush1.bf16.msra.mxu0 %v4331
        %4351 = vmatprep.subr.bf16.mxu0 0
        %4352 = vmatpush1.bf16.msra.mxu0 %v4332
        %4353 = vmatprep.subr.bf16.mxu0 0
        %4354 = vmatpush1.bf16.msra.mxu0 %v4333
        %4355 = vmatprep.subr.bf16.mxu0 0
        %4356 = vmatpush1.bf16.msra.mxu0 %v4334
        %4357 = vmatprep.subr.bf16.mxu0 0
        %4358 = vmatpush1.bf16.msra.mxu0 %v4335
        %4359 = vmatprep.subr.bf16.mxu0 0
        %4360 = vmatpush1.bf16.msra.mxu0 %v4336
        %4361 = vmatprep.subr.bf16.mxu0 0
        %4362 = vmatpush1.bf16.msra.mxu0 0
        %4363 = vmatprep.subr.bf16.mxu0 0
        %4364 = vmatpush1.bf16.msra.mxu0 0
        %4365 = vmatprep.subr.bf16.mxu0 0
        %4366 = vmatpush1.bf16.msra.mxu0 0
        %4367 = vmatprep.subr.bf16.mxu0 0
        %4368 = vmatpush1.bf16.msra.mxu0 0
        %4369 = vmatprep.subr.bf16.mxu0 0
        %4370 = vmatpush1.bf16.msra.mxu0 0
        %4371 = vmatprep.subr.bf16.mxu0 0
        %4372 = vmatpush1.bf16.msra.mxu0 0
        %4373 = vmatprep.subr.bf16.mxu0 0
        %4374 = vmatpush1.bf16.msra.mxu0 0
        %4375 = vmatprep.subr.bf16.mxu0 0
        %4376 = vmatpush1.bf16.msra.mxu0 0
        %4377 = vmatprep.mubr.bf16.mxu0 0
        %4378 = vmatmul.mubr.bf16.gmra.mrb[0].mxu0 %v4296
        %v4379 = vpop.f32.mrb[0].mxu0
        %v4380 = vadd.f32 0.0, %v4379
        %v4381 = vpop.f32.mrb[0].mxu0
        %v4382 = vpop.f32.mrb[0].mxu0
        %v4383 = vadd.f32 0.0, %v4382
        %v4384 = vpop.f32.mrb[0].mxu0
        %4385 = vdwg.mxu0
        %v4386 = vadd.f32 %v4148, %v4380
        %v4387 = vadd.f32 %v4149, %v4383
        %v4388 = vld [vmem:[%s883] sm:$0x1]
        %v4390 = vlaneseq
        %v4391 = vshrl.u32 %v4390, 7
        %v4392 = vsub.s32 0, %v4391
        %v4393 = vrot.slane %v4388, %v4392
        %v4395 = vadd.f32 %v4386, %v4393
        %v4396 = vadd.f32 %v4387, %v4393
        %4397 = vst.msk [vmem:[#allocation2] sm:$0xff] %vm1004, %v4395
        %4398 = vst.msk [vmem:[#allocation2 + $0x8] sm:$0xff] %vm1004, %v4396
        %p4399 = scmp.eq.s32.totalorder %s51, 2
        // Predicated region
        $region153: #{tpu_custom_call.1} parent=83 // pred_check
          %p4400 = pneg %p4399
        $region154: #{tpu_custom_call.1} parent=83 // pred_check_branch
          %4402 = sbr.rel (%p4400) target = $region156
        $region155: #{tpu_custom_call.1} parent=83 // pred_region
          %v4403 = vld [vmem:[#allocation26] sm:$0x1]
          %v4404 = vld [vmem:[#allocation27] sm:$0x1]
          %v4405 = vsel %vm1004, %v4395, 0.0
          %4406 = vadd.xlane.f32.xlu0 %v4405
          %v4407 = vpop.xlane.xlu0 %4406
          %v4408 = vsel %vm1004, %v4396, 0.0
          %4409 = vadd.xlane.f32.xlu0 %v4408
          %v4410 = vpop.xlane.xlu0 %4409
          %v4411 = vmul.f32 %v4407, %v1011
          %v4412 = vmul.f32 %v4410, %v1011
          %v4413 = vsub.f32 %v4395, %v4411
          %v4414 = vsub.f32 %v4396, %v4412
          %v4415 = vmul.f32 %v4413, %v4413
          %v4416 = vmul.f32 %v4414, %v4414
          %v4417 = vsel %vm1004, %v4415, 0.0
          %4418 = vadd.xlane.f32.xlu0 %v4417
          %v4419 = vpop.xlane.xlu0 %4418
          %v4420 = vsel %vm1004, %v4416, 0.0
          %4421 = vadd.xlane.f32.xlu0 %v4420
          %v4422 = vpop.xlane.xlu0 %4421
          %v4423 = vmul.f32 %v4419, %v1011
          %v4424 = vmul.f32 %v4422, %v1011
          %v4425 = vadd.f32 %v4423, 1e-05
          %v4426 = vadd.f32 %v4424, 1e-05
          %v4427 = vrsqrt.pop %v4425
          %v4428 = vrsqrt.pop %v4426
          %v4429 = vmul.f32 %v4413, %v4427
          %v4430 = vmul.f32 %v4414, %v4428
          %v4432 = vlaneseq
          %v4433 = vshrl.u32 %v4432, 7
          %v4434 = vsub.s32 0, %v4433
          %v4435 = vrot.slane %v4403, %v4434
          %v4437 = vmul.f32 %v4429, %v4435
          %v4438 = vmul.f32 %v4430, %v4435
          %v4440 = vlaneseq
          %v4441 = vshrl.u32 %v4440, 7
          %v4442 = vsub.s32 0, %v4441
          %v4443 = vrot.slane %v4404, %v4442
          %v4445 = vadd.f32 %v4437, %v4443
          %v4446 = vadd.f32 %v4438, %v4443
          %v4447 = vpack.c.bf16 %v4445, %v4445
          %v4448 = vpack.c.bf16 %v4446, %v4446
          %vm4449 = vcmask 257024
          %4450 = vst.msk [vmem:[#allocation29] sm:$0xf] %vm4449, %v4447
          %4451 = vst.msk [vmem:[#allocation29 + $0x4] sm:$0xf] %vm4449, %v4448
        $region156: #{tpu_custom_call.1} parent=83 // pred_fallthru
          _
        // Predicated region
        $region157: #{tpu_custom_call.1} parent=83 // pred_check
          %p4452 = pneg %p465
        $region158: #{tpu_custom_call.1} parent=83 // pred_check_branch
          %4454 = sbr.rel (%p4452) target = $region160
        $region159: #{tpu_custom_call.1} parent=83 // pred_region
          %s4456 = ssub.s32 128, 128
          %4457 = vsyncadd [#allocation5], %s4456
          %s4458 = sshll.u32 [#allocation29], 4
          %s4459 = int_to_ptr.vmem [resolvable:$true] %s4458
          %4464 = dma.vmem_to_hbm [thread:$0]  %s4459, 128, %s16, [#allocation5], 64, 64, 4
        $region160: #{tpu_custom_call.1} parent=83 // pred_fallthru
          _
        // Predicated region
        $region161: #{tpu_custom_call.1} parent=83 // pred_check
          %p4465 = pneg %p465
        $region162: #{tpu_custom_call.1} parent=83 // pred_check_branch
          %4467 = sbr.rel (%p4465) target = $region164
        $region163: #{tpu_custom_call.1} parent=83 // pred_region
          %4468 = dma.done [#allocation5], 128
        $region164: #{tpu_custom_call.1} parent=83 // pred_fallthru
          _
      $region84: #{tpu_custom_call.1} parent=5 // pred_fallthru
        _
      %p4469 = scmp.le.s32.totalorder 2, %s46
      // Predicated region
      $region165: #{tpu_custom_call.1} parent=5 // pred_check
        %p4470 = pneg %p4469
      $region166: #{tpu_custom_call.1} parent=5 // pred_check_branch
        %4472 = sbr.rel (%p4470) target = $region168
      $region167: #{tpu_custom_call.1} parent=5 // pred_region
        %s4473 = ssub.s32 %s46, 2
      $region168: #{tpu_custom_call.1} parent=5 // pred_fallthru
        _
    $region6: #{tpu_custom_call.1} parent=1 // loop_footer
      %s50 = sadd.s32 1, %s46
    $region7: #{tpu_custom_call.1} parent=1 // loop_footer_branch
      %45 = sbr.rel target = $region3
    $region8: #{tpu_custom_call.1} parent=1 // loop_exit
      _
    %4474 = vsyncpa [#allocation4], 1
    %s4475 = scalar_lea.sflag [#allocation4], 1
    %4476 = vsyncpa %s4475, 1
    %4477 = vsyncpa [#allocation7], 1
    %s4478 = scalar_lea.sflag [#allocation7], 1
    %4479 = vsyncpa %s4478, 1
    %4480 = vsyncpa [#allocation10], 1
    %s4481 = scalar_lea.sflag [#allocation10], 1
    %4482 = vsyncpa %s4481, 1
    %4483 = vsyncpa [#allocation13], 1
    %s4484 = scalar_lea.sflag [#allocation13], 1
    %4485 = vsyncpa %s4484, 1
    %4486 = vsyncpa [#allocation16], 1
    %s4487 = scalar_lea.sflag [#allocation16], 1
    %4488 = vsyncpa %s4487, 1
    %4489 = vsyncpa [#allocation19], 1
    %s4490 = scalar_lea.sflag [#allocation19], 1
    %4491 = vsyncpa %s4490, 1
    %4492 = vsyncpa [#allocation22], 1
    %s4493 = scalar_lea.sflag [#allocation22], 1
    %4494 = vsyncpa %s4493, 1
    %4495 = vsyncpa [#allocation25], 1
    %s4496 = scalar_lea.sflag [#allocation25], 1
    %4497 = vsyncpa %s4496, 1
    %4498 = vsyncpa [#allocation28], 1
    %4499 = vsyncpa [#allocation5], 1
    %s4500 = scalar_lea.sflag [#allocation5], 1
    %4501 = vsyncpa %s4500, 1

</llo_original>
